<compile_context>
chip_gen: v7x
topology: tpu7x:2x2x1
jax: 0.10.0
libtpu: 0.0.40
codegen_flags: <defaults>
</compile_context>

<pallas_src>
import numpy as np
import jax
import jax.numpy as jnp
from jax.experimental import pallas as pl
from jax.experimental.pallas import tpu as pltpu


# ----------------------------- fused Pallas kernel ---------------------------

def discriminator_kernel(x_ref,
                         op1_ref, a1_ref,
                         op2_ref, a2_ref,
                         op3_ref, a3_ref,
                         op4_ref, a4_ref,
                         lw_ref, lb_ref, o_ref):
    # x_ref   : (bm, 256)  flattened 16x16x1 images (batch tile)
    # opN_ref : (Kin_N, Kout_N) dense per-layer operator (conv + stride-2 + zero pad)
    # aN_ref  : (3, Kout_N)     [conv bias ; BN scale ; BN shift], flattened layout
    # lw_ref  : (128, 1) adv weights (VMEM);  lb_ref : (1, 1) adv bias (SMEM)
    # o_ref   : (bm, 1)

    def layer(act, op_ref, aff_ref):
        # One lane-dense MXU matmul per conv layer; f32 accumulation.
        y = jnp.dot(act, op_ref[...], preferred_element_type=jnp.float32)
        y = y + aff_ref[0:1, :]                        # conv bias
        y = jnp.where(y > 0.0, y, 0.2 * y)             # LeakyReLU(0.2); Dropout2d = id (eval)
        return y * aff_ref[1:2, :] + aff_ref[2:3, :]   # eval-mode BN (identity on layer 1)

    a = layer(x_ref[...], op1_ref, a1_ref)             # (bm, 1024) = 8*8*16
    a = layer(a, op2_ref, a2_ref)                      # (bm,  512) = 4*4*32
    a = layer(a, op3_ref, a3_ref)                      # (bm,  256) = 2*2*64
    a = layer(a, op4_ref, a4_ref)                      # (bm,  128) = 1*1*128

    # adv_layer: Linear(128, 1) fused epilogue (bias read as an SMEM scalar).
    o_ref[...] = (jnp.dot(a, lw_ref[...], preferred_element_type=jnp.float32)
                  + lb_ref[0, 0])


# ------------------------------ JAX wrapper ----------------------------------

def discriminator_forward(img_nchw, kparams):
    """img_nchw: (B, 1, 16, 16) PyTorch-style input; kparams: prepare_kernel_params()."""
    B = img_nchw.shape[0]
    x = img_nchw.reshape(B, -1).astype(jnp.float32)    # (B, 256) — metadata-only reshape
    feat_in = x.shape[1]

    bm = B if B <= 128 else 128                        # batch tile (single tile at B=2)
    assert B % bm == 0, "batch must be <=128 or a multiple of 128"
    grid = (B // bm,)

    vmem = pltpu.MemorySpace.VMEM
    smem = pltpu.MemorySpace.SMEM

    def resident(arr):
        # Full-array VMEM block whose index is constant across the batch grid,
        # so it is DMA'd once and stays resident.
        return pl.BlockSpec(arr.shape, lambda i: (0, 0), memory_space=vmem)

    op1, a1, op2, a2, op3, a3, op4, a4, lw, lb = kparams
    in_specs = [pl.BlockSpec((bm, feat_in), lambda i: (i, 0), memory_space=vmem)]
    in_specs += [resident(t) for t in (op1, a1, op2, a2, op3, a3, op4, a4, lw)]
    in_specs += [pl.BlockSpec(memory_space=smem)]      # (1,1) adv bias scalar

    return pl.pallas_call(
        discriminator_kernel,
        out_shape=jax.ShapeDtypeStruct((B, 1), jnp.float32),
        grid=grid,
        in_specs=in_specs,
        out_specs=pl.BlockSpec((bm, 1), lambda i: (i, 0), memory_space=vmem),
        compiler_params=pltpu.CompilerParams(
            dimension_semantics=("parallel",),          # batch tiles -> both v7x TCs
            vmem_limit_bytes=32 * 1024 * 1024),         # explicit budget (review item)
    )(x, *kparams)


# -------------------- parameter preparation (host-side, once) ----------------

def _conv_as_dense_operator(w, H):
    """Fold a 3x3 / stride-2 / pad-1 conv (w: (3,3,Cin,Cout)) into a dense
    (H*W*Cin, Ho*Wo*Cout) operator on channels-last flattened activations.
    Batch-independent; every entry is 0 or an exact conv-weight value."""
    W = H
    Cin, Cout = w.shape[2], w.shape[3]
    Ho, Wo = H // 2, W // 2
    wn = np.asarray(w, np.float32)
    op = np.zeros((H * W * Cin, Ho * Wo * Cout), np.float32)
    for i in range(Ho):
        for j in range(Wo):
            dst = (i * Wo + j) * Cout
            for kh in range(3):
                h = 2 * i + kh - 1
                if not (0 <= h < H):
                    continue
                for kw in range(3):
                    wc = 2 * j + kw - 1
                    if not (0 <= wc < W):
                        continue
                    src = (h * W + wc) * Cin
                    op[src:src + Cin, dst:dst + Cout] = wn[kh, kw]
    return jnp.asarray(op)


def _affine_rows(bias, scale, shift, n_spatial):
    """Per-channel vectors broadcast over output spatial positions, flattened layout."""
    def tile(v):
        return jnp.tile(v[None, :], (n_spatial, 1)).reshape(1, -1)
    return jnp.concatenate([tile(bias), tile(scale), tile(shift)], axis=0)  # (3, S*C)


def prepare_kernel_params(params, img_size=16):
    """Flatten module params into the kernel-ready argument tuple (done once, no B dep)."""
    kp = []
    H = img_size
    for p in params["convs"]:
        Ho = H // 2
        kp.append(_conv_as_dense_operator(p["w"], H))                       # (HWCin, HoWoCout)
        kp.append(_affine_rows(p["b"], p["scale"], p["shift"], Ho * Ho))    # (3, HoWoCout)
        H = Ho
    kp.append(params["lin_w"])                                              # (128, 1)
    kp.append(params["lin_b"].reshape(1, 1))                                # (1, 1)
    return tuple(kp)


# -------------------------- params & pure-JAX reference ----------------------

def init_params(key):
    eps = 0.8                              # BatchNorm2d(out_feat, 0.8) -> eps = 0.8
    channels = [1, 16, 32, 64, 128]
    convs = []
    for i in range(4):
        cin, cout = channels[i], channels[i + 1]
        key, kw, kb, kg, kbe = jax.random.split(key, 5)
        w = jax.random.normal(kw, (3, 3, cin, cout), jnp.float32) / np.sqrt(9.0 * cin)
        b = 0.05 * jax.random.normal(kb, (cout,), jnp.float32)
        if i == 0:                         # first block: bn=False -> identity
            scale = jnp.ones((cout,), jnp.float32)
            shift = jnp.zeros((cout,), jnp.float32)
        else:                              # eval-mode BN folded into scale/shift
            gamma = 1.0 + 0.1 * jax.random.normal(kg, (cout,), jnp.float32)
            beta = 0.1 * jax.random.normal(kbe, (cout,), jnp.float32)
            running_mean = jnp.zeros((cout,), jnp.float32)
            running_var = jnp.ones((cout,), jnp.float32)
            scale = gamma / jnp.sqrt(running_var + eps)
            shift = beta - running_mean * scale
        convs.append(dict(w=w, b=b, scale=scale, shift=shift))
    key, kw, kb = jax.random.split(key, 3)
    lin_w = jax.random.normal(kw, (128, 1), jnp.float32) / np.sqrt(128.0)
    lin_b = 0.05 * jax.random.normal(kb, (1,), jnp.float32)
    return dict(convs=convs, lin_w=lin_w, lin_b=lin_b)


def reference_forward(img_nchw, params):
    x = img_nchw.astype(jnp.float32)
    for p in params["convs"]:
        w_oihw = jnp.transpose(p["w"], (3, 2, 0, 1))
        x = jax.lax.conv_general_dilated(
            x, w_oihw, window_strides=(2, 2), padding=((1, 1), (1, 1)),
            dimension_numbers=("NCHW", "OIHW", "NCHW"),
            precision=jax.lax.Precision.HIGHEST)
        x = x + p["b"][None, :, None, None]
        x = jnp.where(x > 0.0, x, 0.2 * x)
        x = x * p["scale"][None, :, None, None] + p["shift"][None, :, None, None]
    x = x.reshape(x.shape[0], -1)
    return jnp.dot(x, params["lin_w"], precision=jax.lax.Precision.HIGHEST) + params["lin_b"]


# ----------------------------------- main -------------------------------------

if __name__ == "__main__":
    root = jax.random.PRNGKey(0)
    k_img, k_par = jax.random.split(root)

    img = jax.random.normal(k_img, (2, 1, 16, 16), jnp.float32)   # NCHW, like PyTorch
    params = init_params(k_par)
    kparams = prepare_kernel_params(params, img_size=16)          # one-time, batch-free prep

    fwd = jax.jit(discriminator_forward)
    out = jax.block_until_ready(fwd(img, kparams))

    ref = reference_forward(img, params)
    assert out.shape == (2, 1), out.shape
    np.testing.assert_allclose(np.asarray(out), np.asarray(ref), rtol=5e-3, atol=5e-3)

    print("KERNEL_OK")
</pallas_src>

<mosaic_0001>
module attributes {stable_mosaic.version = 11 : i64} {
  func.func @discriminator_kernel(%arg0: i32, %arg1: memref<2x256xf32, #tpu.memory_space<vmem>>, %arg2: memref<256x1024xf32, #tpu.memory_space<vmem>>, %arg3: memref<3x1024xf32, #tpu.memory_space<vmem>>, %arg4: memref<1024x512xf32, #tpu.memory_space<vmem>>, %arg5: memref<3x512xf32, #tpu.memory_space<vmem>>, %arg6: memref<512x256xf32, #tpu.memory_space<vmem>>, %arg7: memref<3x256xf32, #tpu.memory_space<vmem>>, %arg8: memref<256x128xf32, #tpu.memory_space<vmem>>, %arg9: memref<3x128xf32, #tpu.memory_space<vmem>>, %arg10: memref<128x1xf32, #tpu.memory_space<vmem>>, %arg11: memref<1x1xf32, #tpu.memory_space<smem>>, %arg12: memref<2x1xf32, #tpu.memory_space<vmem>>) attributes {dimension_semantics = [#tpu.dimension_semantics<parallel>], iteration_bounds = array<i64: 1>, scalar_prefetch = 0 : i64, scratch_operands = 0 : i64, tpu.core_type = #tpu.core_type<tc>, window_params = [{transform_indices = @transform_0, window_bounds = array<i64: 2, 256>}, {pipeline_mode = #tpu.pipeline_mode<synchronous>, transform_indices = @transform_1, window_bounds = array<i64: 256, 1024>}, {pipeline_mode = #tpu.pipeline_mode<synchronous>, transform_indices = @transform_2, window_bounds = array<i64: 3, 1024>}, {pipeline_mode = #tpu.pipeline_mode<synchronous>, transform_indices = @transform_3, window_bounds = array<i64: 1024, 512>}, {pipeline_mode = #tpu.pipeline_mode<synchronous>, transform_indices = @transform_4, window_bounds = array<i64: 3, 512>}, {pipeline_mode = #tpu.pipeline_mode<synchronous>, transform_indices = @transform_5, window_bounds = array<i64: 512, 256>}, {pipeline_mode = #tpu.pipeline_mode<synchronous>, transform_indices = @transform_6, window_bounds = array<i64: 3, 256>}, {pipeline_mode = #tpu.pipeline_mode<synchronous>, transform_indices = @transform_7, window_bounds = array<i64: 256, 128>}, {pipeline_mode = #tpu.pipeline_mode<synchronous>, transform_indices = @transform_8, window_bounds = array<i64: 3, 128>}, {pipeline_mode = #tpu.pipeline_mode<synchronous>, transform_indices = @transform_9, window_bounds = array<i64: 128, 1>}, {transform_indices = @transform_10, window_bounds = array<i64: 1, 1>}, {transform_indices = @transform_11, window_bounds = array<i64: 2, 1>}]} {
    %c0 = arith.constant 0 : index
    %c0_0 = arith.constant 0 : index
    %0 = vector.load %arg1[%c0, %c0_0] : memref<2x256xf32, #tpu.memory_space<vmem>>, vector<2x256xf32>
    %c0_1 = arith.constant 0 : index
    %c0_2 = arith.constant 0 : index
    %1 = vector.load %arg2[%c0_1, %c0_2] : memref<256x1024xf32, #tpu.memory_space<vmem>>, vector<256x1024xf32>
    %cst = arith.constant dense<0.000000e+00> : vector<2x1024xf32>
    %2 = tpu.matmul %0, %1, %cst {dimension_numbers = #tpu.dot_dimension_numbers<[1], [0], [0], [1], [0, 0, 1, 1], [], []>} : vector<2x256xf32>, vector<256x1024xf32>, vector<2x1024xf32> -> vector<2x1024xf32>
    %c0_3 = arith.constant 0 : index
    %c0_4 = arith.constant 0 : index
    %3 = vector.load %arg3[%c0_3, %c0_4] : memref<3x1024xf32, #tpu.memory_space<vmem>>, vector<1x1024xf32>
    %4 = vector.broadcast %3 : vector<1x1024xf32> to vector<2x1024xf32>
    %5 = arith.addf %2, %4 : vector<2x1024xf32>
    %cst_5 = arith.constant 0.000000e+00 : f32
    %6 = vector.broadcast %cst_5 : f32 to vector<2x1024xf32>
    %7 = arith.cmpf ogt, %5, %6 : vector<2x1024xf32>
    %cst_6 = arith.constant 2.000000e-01 : f32
    %8 = vector.broadcast %cst_6 : f32 to vector<2x1024xf32>
    %9 = arith.mulf %8, %5 : vector<2x1024xf32>
    %10 = arith.select %7, %5, %9 : vector<2x1024xi1>, vector<2x1024xf32>
    %c1 = arith.constant 1 : index
    %c0_7 = arith.constant 0 : index
    %11 = vector.load %arg3[%c1, %c0_7] : memref<3x1024xf32, #tpu.memory_space<vmem>>, vector<1x1024xf32>
    %12 = vector.broadcast %11 : vector<1x1024xf32> to vector<2x1024xf32>
    %13 = arith.mulf %10, %12 : vector<2x1024xf32>
    %c2 = arith.constant 2 : index
    %c0_8 = arith.constant 0 : index
    %14 = vector.load %arg3[%c2, %c0_8] : memref<3x1024xf32, #tpu.memory_space<vmem>>, vector<1x1024xf32>
    %15 = vector.broadcast %14 : vector<1x1024xf32> to vector<2x1024xf32>
    %16 = arith.addf %13, %15 : vector<2x1024xf32>
    %c0_9 = arith.constant 0 : index
    %c0_10 = arith.constant 0 : index
    %17 = vector.load %arg4[%c0_9, %c0_10] : memref<1024x512xf32, #tpu.memory_space<vmem>>, vector<1024x512xf32>
    %cst_11 = arith.constant dense<0.000000e+00> : vector<2x512xf32>
    %18 = tpu.matmul %16, %17, %cst_11 {dimension_numbers = #tpu.dot_dimension_numbers<[1], [0], [0], [1], [0, 0, 1, 1], [], []>} : vector<2x1024xf32>, vector<1024x512xf32>, vector<2x512xf32> -> vector<2x512xf32>
    %c0_12 = arith.constant 0 : index
    %c0_13 = arith.constant 0 : index
    %19 = vector.load %arg5[%c0_12, %c0_13] : memref<3x512xf32, #tpu.memory_space<vmem>>, vector<1x512xf32>
    %20 = vector.broadcast %19 : vector<1x512xf32> to vector<2x512xf32>
    %21 = arith.addf %18, %20 : vector<2x512xf32>
    %cst_14 = arith.constant 0.000000e+00 : f32
    %22 = vector.broadcast %cst_14 : f32 to vector<2x512xf32>
    %23 = arith.cmpf ogt, %21, %22 : vector<2x512xf32>
    %cst_15 = arith.constant 2.000000e-01 : f32
    %24 = vector.broadcast %cst_15 : f32 to vector<2x512xf32>
    %25 = arith.mulf %24, %21 : vector<2x512xf32>
    %26 = arith.select %23, %21, %25 : vector<2x512xi1>, vector<2x512xf32>
    %c1_16 = arith.constant 1 : index
    %c0_17 = arith.constant 0 : index
    %27 = vector.load %arg5[%c1_16, %c0_17] : memref<3x512xf32, #tpu.memory_space<vmem>>, vector<1x512xf32>
    %28 = vector.broadcast %27 : vector<1x512xf32> to vector<2x512xf32>
    %29 = arith.mulf %26, %28 : vector<2x512xf32>
    %c2_18 = arith.constant 2 : index
    %c0_19 = arith.constant 0 : index
    %30 = vector.load %arg5[%c2_18, %c0_19] : memref<3x512xf32, #tpu.memory_space<vmem>>, vector<1x512xf32>
    %31 = vector.broadcast %30 : vector<1x512xf32> to vector<2x512xf32>
    %32 = arith.addf %29, %31 : vector<2x512xf32>
    %c0_20 = arith.constant 0 : index
    %c0_21 = arith.constant 0 : index
    %33 = vector.load %arg6[%c0_20, %c0_21] : memref<512x256xf32, #tpu.memory_space<vmem>>, vector<512x256xf32>
    %cst_22 = arith.constant dense<0.000000e+00> : vector<2x256xf32>
    %34 = tpu.matmul %32, %33, %cst_22 {dimension_numbers = #tpu.dot_dimension_numbers<[1], [0], [0], [1], [0, 0, 1, 1], [], []>} : vector<2x512xf32>, vector<512x256xf32>, vector<2x256xf32> -> vector<2x256xf32>
    %c0_23 = arith.constant 0 : index
    %c0_24 = arith.constant 0 : index
    %35 = vector.load %arg7[%c0_23, %c0_24] : memref<3x256xf32, #tpu.memory_space<vmem>>, vector<1x256xf32>
    %36 = vector.broadcast %35 : vector<1x256xf32> to vector<2x256xf32>
    %37 = arith.addf %34, %36 : vector<2x256xf32>
    %cst_25 = arith.constant 0.000000e+00 : f32
    %38 = vector.broadcast %cst_25 : f32 to vector<2x256xf32>
    %39 = arith.cmpf ogt, %37, %38 : vector<2x256xf32>
    %cst_26 = arith.constant 2.000000e-01 : f32
    %40 = vector.broadcast %cst_26 : f32 to vector<2x256xf32>
    %41 = arith.mulf %40, %37 : vector<2x256xf32>
    %42 = arith.select %39, %37, %41 : vector<2x256xi1>, vector<2x256xf32>
    %c1_27 = arith.constant 1 : index
    %c0_28 = arith.constant 0 : index
    %43 = vector.load %arg7[%c1_27, %c0_28] : memref<3x256xf32, #tpu.memory_space<vmem>>, vector<1x256xf32>
    %44 = vector.broadcast %43 : vector<1x256xf32> to vector<2x256xf32>
    %45 = arith.mulf %42, %44 : vector<2x256xf32>
    %c2_29 = arith.constant 2 : index
    %c0_30 = arith.constant 0 : index
    %46 = vector.load %arg7[%c2_29, %c0_30] : memref<3x256xf32, #tpu.memory_space<vmem>>, vector<1x256xf32>
    %47 = vector.broadcast %46 : vector<1x256xf32> to vector<2x256xf32>
    %48 = arith.addf %45, %47 : vector<2x256xf32>
    %c0_31 = arith.constant 0 : index
    %c0_32 = arith.constant 0 : index
    %49 = vector.load %arg8[%c0_31, %c0_32] : memref<256x128xf32, #tpu.memory_space<vmem>>, vector<256x128xf32>
    %cst_33 = arith.constant dense<0.000000e+00> : vector<2x128xf32>
    %50 = tpu.matmul %48, %49, %cst_33 {dimension_numbers = #tpu.dot_dimension_numbers<[1], [0], [0], [1], [0, 0, 1, 1], [], []>} : vector<2x256xf32>, vector<256x128xf32>, vector<2x128xf32> -> vector<2x128xf32>
    %c0_34 = arith.constant 0 : index
    %c0_35 = arith.constant 0 : index
    %51 = vector.load %arg9[%c0_34, %c0_35] : memref<3x128xf32, #tpu.memory_space<vmem>>, vector<1x128xf32>
    %52 = vector.broadcast %51 : vector<1x128xf32> to vector<2x128xf32>
    %53 = arith.addf %50, %52 : vector<2x128xf32>
    %cst_36 = arith.constant 0.000000e+00 : f32
    %54 = vector.broadcast %cst_36 : f32 to vector<2x128xf32>
    %55 = arith.cmpf ogt, %53, %54 : vector<2x128xf32>
    %cst_37 = arith.constant 2.000000e-01 : f32
    %56 = vector.broadcast %cst_37 : f32 to vector<2x128xf32>
    %57 = arith.mulf %56, %53 : vector<2x128xf32>
    %58 = arith.select %55, %53, %57 : vector<2x128xi1>, vector<2x128xf32>
    %c1_38 = arith.constant 1 : index
    %c0_39 = arith.constant 0 : index
    %59 = vector.load %arg9[%c1_38, %c0_39] : memref<3x128xf32, #tpu.memory_space<vmem>>, vector<1x128xf32>
    %60 = vector.broadcast %59 : vector<1x128xf32> to vector<2x128xf32>
    %61 = arith.mulf %58, %60 : vector<2x128xf32>
    %c2_40 = arith.constant 2 : index
    %c0_41 = arith.constant 0 : index
    %62 = vector.load %arg9[%c2_40, %c0_41] : memref<3x128xf32, #tpu.memory_space<vmem>>, vector<1x128xf32>
    %63 = vector.broadcast %62 : vector<1x128xf32> to vector<2x128xf32>
    %64 = arith.addf %61, %63 : vector<2x128xf32>
    %c0_42 = arith.constant 0 : index
    %c0_43 = arith.constant 0 : index
    %65 = vector.load %arg10[%c0_42, %c0_43] : memref<128x1xf32, #tpu.memory_space<vmem>>, vector<128x1xf32>
    %cst_44 = arith.constant dense<0.000000e+00> : vector<2x1xf32>
    %66 = tpu.matmul %64, %65, %cst_44 {dimension_numbers = #tpu.dot_dimension_numbers<[1], [0], [0], [1], [0, 0, 1, 1], [], []>} : vector<2x128xf32>, vector<128x1xf32>, vector<2x1xf32> -> vector<2x1xf32>
    %c0_45 = arith.constant 0 : index
    %c0_46 = arith.constant 0 : index
    %67 = memref.load %arg11[%c0_45, %c0_46] : memref<1x1xf32, #tpu.memory_space<smem>>
    %68 = vector.broadcast %67 : f32 to vector<2x1xf32>
    %69 = arith.addf %66, %68 : vector<2x1xf32>
    %c0_47 = arith.constant 0 : index
    %c0_48 = arith.constant 0 : index
    %70 = vector.load %arg12[%c0_47, %c0_48] : memref<2x1xf32, #tpu.memory_space<vmem>>, vector<2x1xf32>
    tpu.vector_store %arg12[%c0_47, %c0_48], %69 {strides = array<i32>} : memref<2x1xf32, #tpu.memory_space<vmem>>, vector<2x1xf32>,
    return
  }
  func.func @transform_0(%arg0: i32) -> (i32, i32) {
    %c0_i32 = arith.constant 0 : i32
    %c0_i32_0 = arith.constant 0 : i32
    return %arg0, %c0_i32 : i32, i32
  }
  func.func @transform_1(%arg0: i32) -> (i32, i32) {
    %c0_i32 = arith.constant 0 : i32
    %c0_i32_0 = arith.constant 0 : i32
    %c0_i32_1 = arith.constant 0 : i32
    return %c0_i32, %c0_i32_0 : i32, i32
  }
  func.func @transform_2(%arg0: i32) -> (i32, i32) {
    %c0_i32 = arith.constant 0 : i32
    %c0_i32_0 = arith.constant 0 : i32
    %c0_i32_1 = arith.constant 0 : i32
    return %c0_i32, %c0_i32_0 : i32, i32
  }
  func.func @transform_3(%arg0: i32) -> (i32, i32) {
    %c0_i32 = arith.constant 0 : i32
    %c0_i32_0 = arith.constant 0 : i32
    %c0_i32_1 = arith.constant 0 : i32
    return %c0_i32, %c0_i32_0 : i32, i32
  }
  func.func @transform_4(%arg0: i32) -> (i32, i32) {
    %c0_i32 = arith.constant 0 : i32
    %c0_i32_0 = arith.constant 0 : i32
    %c0_i32_1 = arith.constant 0 : i32
    return %c0_i32, %c0_i32_0 : i32, i32
  }
  func.func @transform_5(%arg0: i32) -> (i32, i32) {
    %c0_i32 = arith.constant 0 : i32
    %c0_i32_0 = arith.constant 0 : i32
    %c0_i32_1 = arith.constant 0 : i32
    return %c0_i32, %c0_i32_0 : i32, i32
  }
  func.func @transform_6(%arg0: i32) -> (i32, i32) {
    %c0_i32 = arith.constant 0 : i32
    %c0_i32_0 = arith.constant 0 : i32
    %c0_i32_1 = arith.constant 0 : i32
    return %c0_i32, %c0_i32_0 : i32, i32
  }
  func.func @transform_7(%arg0: i32) -> (i32, i32) {
    %c0_i32 = arith.constant 0 : i32
    %c0_i32_0 = arith.constant 0 : i32
    %c0_i32_1 = arith.constant 0 : i32
    return %c0_i32, %c0_i32_0 : i32, i32
  }
  func.func @transform_8(%arg0: i32) -> (i32, i32) {
    %c0_i32 = arith.constant 0 : i32
    %c0_i32_0 = arith.constant 0 : i32
    %c0_i32_1 = arith.constant 0 : i32
    return %c0_i32, %c0_i32_0 : i32, i32
  }
  func.func @transform_9(%arg0: i32) -> (i32, i32) {
    %c0_i32 = arith.constant 0 : i32
    %c0_i32_0 = arith.constant 0 : i32
    %c0_i32_1 = arith.constant 0 : i32
    return %c0_i32, %c0_i32_0 : i32, i32
  }
  func.func @transform_10(%arg0: i32) -> (i32, i32) {
    %c0_i32 = arith.constant 0 : i32
    %c0_i32_0 = arith.constant 0 : i32
    %c0_i32_1 = arith.constant 0 : i32
    return %c0_i32, %c0_i32_0 : i32, i32
  }
  func.func @transform_11(%arg0: i32) -> (i32, i32) {
    %c0_i32 = arith.constant 0 : i32
    %c0_i32_0 = arith.constant 0 : i32
    return %arg0, %c0_i32 : i32, i32
  }
}

</mosaic_0001>

<llo_original>
// kernel: discriminator_forward.1
$region0: #{discriminator_forward.1}
  #allocation0 [shape = 'u32[]', space=smem, size = 0x4, offset = 0x4, fixed_abs, tag = 'smem constant byte address 0x4 - core index']
  #allocation1 [shape = 'u32[144,128]{1,0:T(1,128)}', space=vmem, size = 0x12000, scoped, tag = 'internal scratch']
  #allocation2 [shape = 'f32[1,1]{1,0:T(1,128)S(6)}', space=smem, size = 0x200, scoped, tag = 'scoped memory for discriminator_forward.1']
  %s0 = inlined_call_operand.vmem [shape: f32[2,256], index: 0, kind: input, shape index: {}]
  %s1 = inlined_call_operand.hbm [shape: f32[256,1024], index: 1, kind: input, shape index: {}]
  %s2 = inlined_call_operand.hbm [shape: f32[3,1024], index: 2, kind: input, shape index: {}]
  %s3 = inlined_call_operand.hbm [shape: f32[1024,512], index: 3, kind: input, shape index: {}]
  %s4 = inlined_call_operand.hbm [shape: f32[3,512], index: 4, kind: input, shape index: {}]
  %s5 = inlined_call_operand.hbm [shape: f32[512,256], index: 5, kind: input, shape index: {}]
  %s6 = inlined_call_operand.hbm [shape: f32[3,256], index: 6, kind: input, shape index: {}]
  %s7 = inlined_call_operand.hbm [shape: f32[256,128], index: 7, kind: input, shape index: {}]
  %s8 = inlined_call_operand.hbm [shape: f32[3,128], index: 8, kind: input, shape index: {}]
  %s9 = inlined_call_operand.vmem [shape: f32[128,1], index: 9, kind: input, shape index: {}]
  %s10 = inlined_call_operand.<no memory space> [shape: f32[1,1], index: 10, kind: input, shape index: {}]
  %s11 = inlined_call_operand.vmem [shape: f32[2,1], index: 11, kind: output, shape index: {}]
  %s12 = sld [smem:[#allocation0]]
  $region86: #{discriminator_forward.1} parent=0
    _
  %s14 = ssub.s32 1, %s12
  %s15 = scalar_select 0, %s14, %s12
  %16 = sst [smem:[#allocation2]] %s10
  $region1: #{discriminator_forward.1} parent=0
    #allocation3 [shape = 'u8[1048576]{0}', space=vmem, size = 0x100000, scoped, tag = 'input window, operand 1, single buffered']
    #allocation4 [shape = 's32[1]{0}', space=sflag, size = 0x4, scoped, tag = 'scoped memory for discriminator_forward.1']
    #allocation5 [shape = 'u8[16384]{0}', space=vmem, size = 0x4000, scoped, tag = 'input window, operand 2, single buffered']
    #allocation6 [shape = 's32[1]{0}', space=sflag, size = 0x4, scoped, tag = 'scoped memory for discriminator_forward.1']
    #allocation7 [shape = 'u8[2097152]{0}', space=vmem, size = 0x200000, scoped, tag = 'input window, operand 3, single buffered']
    #allocation8 [shape = 'u8[8192]{0}', space=vmem, size = 0x2000, scoped, tag = 'input window, operand 4, single buffered']
    #allocation9 [shape = 's32[1]{0}', space=sflag, size = 0x4, scoped, tag = 'scoped memory for discriminator_forward.1']
    #allocation10 [shape = 'u8[524288]{0}', space=vmem, size = 0x80000, scoped, tag = 'input window, operand 5, single buffered']
    #allocation11 [shape = 'u8[4096]{0}', space=vmem, size = 0x1000, scoped, tag = 'input window, operand 6, single buffered']
    #allocation12 [shape = 's32[1]{0}', space=sflag, size = 0x4, scoped, tag = 'scoped memory for discriminator_forward.1']
    #allocation13 [shape = 'u8[131072]{0}', space=vmem, size = 0x20000, scoped, tag = 'input window, operand 7, single buffered']
    #allocation14 [shape = 'u8[2048]{0}', space=vmem, size = 0x800, scoped, tag = 'input window, operand 8, single buffered']
    #allocation15 [shape = 's32[1]{0}', space=sflag, size = 0x4, scoped, tag = 'scoped memory for discriminator_forward.1']
    %17 = vsyncpa [#allocation4], 0
    %18 = vsyncpa [#allocation6], 0
    %19 = vsyncpa [#allocation9], 0
    %20 = vsyncpa [#allocation12], 0
    %21 = vsyncpa [#allocation15], 0
    // Predicated region
    $region2: #{discriminator_forward.1} parent=1 // pred_check
      _
    $region3: #{discriminator_forward.1} parent=1 // pred_check_branch
      %23 = sbr.rel (0) target = $region5
    $region4: #{discriminator_forward.1} parent=1 // pred_region
      _
    $region5: #{discriminator_forward.1} parent=1 // pred_fallthru
      _
    // Predicated region
    $region6: #{discriminator_forward.1} parent=1 // pred_check
      _
    $region7: #{discriminator_forward.1} parent=1 // pred_check_branch
      %25 = sbr.rel (0) target = $region9
    $region8: #{discriminator_forward.1} parent=1 // pred_region
      %s27 = ssub.s32 32768, 32768
      %28 = vsyncadd [#allocation4], %s27
      %s29 = sshll.u32 [#allocation3], 4
      %s30 = int_to_ptr.vmem [resolvable:$true] %s29
      %35 = dma.hbm_to_vmem [thread:$0]  %s1, 32768, %s30, [#allocation4], 1024, 1024, 64
    $region9: #{discriminator_forward.1} parent=1 // pred_fallthru
      _
    // Predicated region
    $region10: #{discriminator_forward.1} parent=1 // pred_check
      _
    $region11: #{discriminator_forward.1} parent=1 // pred_check_branch
      %37 = sbr.rel (0) target = $region13
    $region12: #{discriminator_forward.1} parent=1 // pred_region
      %s39 = ssub.s32 512, 512
      %40 = vsyncadd [#allocation6], %s39
      %s42 = sshll.u32 [#allocation5], 4
      %s43 = int_to_ptr.vmem [resolvable:$true] %s42
      %45 = dma.hbm_to_vmem [thread:$0]  %s2, 512, %s43, [#allocation6]
    $region13: #{discriminator_forward.1} parent=1 // pred_fallthru
      _
    // Predicated region
    $region14: #{discriminator_forward.1} parent=1 // pred_check
      _
    $region15: #{discriminator_forward.1} parent=1 // pred_check_branch
      %47 = sbr.rel (0) target = $region17
    $region16: #{discriminator_forward.1} parent=1 // pred_region
      %s49 = ssub.s32 65536, 65536
      %50 = vsyncadd [#allocation6], %s49
      %s51 = sshll.u32 [#allocation7], 4
      %s52 = int_to_ptr.vmem [resolvable:$true] %s51
      %57 = dma.hbm_to_vmem [thread:$0]  %s3, 65536, %s52, [#allocation6], 512, 512, 32
    $region17: #{discriminator_forward.1} parent=1 // pred_fallthru
      _
    // Predicated region
    $region18: #{discriminator_forward.1} parent=1 // pred_check
      _
    $region19: #{discriminator_forward.1} parent=1 // pred_check_branch
      %59 = sbr.rel (0) target = $region21
    $region20: #{discriminator_forward.1} parent=1 // pred_region
      %s61 = ssub.s32 256, 256
      %62 = vsyncadd [#allocation9], %s61
      %s64 = sshll.u32 [#allocation8], 4
      %s65 = int_to_ptr.vmem [resolvable:$true] %s64
      %67 = dma.hbm_to_vmem [thread:$0]  %s4, 256, %s65, [#allocation9]
    $region21: #{discriminator_forward.1} parent=1 // pred_fallthru
      _
    // Predicated region
    $region22: #{discriminator_forward.1} parent=1 // pred_check
      _
    $region23: #{discriminator_forward.1} parent=1 // pred_check_branch
      %69 = sbr.rel (0) target = $region25
    $region24: #{discriminator_forward.1} parent=1 // pred_region
      %s71 = ssub.s32 16384, 16384
      %72 = vsyncadd [#allocation9], %s71
      %s73 = sshll.u32 [#allocation10], 4
      %s74 = int_to_ptr.vmem [resolvable:$true] %s73
      %79 = dma.hbm_to_vmem [thread:$0]  %s5, 16384, %s74, [#allocation9], 256, 256, 16
    $region25: #{discriminator_forward.1} parent=1 // pred_fallthru
      _
    // Predicated region
    $region26: #{discriminator_forward.1} parent=1 // pred_check
      _
    $region27: #{discriminator_forward.1} parent=1 // pred_check_branch
      %81 = sbr.rel (0) target = $region29
    $region28: #{discriminator_forward.1} parent=1 // pred_region
      %s83 = ssub.s32 128, 128
      %84 = vsyncadd [#allocation12], %s83
      %s86 = sshll.u32 [#allocation11], 4
      %s87 = int_to_ptr.vmem [resolvable:$true] %s86
      %89 = dma.hbm_to_vmem [thread:$0]  %s6, 128, %s87, [#allocation12]
    $region29: #{discriminator_forward.1} parent=1 // pred_fallthru
      _
    // Predicated region
    $region30: #{discriminator_forward.1} parent=1 // pred_check
      _
    $region31: #{discriminator_forward.1} parent=1 // pred_check_branch
      %91 = sbr.rel (0) target = $region33
    $region32: #{discriminator_forward.1} parent=1 // pred_region
      %s93 = ssub.s32 4096, 4096
      %94 = vsyncadd [#allocation12], %s93
      %s95 = sshll.u32 [#allocation13], 4
      %s96 = int_to_ptr.vmem [resolvable:$true] %s95
      %101 = dma.hbm_to_vmem [thread:$0]  %s7, 4096, %s96, [#allocation12], 128, 128, 8
    $region33: #{discriminator_forward.1} parent=1 // pred_fallthru
      _
    // Predicated region
    $region34: #{discriminator_forward.1} parent=1 // pred_check
      _
    $region35: #{discriminator_forward.1} parent=1 // pred_check_branch
      %103 = sbr.rel (0) target = $region37
    $region36: #{discriminator_forward.1} parent=1 // pred_region
      %s105 = ssub.s32 64, 64
      %106 = vsyncadd [#allocation15], %s105
      %s108 = sshll.u32 [#allocation14], 4
      %s109 = int_to_ptr.vmem [resolvable:$true] %s108
      %111 = dma.hbm_to_vmem [thread:$0]  %s8, 64, %s109, [#allocation15]
    $region37: #{discriminator_forward.1} parent=1 // pred_fallthru
      _
    // Predicated region
    $region38: #{discriminator_forward.1} parent=1 // pred_check
      _
    $region39: #{discriminator_forward.1} parent=1 // pred_check_branch
      %113 = sbr.rel (0) target = $region41
    $region40: #{discriminator_forward.1} parent=1 // pred_region
      _
    $region41: #{discriminator_forward.1} parent=1 // pred_fallthru
      _
    // Predicated region
    $region42: #{discriminator_forward.1} parent=1 // pred_check
      _
    $region43: #{discriminator_forward.1} parent=1 // pred_check_branch
      %115 = sbr.rel (0) target = $region45
    $region44: #{discriminator_forward.1} parent=1 // pred_region
      _
    $region45: #{discriminator_forward.1} parent=1 // pred_fallthru
      _
    // Predicated region
    $region46: #{discriminator_forward.1} parent=1 // pred_check
      _
    $region47: #{discriminator_forward.1} parent=1 // pred_check_branch
      %117 = sbr.rel (0) target = $region49
    $region48: #{discriminator_forward.1} parent=1 // pred_region
      %118 = dma.done [#allocation4], 32768
    $region49: #{discriminator_forward.1} parent=1 // pred_fallthru
      _
    // Predicated region
    $region50: #{discriminator_forward.1} parent=1 // pred_check
      _
    $region51: #{discriminator_forward.1} parent=1 // pred_check_branch
      %120 = sbr.rel (0) target = $region53
    $region52: #{discriminator_forward.1} parent=1 // pred_region
      %121 = dma.done [#allocation6], 512
    $region53: #{discriminator_forward.1} parent=1 // pred_fallthru
      _
    // Predicated region
    $region54: #{discriminator_forward.1} parent=1 // pred_check
      _
    $region55: #{discriminator_forward.1} parent=1 // pred_check_branch
      %123 = sbr.rel (0) target = $region57
    $region56: #{discriminator_forward.1} parent=1 // pred_region
      %124 = dma.done [#allocation6], 65536
    $region57: #{discriminator_forward.1} parent=1 // pred_fallthru
      _
    // Predicated region
    $region58: #{discriminator_forward.1} parent=1 // pred_check
      _
    $region59: #{discriminator_forward.1} parent=1 // pred_check_branch
      %126 = sbr.rel (0) target = $region61
    $region60: #{discriminator_forward.1} parent=1 // pred_region
      %127 = dma.done [#allocation9], 256
    $region61: #{discriminator_forward.1} parent=1 // pred_fallthru
      _
    // Predicated region
    $region62: #{discriminator_forward.1} parent=1 // pred_check
      _
    $region63: #{discriminator_forward.1} parent=1 // pred_check_branch
      %129 = sbr.rel (0) target = $region65
    $region64: #{discriminator_forward.1} parent=1 // pred_region
      %130 = dma.done [#allocation9], 16384
    $region65: #{discriminator_forward.1} parent=1 // pred_fallthru
      _
    // Predicated region
    $region66: #{discriminator_forward.1} parent=1 // pred_check
      _
    $region67: #{discriminator_forward.1} parent=1 // pred_check_branch
      %132 = sbr.rel (0) target = $region69
    $region68: #{discriminator_forward.1} parent=1 // pred_region
      %133 = dma.done [#allocation12], 128
    $region69: #{discriminator_forward.1} parent=1 // pred_fallthru
      _
    // Predicated region
    $region70: #{discriminator_forward.1} parent=1 // pred_check
      _
    $region71: #{discriminator_forward.1} parent=1 // pred_check_branch
      %135 = sbr.rel (0) target = $region73
    $region72: #{discriminator_forward.1} parent=1 // pred_region
      %136 = dma.done [#allocation12], 4096
    $region73: #{discriminator_forward.1} parent=1 // pred_fallthru
      _
    // Predicated region
    $region74: #{discriminator_forward.1} parent=1 // pred_check
      _
    $region75: #{discriminator_forward.1} parent=1 // pred_check_branch
      %138 = sbr.rel (0) target = $region77
    $region76: #{discriminator_forward.1} parent=1 // pred_region
      %139 = dma.done [#allocation15], 64
    $region77: #{discriminator_forward.1} parent=1 // pred_fallthru
      _
    %v140 = vld [vmem:[%s0] sm:$0xf]
    %v141 = vld [vmem:[#allocation3] sm:$0xff]
    %v142 = vld [vmem:[#allocation3 + $0x8] sm:$0xff]
    %v143 = vld [vmem:[#allocation3 + $0x10] sm:$0xff]
    %v144 = vld [vmem:[#allocation3 + $0x18] sm:$0xff]
    %v145 = vld [vmem:[#allocation3 + $0x20] sm:$0xff]
    %v146 = vld [vmem:[#allocation3 + $0x28] sm:$0xff]
    %v147 = vld [vmem:[#allocation3 + $0x30] sm:$0xff]
    %v148 = vld [vmem:[#allocation3 + $0x38] sm:$0xff]
    %v149 = vld [vmem:[#allocation3 + $0x40] sm:$0xff]
    %v150 = vld [vmem:[#allocation3 + $0x48] sm:$0xff]
    %v151 = vld [vmem:[#allocation3 + $0x50] sm:$0xff]
    %v152 = vld [vmem:[#allocation3 + $0x58] sm:$0xff]
    %v153 = vld [vmem:[#allocation3 + $0x60] sm:$0xff]
    %v154 = vld [vmem:[#allocation3 + $0x68] sm:$0xff]
    %v155 = vld [vmem:[#allocation3 + $0x70] sm:$0xff]
    %v156 = vld [vmem:[#allocation3 + $0x78] sm:$0xff]
    %v157 = vld [vmem:[#allocation3 + $0x80] sm:$0xff]
    %v158 = vld [vmem:[#allocation3 + $0x88] sm:$0xff]
    %v159 = vld [vmem:[#allocation3 + $0x90] sm:$0xff]
    %v160 = vld [vmem:[#allocation3 + $0x98] sm:$0xff]
    %v161 = vld [vmem:[#allocation3 + $0xa0] sm:$0xff]
    %v162 = vld [vmem:[#allocation3 + $0xa8] sm:$0xff]
    %v163 = vld [vmem:[#allocation3 + $0xb0] sm:$0xff]
    %v164 = vld [vmem:[#allocation3 + $0xb8] sm:$0xff]
    %v165 = vld [vmem:[#allocation3 + $0xc0] sm:$0xff]
    %v166 = vld [vmem:[#allocation3 + $0xc8] sm:$0xff]
    %v167 = vld [vmem:[#allocation3 + $0xd0] sm:$0xff]
    %v168 = vld [vmem:[#allocation3 + $0xd8] sm:$0xff]
    %v169 = vld [vmem:[#allocation3 + $0xe0] sm:$0xff]
    %v170 = vld [vmem:[#allocation3 + $0xe8] sm:$0xff]
    %v171 = vld [vmem:[#allocation3 + $0xf0] sm:$0xff]
    %v172 = vld [vmem:[#allocation3 + $0xf8] sm:$0xff]
    %v173 = vld [vmem:[#allocation3 + $0x100] sm:$0xff]
    %v174 = vld [vmem:[#allocation3 + $0x108] sm:$0xff]
    %v175 = vld [vmem:[#allocation3 + $0x110] sm:$0xff]
    %v176 = vld [vmem:[#allocation3 + $0x118] sm:$0xff]
    %v177 = vld [vmem:[#allocation3 + $0x120] sm:$0xff]
    %v178 = vld [vmem:[#allocation3 + $0x128] sm:$0xff]
    %v179 = vld [vmem:[#allocation3 + $0x130] sm:$0xff]
    %v180 = vld [vmem:[#allocation3 + $0x138] sm:$0xff]
    %v181 = vld [vmem:[#allocation3 + $0x140] sm:$0xff]
    %v182 = vld [vmem:[#allocation3 + $0x148] sm:$0xff]
    %v183 = vld [vmem:[#allocation3 + $0x150] sm:$0xff]
    %v184 = vld [vmem:[#allocation3 + $0x158] sm:$0xff]
    %v185 = vld [vmem:[#allocation3 + $0x160] sm:$0xff]
    %v186 = vld [vmem:[#allocation3 + $0x168] sm:$0xff]
    %v187 = vld [vmem:[#allocation3 + $0x170] sm:$0xff]
    %v188 = vld [vmem:[#allocation3 + $0x178] sm:$0xff]
    %v189 = vld [vmem:[#allocation3 + $0x180] sm:$0xff]
    %v190 = vld [vmem:[#allocation3 + $0x188] sm:$0xff]
    %v191 = vld [vmem:[#allocation3 + $0x190] sm:$0xff]
    %v192 = vld [vmem:[#allocation3 + $0x198] sm:$0xff]
    %v193 = vld [vmem:[#allocation3 + $0x1a0] sm:$0xff]
    %v194 = vld [vmem:[#allocation3 + $0x1a8] sm:$0xff]
    %v195 = vld [vmem:[#allocation3 + $0x1b0] sm:$0xff]
    %v196 = vld [vmem:[#allocation3 + $0x1b8] sm:$0xff]
    %v197 = vld [vmem:[#allocation3 + $0x1c0] sm:$0xff]
    %v198 = vld [vmem:[#allocation3 + $0x1c8] sm:$0xff]
    %v199 = vld [vmem:[#allocation3 + $0x1d0] sm:$0xff]
    %v200 = vld [vmem:[#allocation3 + $0x1d8] sm:$0xff]
    %v201 = vld [vmem:[#allocation3 + $0x1e0] sm:$0xff]
    %v202 = vld [vmem:[#allocation3 + $0x1e8] sm:$0xff]
    %v203 = vld [vmem:[#allocation3 + $0x1f0] sm:$0xff]
    %v204 = vld [vmem:[#allocation3 + $0x1f8] sm:$0xff]
    %v205 = vld [vmem:[#allocation3 + $0x200] sm:$0xff]
    %v206 = vld [vmem:[#allocation3 + $0x208] sm:$0xff]
    %v207 = vld [vmem:[#allocation3 + $0x210] sm:$0xff]
    %v208 = vld [vmem:[#allocation3 + $0x218] sm:$0xff]
    %v209 = vld [vmem:[#allocation3 + $0x220] sm:$0xff]
    %v210 = vld [vmem:[#allocation3 + $0x228] sm:$0xff]
    %v211 = vld [vmem:[#allocation3 + $0x230] sm:$0xff]
    %v212 = vld [vmem:[#allocation3 + $0x238] sm:$0xff]
    %v213 = vld [vmem:[#allocation3 + $0x240] sm:$0xff]
    %v214 = vld [vmem:[#allocation3 + $0x248] sm:$0xff]
    %v215 = vld [vmem:[#allocation3 + $0x250] sm:$0xff]
    %v216 = vld [vmem:[#allocation3 + $0x258] sm:$0xff]
    %v217 = vld [vmem:[#allocation3 + $0x260] sm:$0xff]
    %v218 = vld [vmem:[#allocation3 + $0x268] sm:$0xff]
    %v219 = vld [vmem:[#allocation3 + $0x270] sm:$0xff]
    %v220 = vld [vmem:[#allocation3 + $0x278] sm:$0xff]
    %v221 = vld [vmem:[#allocation3 + $0x280] sm:$0xff]
    %v222 = vld [vmem:[#allocation3 + $0x288] sm:$0xff]
    %v223 = vld [vmem:[#allocation3 + $0x290] sm:$0xff]
    %v224 = vld [vmem:[#allocation3 + $0x298] sm:$0xff]
    %v225 = vld [vmem:[#allocation3 + $0x2a0] sm:$0xff]
    %v226 = vld [vmem:[#allocation3 + $0x2a8] sm:$0xff]
    %v227 = vld [vmem:[#allocation3 + $0x2b0] sm:$0xff]
    %v228 = vld [vmem:[#allocation3 + $0x2b8] sm:$0xff]
    %v229 = vld [vmem:[#allocation3 + $0x2c0] sm:$0xff]
    %v230 = vld [vmem:[#allocation3 + $0x2c8] sm:$0xff]
    %v231 = vld [vmem:[#allocation3 + $0x2d0] sm:$0xff]
    %v232 = vld [vmem:[#allocation3 + $0x2d8] sm:$0xff]
    %v233 = vld [vmem:[#allocation3 + $0x2e0] sm:$0xff]
    %v234 = vld [vmem:[#allocation3 + $0x2e8] sm:$0xff]
    %v235 = vld [vmem:[#allocation3 + $0x2f0] sm:$0xff]
    %v236 = vld [vmem:[#allocation3 + $0x2f8] sm:$0xff]
    %v237 = vld [vmem:[#allocation3 + $0x300] sm:$0xff]
    %v238 = vld [vmem:[#allocation3 + $0x308] sm:$0xff]
    %v239 = vld [vmem:[#allocation3 + $0x310] sm:$0xff]
    %v240 = vld [vmem:[#allocation3 + $0x318] sm:$0xff]
    %v241 = vld [vmem:[#allocation3 + $0x320] sm:$0xff]
    %v242 = vld [vmem:[#allocation3 + $0x328] sm:$0xff]
    %v243 = vld [vmem:[#allocation3 + $0x330] sm:$0xff]
    %v244 = vld [vmem:[#allocation3 + $0x338] sm:$0xff]
    %v245 = vld [vmem:[#allocation3 + $0x340] sm:$0xff]
    %v246 = vld [vmem:[#allocation3 + $0x348] sm:$0xff]
    %v247 = vld [vmem:[#allocation3 + $0x350] sm:$0xff]
    %v248 = vld [vmem:[#allocation3 + $0x358] sm:$0xff]
    %v249 = vld [vmem:[#allocation3 + $0x360] sm:$0xff]
    %v250 = vld [vmem:[#allocation3 + $0x368] sm:$0xff]
    %v251 = vld [vmem:[#allocation3 + $0x370] sm:$0xff]
    %v252 = vld [vmem:[#allocation3 + $0x378] sm:$0xff]
    %v253 = vld [vmem:[#allocation3 + $0x380] sm:$0xff]
    %v254 = vld [vmem:[#allocation3 + $0x388] sm:$0xff]
    %v255 = vld [vmem:[#allocation3 + $0x390] sm:$0xff]
    %v256 = vld [vmem:[#allocation3 + $0x398] sm:$0xff]
    %v257 = vld [vmem:[#allocation3 + $0x3a0] sm:$0xff]
    %v258 = vld [vmem:[#allocation3 + $0x3a8] sm:$0xff]
    %v259 = vld [vmem:[#allocation3 + $0x3b0] sm:$0xff]
    %v260 = vld [vmem:[#allocation3 + $0x3b8] sm:$0xff]
    %v261 = vld [vmem:[#allocation3 + $0x3c0] sm:$0xff]
    %v262 = vld [vmem:[#allocation3 + $0x3c8] sm:$0xff]
    %v263 = vld [vmem:[#allocation3 + $0x3d0] sm:$0xff]
    %v264 = vld [vmem:[#allocation3 + $0x3d8] sm:$0xff]
    %v265 = vld [vmem:[#allocation3 + $0x3e0] sm:$0xff]
    %v266 = vld [vmem:[#allocation3 + $0x3e8] sm:$0xff]
    %v267 = vld [vmem:[#allocation3 + $0x3f0] sm:$0xff]
    %v268 = vld [vmem:[#allocation3 + $0x3f8] sm:$0xff]
    %v269 = vld [vmem:[#allocation3 + $0x400] sm:$0xff]
    %v270 = vld [vmem:[#allocation3 + $0x408] sm:$0xff]
    %v271 = vld [vmem:[#allocation3 + $0x410] sm:$0xff]
    %v272 = vld [vmem:[#allocation3 + $0x418] sm:$0xff]
    %v273 = vld [vmem:[#allocation3 + $0x420] sm:$0xff]
    %v274 = vld [vmem:[#allocation3 + $0x428] sm:$0xff]
    %v275 = vld [vmem:[#allocation3 + $0x430] sm:$0xff]
    %v276 = vld [vmem:[#allocation3 + $0x438] sm:$0xff]
    %v277 = vld [vmem:[#allocation3 + $0x440] sm:$0xff]
    %v278 = vld [vmem:[#allocation3 + $0x448] sm:$0xff]
    %v279 = vld [vmem:[#allocation3 + $0x450] sm:$0xff]
    %v280 = vld [vmem:[#allocation3 + $0x458] sm:$0xff]
    %v281 = vld [vmem:[#allocation3 + $0x460] sm:$0xff]
    %v282 = vld [vmem:[#allocation3 + $0x468] sm:$0xff]
    %v283 = vld [vmem:[#allocation3 + $0x470] sm:$0xff]
    %v284 = vld [vmem:[#allocation3 + $0x478] sm:$0xff]
    %v285 = vld [vmem:[#allocation3 + $0x480] sm:$0xff]
    %v286 = vld [vmem:[#allocation3 + $0x488] sm:$0xff]
    %v287 = vld [vmem:[#allocation3 + $0x490] sm:$0xff]
    %v288 = vld [vmem:[#allocation3 + $0x498] sm:$0xff]
    %v289 = vld [vmem:[#allocation3 + $0x4a0] sm:$0xff]
    %v290 = vld [vmem:[#allocation3 + $0x4a8] sm:$0xff]
    %v291 = vld [vmem:[#allocation3 + $0x4b0] sm:$0xff]
    %v292 = vld [vmem:[#allocation3 + $0x4b8] sm:$0xff]
    %v293 = vld [vmem:[#allocation3 + $0x4c0] sm:$0xff]
    %v294 = vld [vmem:[#allocation3 + $0x4c8] sm:$0xff]
    %v295 = vld [vmem:[#allocation3 + $0x4d0] sm:$0xff]
    %v296 = vld [vmem:[#allocation3 + $0x4d8] sm:$0xff]
    %v297 = vld [vmem:[#allocation3 + $0x4e0] sm:$0xff]
    %v298 = vld [vmem:[#allocation3 + $0x4e8] sm:$0xff]
    %v299 = vld [vmem:[#allocation3 + $0x4f0] sm:$0xff]
    %v300 = vld [vmem:[#allocation3 + $0x4f8] sm:$0xff]
    %v301 = vld [vmem:[#allocation3 + $0x500] sm:$0xff]
    %v302 = vld [vmem:[#allocation3 + $0x508] sm:$0xff]
    %v303 = vld [vmem:[#allocation3 + $0x510] sm:$0xff]
    %v304 = vld [vmem:[#allocation3 + $0x518] sm:$0xff]
    %v305 = vld [vmem:[#allocation3 + $0x520] sm:$0xff]
    %v306 = vld [vmem:[#allocation3 + $0x528] sm:$0xff]
    %v307 = vld [vmem:[#allocation3 + $0x530] sm:$0xff]
    %v308 = vld [vmem:[#allocation3 + $0x538] sm:$0xff]
    %v309 = vld [vmem:[#allocation3 + $0x540] sm:$0xff]
    %v310 = vld [vmem:[#allocation3 + $0x548] sm:$0xff]
    %v311 = vld [vmem:[#allocation3 + $0x550] sm:$0xff]
    %v312 = vld [vmem:[#allocation3 + $0x558] sm:$0xff]
    %v313 = vld [vmem:[#allocation3 + $0x560] sm:$0xff]
    %v314 = vld [vmem:[#allocation3 + $0x568] sm:$0xff]
    %v315 = vld [vmem:[#allocation3 + $0x570] sm:$0xff]
    %v316 = vld [vmem:[#allocation3 + $0x578] sm:$0xff]
    %v317 = vld [vmem:[#allocation3 + $0x580] sm:$0xff]
    %v318 = vld [vmem:[#allocation3 + $0x588] sm:$0xff]
    %v319 = vld [vmem:[#allocation3 + $0x590] sm:$0xff]
    %v320 = vld [vmem:[#allocation3 + $0x598] sm:$0xff]
    %v321 = vld [vmem:[#allocation3 + $0x5a0] sm:$0xff]
    %v322 = vld [vmem:[#allocation3 + $0x5a8] sm:$0xff]
    %v323 = vld [vmem:[#allocation3 + $0x5b0] sm:$0xff]
    %v324 = vld [vmem:[#allocation3 + $0x5b8] sm:$0xff]
    %v325 = vld [vmem:[#allocation3 + $0x5c0] sm:$0xff]
    %v326 = vld [vmem:[#allocation3 + $0x5c8] sm:$0xff]
    %v327 = vld [vmem:[#allocation3 + $0x5d0] sm:$0xff]
    %v328 = vld [vmem:[#allocation3 + $0x5d8] sm:$0xff]
    %v329 = vld [vmem:[#allocation3 + $0x5e0] sm:$0xff]
    %v330 = vld [vmem:[#allocation3 + $0x5e8] sm:$0xff]
    %v331 = vld [vmem:[#allocation3 + $0x5f0] sm:$0xff]
    %v332 = vld [vmem:[#allocation3 + $0x5f8] sm:$0xff]
    %v333 = vld [vmem:[#allocation3 + $0x600] sm:$0xff]
    %v334 = vld [vmem:[#allocation3 + $0x608] sm:$0xff]
    %v335 = vld [vmem:[#allocation3 + $0x610] sm:$0xff]
    %v336 = vld [vmem:[#allocation3 + $0x618] sm:$0xff]
    %v337 = vld [vmem:[#allocation3 + $0x620] sm:$0xff]
    %v338 = vld [vmem:[#allocation3 + $0x628] sm:$0xff]
    %v339 = vld [vmem:[#allocation3 + $0x630] sm:$0xff]
    %v340 = vld [vmem:[#allocation3 + $0x638] sm:$0xff]
    %v341 = vld [vmem:[#allocation3 + $0x640] sm:$0xff]
    %v342 = vld [vmem:[#allocation3 + $0x648] sm:$0xff]
    %v343 = vld [vmem:[#allocation3 + $0x650] sm:$0xff]
    %v344 = vld [vmem:[#allocation3 + $0x658] sm:$0xff]
    %v345 = vld [vmem:[#allocation3 + $0x660] sm:$0xff]
    %v346 = vld [vmem:[#allocation3 + $0x668] sm:$0xff]
    %v347 = vld [vmem:[#allocation3 + $0x670] sm:$0xff]
    %v348 = vld [vmem:[#allocation3 + $0x678] sm:$0xff]
    %v349 = vld [vmem:[#allocation3 + $0x680] sm:$0xff]
    %v350 = vld [vmem:[#allocation3 + $0x688] sm:$0xff]
    %v351 = vld [vmem:[#allocation3 + $0x690] sm:$0xff]
    %v352 = vld [vmem:[#allocation3 + $0x698] sm:$0xff]
    %v353 = vld [vmem:[#allocation3 + $0x6a0] sm:$0xff]
    %v354 = vld [vmem:[#allocation3 + $0x6a8] sm:$0xff]
    %v355 = vld [vmem:[#allocation3 + $0x6b0] sm:$0xff]
    %v356 = vld [vmem:[#allocation3 + $0x6b8] sm:$0xff]
    %v357 = vld [vmem:[#allocation3 + $0x6c0] sm:$0xff]
    %v358 = vld [vmem:[#allocation3 + $0x6c8] sm:$0xff]
    %v359 = vld [vmem:[#allocation3 + $0x6d0] sm:$0xff]
    %v360 = vld [vmem:[#allocation3 + $0x6d8] sm:$0xff]
    %v361 = vld [vmem:[#allocation3 + $0x6e0] sm:$0xff]
    %v362 = vld [vmem:[#allocation3 + $0x6e8] sm:$0xff]
    %v363 = vld [vmem:[#allocation3 + $0x6f0] sm:$0xff]
    %v364 = vld [vmem:[#allocation3 + $0x6f8] sm:$0xff]
    %v365 = vld [vmem:[#allocation3 + $0x700] sm:$0xff]
    %v366 = vld [vmem:[#allocation3 + $0x708] sm:$0xff]
    %v367 = vld [vmem:[#allocation3 + $0x710] sm:$0xff]
    %v368 = vld [vmem:[#allocation3 + $0x718] sm:$0xff]
    %v369 = vld [vmem:[#allocation3 + $0x720] sm:$0xff]
    %v370 = vld [vmem:[#allocation3 + $0x728] sm:$0xff]
    %v371 = vld [vmem:[#allocation3 + $0x730] sm:$0xff]
    %v372 = vld [vmem:[#allocation3 + $0x738] sm:$0xff]
    %v373 = vld [vmem:[#allocation3 + $0x740] sm:$0xff]
    %v374 = vld [vmem:[#allocation3 + $0x748] sm:$0xff]
    %v375 = vld [vmem:[#allocation3 + $0x750] sm:$0xff]
    %v376 = vld [vmem:[#allocation3 + $0x758] sm:$0xff]
    %v377 = vld [vmem:[#allocation3 + $0x760] sm:$0xff]
    %v378 = vld [vmem:[#allocation3 + $0x768] sm:$0xff]
    %v379 = vld [vmem:[#allocation3 + $0x770] sm:$0xff]
    %v380 = vld [vmem:[#allocation3 + $0x778] sm:$0xff]
    %v381 = vld [vmem:[#allocation3 + $0x780] sm:$0xff]
    %v382 = vld [vmem:[#allocation3 + $0x788] sm:$0xff]
    %v383 = vld [vmem:[#allocation3 + $0x790] sm:$0xff]
    %v384 = vld [vmem:[#allocation3 + $0x798] sm:$0xff]
    %v385 = vld [vmem:[#allocation3 + $0x7a0] sm:$0xff]
    %v386 = vld [vmem:[#allocation3 + $0x7a8] sm:$0xff]
    %v387 = vld [vmem:[#allocation3 + $0x7b0] sm:$0xff]
    %v388 = vld [vmem:[#allocation3 + $0x7b8] sm:$0xff]
    %v389 = vld [vmem:[#allocation3 + $0x7c0] sm:$0xff]
    %v390 = vld [vmem:[#allocation3 + $0x7c8] sm:$0xff]
    %v391 = vld [vmem:[#allocation3 + $0x7d0] sm:$0xff]
    %v392 = vld [vmem:[#allocation3 + $0x7d8] sm:$0xff]
    %v393 = vld [vmem:[#allocation3 + $0x7e0] sm:$0xff]
    %v394 = vld [vmem:[#allocation3 + $0x7e8] sm:$0xff]
    %v395 = vld [vmem:[#allocation3 + $0x7f0] sm:$0xff]
    %v396 = vld [vmem:[#allocation3 + $0x7f8] sm:$0xff]
    %v397 = vld [vmem:[#allocation5] ss:$4 sm:$0xff]
    %v399 = vlaneseq
    %v400 = vshrl.u32 %v399, 7
    %v401 = vsub.s32 0, %v400
    %v402 = vrot.slane %v397, %v401
    %v403 = vlaneseq
    %v404 = vshrl.u32 %v403, 7
    %v405 = vsub.s32 1, %v404
    %v406 = vrot.slane %v397, %v405
    %v407 = vlaneseq
    %v408 = vshrl.u32 %v407, 7
    %v409 = vsub.s32 2, %v408
    %v410 = vrot.slane %v397, %v409
    %v411 = vlaneseq
    %v412 = vshrl.u32 %v411, 7
    %v413 = vsub.s32 3, %v412
    %v414 = vrot.slane %v397, %v413
    %v415 = vlaneseq
    %v416 = vshrl.u32 %v415, 7
    %v417 = vsub.s32 4, %v416
    %v418 = vrot.slane %v397, %v417
    %v419 = vlaneseq
    %v420 = vshrl.u32 %v419, 7
    %v421 = vsub.s32 5, %v420
    %v422 = vrot.slane %v397, %v421
    %v423 = vlaneseq
    %v424 = vshrl.u32 %v423, 7
    %v425 = vsub.s32 6, %v424
    %v426 = vrot.slane %v397, %v425
    %v427 = vlaneseq
    %v428 = vshrl.u32 %v427, 7
    %v429 = vsub.s32 7, %v428
    %v430 = vrot.slane %v397, %v429
    %v441 = vunpack.c.l.s4 1983009808
    %v442 = vunpack.c.0.s8 %v441
    %v443 = vlaneseq
    %v444 = vshrl.u32 %v443, 7
    %v445 = vsub.s32 %v442, %v444
    %v446 = vrot.slane %v140, %v445
    %v447 = vcombine.high %v446, %v446
    %450 = vmatprep.subr.mxu0 %v142
    %451 = vmatpush1.msra.mxu0 %v141
    %452 = vmatprep.subr.mxu0 %v150
    %453 = vmatpush1.msra.mxu0 %v149
    %454 = vmatprep.subr.mxu0 %v158
    %455 = vmatpush1.msra.mxu0 %v157
    %456 = vmatprep.subr.mxu0 %v166
    %457 = vmatpush1.msra.mxu0 %v165
    %458 = vmatprep.subr.mxu0 %v174
    %459 = vmatpush1.msra.mxu0 %v173
    %460 = vmatprep.subr.mxu0 %v182
    %461 = vmatpush1.msra.mxu0 %v181
    %462 = vmatprep.subr.mxu0 %v190
    %463 = vmatpush1.msra.mxu0 %v189
    %464 = vmatprep.subr.mxu0 %v198
    %465 = vmatpush1.msra.mxu0 %v197
    %466 = vmatprep.subr.mxu0 %v206
    %467 = vmatpush1.msra.mxu0 %v205
    %468 = vmatprep.subr.mxu0 %v214
    %469 = vmatpush1.msra.mxu0 %v213
    %470 = vmatprep.subr.mxu0 %v222
    %471 = vmatpush1.msra.mxu0 %v221
    %472 = vmatprep.subr.mxu0 %v230
    %473 = vmatpush1.msra.mxu0 %v229
    %474 = vmatprep.subr.mxu0 %v238
    %475 = vmatpush1.msra.mxu0 %v237
    %476 = vmatprep.subr.mxu0 %v246
    %477 = vmatpush1.msra.mxu0 %v245
    %478 = vmatprep.subr.mxu0 %v254
    %479 = vmatpush1.msra.mxu0 %v253
    %480 = vmatprep.subr.mxu0 %v262
    %481 = vmatpush1.msra.mxu0 %v261
    %482 = vmatprep.subr.mxu0 %v270
    %483 = vmatpush1.msra.mxu0 %v269
    %484 = vmatprep.subr.mxu0 %v278
    %485 = vmatpush1.msra.mxu0 %v277
    %486 = vmatprep.subr.mxu0 %v286
    %487 = vmatpush1.msra.mxu0 %v285
    %488 = vmatprep.subr.mxu0 %v294
    %489 = vmatpush1.msra.mxu0 %v293
    %490 = vmatprep.subr.mxu0 %v302
    %491 = vmatpush1.msra.mxu0 %v301
    %492 = vmatprep.subr.mxu0 %v310
    %493 = vmatpush1.msra.mxu0 %v309
    %494 = vmatprep.subr.mxu0 %v318
    %495 = vmatpush1.msra.mxu0 %v317
    %496 = vmatprep.subr.mxu0 %v326
    %497 = vmatpush1.msra.mxu0 %v325
    %498 = vmatprep.subr.mxu0 %v334
    %499 = vmatpush1.msra.mxu0 %v333
    %500 = vmatprep.subr.mxu0 %v342
    %501 = vmatpush1.msra.mxu0 %v341
    %502 = vmatprep.subr.mxu0 %v350
    %503 = vmatpush1.msra.mxu0 %v349
    %504 = vmatprep.subr.mxu0 %v358
    %505 = vmatpush1.msra.mxu0 %v357
    %506 = vmatprep.subr.mxu0 %v366
    %507 = vmatpush1.msra.mxu0 %v365
    %508 = vmatprep.subr.mxu0 %v374
    %509 = vmatpush1.msra.mxu0 %v373
    %510 = vmatprep.subr.mxu0 %v382
    %511 = vmatpush1.msra.mxu0 %v381
    %512 = vmatprep.subr.mxu0 %v390
    %513 = vmatpush1.msra.mxu0 %v389
    %514 = vmatprep.mubr.f32.mxu0 %v447
    %515 = vmatmul.mubr.f32.gmra.mrb[0].mxu0 %v446
    %v516 = vpop.f32.mrb[0].mxu0
    %v517 = vadd.f32 %v402, %v516
    %v518 = vpop.f32.mrb[0].mxu0
    %v519 = vadd.f32 %v406, %v518
    %520 = vdwg.mxu0
    %521 = vmatprep.subr.mxu0 %v144
    %522 = vmatpush1.msra.mxu0 %v143
    %523 = vmatprep.subr.mxu0 %v152
    %524 = vmatpush1.msra.mxu0 %v151
    %525 = vmatprep.subr.mxu0 %v160
    %526 = vmatpush1.msra.mxu0 %v159
    %527 = vmatprep.subr.mxu0 %v168
    %528 = vmatpush1.msra.mxu0 %v167
    %529 = vmatprep.subr.mxu0 %v176
    %530 = vmatpush1.msra.mxu0 %v175
    %531 = vmatprep.subr.mxu0 %v184
    %532 = vmatpush1.msra.mxu0 %v183
    %533 = vmatprep.subr.mxu0 %v192
    %534 = vmatpush1.msra.mxu0 %v191
    %535 = vmatprep.subr.mxu0 %v200
    %536 = vmatpush1.msra.mxu0 %v199
    %537 = vmatprep.subr.mxu0 %v208
    %538 = vmatpush1.msra.mxu0 %v207
    %539 = vmatprep.subr.mxu0 %v216
    %540 = vmatpush1.msra.mxu0 %v215
    %541 = vmatprep.subr.mxu0 %v224
    %542 = vmatpush1.msra.mxu0 %v223
    %543 = vmatprep.subr.mxu0 %v232
    %544 = vmatpush1.msra.mxu0 %v231
    %545 = vmatprep.subr.mxu0 %v240
    %546 = vmatpush1.msra.mxu0 %v239
    %547 = vmatprep.subr.mxu0 %v248
    %548 = vmatpush1.msra.mxu0 %v247
    %549 = vmatprep.subr.mxu0 %v256
    %550 = vmatpush1.msra.mxu0 %v255
    %551 = vmatprep.subr.mxu0 %v264
    %552 = vmatpush1.msra.mxu0 %v263
    %553 = vmatprep.subr.mxu0 %v272
    %554 = vmatpush1.msra.mxu0 %v271
    %555 = vmatprep.subr.mxu0 %v280
    %556 = vmatpush1.msra.mxu0 %v279
    %557 = vmatprep.subr.mxu0 %v288
    %558 = vmatpush1.msra.mxu0 %v287
    %559 = vmatprep.subr.mxu0 %v296
    %560 = vmatpush1.msra.mxu0 %v295
    %561 = vmatprep.subr.mxu0 %v304
    %562 = vmatpush1.msra.mxu0 %v303
    %563 = vmatprep.subr.mxu0 %v312
    %564 = vmatpush1.msra.mxu0 %v311
    %565 = vmatprep.subr.mxu0 %v320
    %566 = vmatpush1.msra.mxu0 %v319
    %567 = vmatprep.subr.mxu0 %v328
    %568 = vmatpush1.msra.mxu0 %v327
    %569 = vmatprep.subr.mxu0 %v336
    %570 = vmatpush1.msra.mxu0 %v335
    %571 = vmatprep.subr.mxu0 %v344
    %572 = vmatpush1.msra.mxu0 %v343
    %573 = vmatprep.subr.mxu0 %v352
    %574 = vmatpush1.msra.mxu0 %v351
    %575 = vmatprep.subr.mxu0 %v360
    %576 = vmatpush1.msra.mxu0 %v359
    %577 = vmatprep.subr.mxu0 %v368
    %578 = vmatpush1.msra.mxu0 %v367
    %579 = vmatprep.subr.mxu0 %v376
    %580 = vmatpush1.msra.mxu0 %v375
    %581 = vmatprep.subr.mxu0 %v384
    %582 = vmatpush1.msra.mxu0 %v383
    %583 = vmatprep.subr.mxu0 %v392
    %584 = vmatpush1.msra.mxu0 %v391
    %585 = vmatprep.mubr.f32.mxu0 %v447
    %586 = vmatmul.mubr.f32.gmra.mrb[0].mxu0 %v446
    %v587 = vpop.f32.mrb[0].mxu0
    %v588 = vadd.f32 %v410, %v587
    %v589 = vpop.f32.mrb[0].mxu0
    %v590 = vadd.f32 %v414, %v589
    %591 = vdwg.mxu0
    %592 = vmatprep.subr.mxu0 %v146
    %593 = vmatpush1.msra.mxu0 %v145
    %594 = vmatprep.subr.mxu0 %v154
    %595 = vmatpush1.msra.mxu0 %v153
    %596 = vmatprep.subr.mxu0 %v162
    %597 = vmatpush1.msra.mxu0 %v161
    %598 = vmatprep.subr.mxu0 %v170
    %599 = vmatpush1.msra.mxu0 %v169
    %600 = vmatprep.subr.mxu0 %v178
    %601 = vmatpush1.msra.mxu0 %v177
    %602 = vmatprep.subr.mxu0 %v186
    %603 = vmatpush1.msra.mxu0 %v185
    %604 = vmatprep.subr.mxu0 %v194
    %605 = vmatpush1.msra.mxu0 %v193
    %606 = vmatprep.subr.mxu0 %v202
    %607 = vmatpush1.msra.mxu0 %v201
    %608 = vmatprep.subr.mxu0 %v210
    %609 = vmatpush1.msra.mxu0 %v209
    %610 = vmatprep.subr.mxu0 %v218
    %611 = vmatpush1.msra.mxu0 %v217
    %612 = vmatprep.subr.mxu0 %v226
    %613 = vmatpush1.msra.mxu0 %v225
    %614 = vmatprep.subr.mxu0 %v234
    %615 = vmatpush1.msra.mxu0 %v233
    %616 = vmatprep.subr.mxu0 %v242
    %617 = vmatpush1.msra.mxu0 %v241
    %618 = vmatprep.subr.mxu0 %v250
    %619 = vmatpush1.msra.mxu0 %v249
    %620 = vmatprep.subr.mxu0 %v258
    %621 = vmatpush1.msra.mxu0 %v257
    %622 = vmatprep.subr.mxu0 %v266
    %623 = vmatpush1.msra.mxu0 %v265
    %624 = vmatprep.subr.mxu0 %v274
    %625 = vmatpush1.msra.mxu0 %v273
    %626 = vmatprep.subr.mxu0 %v282
    %627 = vmatpush1.msra.mxu0 %v281
    %628 = vmatprep.subr.mxu0 %v290
    %629 = vmatpush1.msra.mxu0 %v289
    %630 = vmatprep.subr.mxu0 %v298
    %631 = vmatpush1.msra.mxu0 %v297
    %632 = vmatprep.subr.mxu0 %v306
    %633 = vmatpush1.msra.mxu0 %v305
    %634 = vmatprep.subr.mxu0 %v314
    %635 = vmatpush1.msra.mxu0 %v313
    %636 = vmatprep.subr.mxu0 %v322
    %637 = vmatpush1.msra.mxu0 %v321
    %638 = vmatprep.subr.mxu0 %v330
    %639 = vmatpush1.msra.mxu0 %v329
    %640 = vmatprep.subr.mxu0 %v338
    %641 = vmatpush1.msra.mxu0 %v337
    %642 = vmatprep.subr.mxu0 %v346
    %643 = vmatpush1.msra.mxu0 %v345
    %644 = vmatprep.subr.mxu0 %v354
    %645 = vmatpush1.msra.mxu0 %v353
    %646 = vmatprep.subr.mxu0 %v362
    %647 = vmatpush1.msra.mxu0 %v361
    %648 = vmatprep.subr.mxu0 %v370
    %649 = vmatpush1.msra.mxu0 %v369
    %650 = vmatprep.subr.mxu0 %v378
    %651 = vmatpush1.msra.mxu0 %v377
    %652 = vmatprep.subr.mxu0 %v386
    %653 = vmatpush1.msra.mxu0 %v385
    %654 = vmatprep.subr.mxu0 %v394
    %655 = vmatpush1.msra.mxu0 %v393
    %656 = vmatprep.mubr.f32.mxu0 %v447
    %657 = vmatmul.mubr.f32.gmra.mrb[0].mxu0 %v446
    %v658 = vpop.f32.mrb[0].mxu0
    %v659 = vadd.f32 %v418, %v658
    %v660 = vpop.f32.mrb[0].mxu0
    %v661 = vadd.f32 %v422, %v660
    %662 = vdwg.mxu0
    %663 = vmatprep.subr.mxu0 %v148
    %664 = vmatpush1.msra.mxu0 %v147
    %665 = vmatprep.subr.mxu0 %v156
    %666 = vmatpush1.msra.mxu0 %v155
    %667 = vmatprep.subr.mxu0 %v164
    %668 = vmatpush1.msra.mxu0 %v163
    %669 = vmatprep.subr.mxu0 %v172
    %670 = vmatpush1.msra.mxu0 %v171
    %671 = vmatprep.subr.mxu0 %v180
    %672 = vmatpush1.msra.mxu0 %v179
    %673 = vmatprep.subr.mxu0 %v188
    %674 = vmatpush1.msra.mxu0 %v187
    %675 = vmatprep.subr.mxu0 %v196
    %676 = vmatpush1.msra.mxu0 %v195
    %677 = vmatprep.subr.mxu0 %v204
    %678 = vmatpush1.msra.mxu0 %v203
    %679 = vmatprep.subr.mxu0 %v212
    %680 = vmatpush1.msra.mxu0 %v211
    %681 = vmatprep.subr.mxu0 %v220
    %682 = vmatpush1.msra.mxu0 %v219
    %683 = vmatprep.subr.mxu0 %v228
    %684 = vmatpush1.msra.mxu0 %v227
    %685 = vmatprep.subr.mxu0 %v236
    %686 = vmatpush1.msra.mxu0 %v235
    %687 = vmatprep.subr.mxu0 %v244
    %688 = vmatpush1.msra.mxu0 %v243
    %689 = vmatprep.subr.mxu0 %v252
    %690 = vmatpush1.msra.mxu0 %v251
    %691 = vmatprep.subr.mxu0 %v260
    %692 = vmatpush1.msra.mxu0 %v259
    %693 = vmatprep.subr.mxu0 %v268
    %694 = vmatpush1.msra.mxu0 %v267
    %695 = vmatprep.subr.mxu0 %v276
    %696 = vmatpush1.msra.mxu0 %v275
    %697 = vmatprep.subr.mxu0 %v284
    %698 = vmatpush1.msra.mxu0 %v283
    %699 = vmatprep.subr.mxu0 %v292
    %700 = vmatpush1.msra.mxu0 %v291
    %701 = vmatprep.subr.mxu0 %v300
    %702 = vmatpush1.msra.mxu0 %v299
    %703 = vmatprep.subr.mxu0 %v308
    %704 = vmatpush1.msra.mxu0 %v307
    %705 = vmatprep.subr.mxu0 %v316
    %706 = vmatpush1.msra.mxu0 %v315
    %707 = vmatprep.subr.mxu0 %v324
    %708 = vmatpush1.msra.mxu0 %v323
    %709 = vmatprep.subr.mxu0 %v332
    %710 = vmatpush1.msra.mxu0 %v331
    %711 = vmatprep.subr.mxu0 %v340
    %712 = vmatpush1.msra.mxu0 %v339
    %713 = vmatprep.subr.mxu0 %v348
    %714 = vmatpush1.msra.mxu0 %v347
    %715 = vmatprep.subr.mxu0 %v356
    %716 = vmatpush1.msra.mxu0 %v355
    %717 = vmatprep.subr.mxu0 %v364
    %718 = vmatpush1.msra.mxu0 %v363
    %719 = vmatprep.subr.mxu0 %v372
    %720 = vmatpush1.msra.mxu0 %v371
    %721 = vmatprep.subr.mxu0 %v380
    %722 = vmatpush1.msra.mxu0 %v379
    %723 = vmatprep.subr.mxu0 %v388
    %724 = vmatpush1.msra.mxu0 %v387
    %725 = vmatprep.subr.mxu0 %v396
    %726 = vmatpush1.msra.mxu0 %v395
    %727 = vmatprep.mubr.f32.mxu0 %v447
    %728 = vmatmul.mubr.f32.gmra.mrb[0].mxu0 %v446
    %v729 = vpop.f32.mrb[0].mxu0
    %v730 = vadd.f32 %v426, %v729
    %v731 = vpop.f32.mrb[0].mxu0
    %v732 = vadd.f32 %v430, %v731
    %733 = vdwg.mxu0
    %vm734 = vcmp.gt.f32.partialorder %v517, 0.0
    %vm735 = vcmp.gt.f32.partialorder %v519, 0.0
    %vm736 = vcmp.gt.f32.partialorder %v588, 0.0
    %vm737 = vcmp.gt.f32.partialorder %v590, 0.0
    %vm738 = vcmp.gt.f32.partialorder %v659, 0.0
    %vm739 = vcmp.gt.f32.partialorder %v661, 0.0
    %vm740 = vcmp.gt.f32.partialorder %v730, 0.0
    %vm741 = vcmp.gt.f32.partialorder %v732, 0.0
    %v742 = vmul.f32 %v517, 0.2
    %v743 = vmul.f32 %v519, 0.2
    %v744 = vmul.f32 %v588, 0.2
    %v745 = vmul.f32 %v590, 0.2
    %v746 = vmul.f32 %v659, 0.2
    %v747 = vmul.f32 %v661, 0.2
    %v748 = vmul.f32 %v730, 0.2
    %v749 = vmul.f32 %v732, 0.2
    %v750 = vsel %vm734, %v517, %v742
    %v751 = vsel %vm735, %v519, %v743
    %v752 = vsel %vm736, %v588, %v744
    %v753 = vsel %vm737, %v590, %v745
    %v754 = vsel %vm738, %v659, %v746
    %v755 = vsel %vm739, %v661, %v747
    %v756 = vsel %vm740, %v730, %v748
    %v757 = vsel %vm741, %v732, %v749
    %s758 = scalar_lea.vmem [#allocation5], 1
    %v759 = vld [vmem:[%s758] ss:$4 sm:$0xff]
    %v761 = vlaneseq
    %v762 = vshrl.u32 %v761, 7
    %v763 = vsub.s32 0, %v762
    %v764 = vrot.slane %v759, %v763
    %v765 = vlaneseq
    %v766 = vshrl.u32 %v765, 7
    %v767 = vsub.s32 1, %v766
    %v768 = vrot.slane %v759, %v767
    %v769 = vlaneseq
    %v770 = vshrl.u32 %v769, 7
    %v771 = vsub.s32 2, %v770
    %v772 = vrot.slane %v759, %v771
    %v773 = vlaneseq
    %v774 = vshrl.u32 %v773, 7
    %v775 = vsub.s32 3, %v774
    %v776 = vrot.slane %v759, %v775
    %v777 = vlaneseq
    %v778 = vshrl.u32 %v777, 7
    %v779 = vsub.s32 4, %v778
    %v780 = vrot.slane %v759, %v779
    %v781 = vlaneseq
    %v782 = vshrl.u32 %v781, 7
    %v783 = vsub.s32 5, %v782
    %v784 = vrot.slane %v759, %v783
    %v785 = vlaneseq
    %v786 = vshrl.u32 %v785, 7
    %v787 = vsub.s32 6, %v786
    %v788 = vrot.slane %v759, %v787
    %v789 = vlaneseq
    %v790 = vshrl.u32 %v789, 7
    %v791 = vsub.s32 7, %v790
    %v792 = vrot.slane %v759, %v791
    %v801 = vmul.f32 %v750, %v764
    %v802 = vmul.f32 %v751, %v768
    %v803 = vmul.f32 %v752, %v772
    %v804 = vmul.f32 %v753, %v776
    %v805 = vmul.f32 %v754, %v780
    %v806 = vmul.f32 %v755, %v784
    %v807 = vmul.f32 %v756, %v788
    %v808 = vmul.f32 %v757, %v792
    %s809 = scalar_lea.vmem [#allocation5], 2
    %v810 = vld [vmem:[%s809] ss:$4 sm:$0xff]
    %v812 = vlaneseq
    %v813 = vshrl.u32 %v812, 7
    %v814 = vsub.s32 0, %v813
    %v815 = vrot.slane %v810, %v814
    %v816 = vlaneseq
    %v817 = vshrl.u32 %v816, 7
    %v818 = vsub.s32 1, %v817
    %v819 = vrot.slane %v810, %v818
    %v820 = vlaneseq
    %v821 = vshrl.u32 %v820, 7
    %v822 = vsub.s32 2, %v821
    %v823 = vrot.slane %v810, %v822
    %v824 = vlaneseq
    %v825 = vshrl.u32 %v824, 7
    %v826 = vsub.s32 3, %v825
    %v827 = vrot.slane %v810, %v826
    %v828 = vlaneseq
    %v829 = vshrl.u32 %v828, 7
    %v830 = vsub.s32 4, %v829
    %v831 = vrot.slane %v810, %v830
    %v832 = vlaneseq
    %v833 = vshrl.u32 %v832, 7
    %v834 = vsub.s32 5, %v833
    %v835 = vrot.slane %v810, %v834
    %v836 = vlaneseq
    %v837 = vshrl.u32 %v836, 7
    %v838 = vsub.s32 6, %v837
    %v839 = vrot.slane %v810, %v838
    %v840 = vlaneseq
    %v841 = vshrl.u32 %v840, 7
    %v842 = vsub.s32 7, %v841
    %v843 = vrot.slane %v810, %v842
    %v852 = vadd.f32 %v801, %v815
    %v853 = vadd.f32 %v802, %v819
    %v854 = vadd.f32 %v803, %v823
    %v855 = vadd.f32 %v804, %v827
    %v856 = vadd.f32 %v805, %v831
    %v857 = vadd.f32 %v806, %v835
    %v858 = vadd.f32 %v807, %v839
    %v859 = vadd.f32 %v808, %v843
    %v860 = vld [vmem:[#allocation7] sm:$0xff]
    %v861 = vld [vmem:[#allocation7 + $0x8] sm:$0xff]
    %v862 = vld [vmem:[#allocation7 + $0x10] sm:$0xff]
    %v863 = vld [vmem:[#allocation7 + $0x18] sm:$0xff]
    %v864 = vld [vmem:[#allocation7 + $0x20] sm:$0xff]
    %v865 = vld [vmem:[#allocation7 + $0x28] sm:$0xff]
    %v866 = vld [vmem:[#allocation7 + $0x30] sm:$0xff]
    %v867 = vld [vmem:[#allocation7 + $0x38] sm:$0xff]
    %v868 = vld [vmem:[#allocation7 + $0x40] sm:$0xff]
    %v869 = vld [vmem:[#allocation7 + $0x48] sm:$0xff]
    %v870 = vld [vmem:[#allocation7 + $0x50] sm:$0xff]
    %v871 = vld [vmem:[#allocation7 + $0x58] sm:$0xff]
    %v872 = vld [vmem:[#allocation7 + $0x60] sm:$0xff]
    %v873 = vld [vmem:[#allocation7 + $0x68] sm:$0xff]
    %v874 = vld [vmem:[#allocation7 + $0x70] sm:$0xff]
    %v875 = vld [vmem:[#allocation7 + $0x78] sm:$0xff]
    %v876 = vld [vmem:[#allocation7 + $0x80] sm:$0xff]
    %v877 = vld [vmem:[#allocation7 + $0x88] sm:$0xff]
    %v878 = vld [vmem:[#allocation7 + $0x90] sm:$0xff]
    %v879 = vld [vmem:[#allocation7 + $0x98] sm:$0xff]
    %v880 = vld [vmem:[#allocation7 + $0xa0] sm:$0xff]
    %v881 = vld [vmem:[#allocation7 + $0xa8] sm:$0xff]
    %v882 = vld [vmem:[#allocation7 + $0xb0] sm:$0xff]
    %v883 = vld [vmem:[#allocation7 + $0xb8] sm:$0xff]
    %v884 = vld [vmem:[#allocation7 + $0xc0] sm:$0xff]
    %v885 = vld [vmem:[#allocation7 + $0xc8] sm:$0xff]
    %v886 = vld [vmem:[#allocation7 + $0xd0] sm:$0xff]
    %v887 = vld [vmem:[#allocation7 + $0xd8] sm:$0xff]
    %v888 = vld [vmem:[#allocation7 + $0xe0] sm:$0xff]
    %v889 = vld [vmem:[#allocation7 + $0xe8] sm:$0xff]
    %v890 = vld [vmem:[#allocation7 + $0xf0] sm:$0xff]
    %v891 = vld [vmem:[#allocation7 + $0xf8] sm:$0xff]
    %v892 = vld [vmem:[#allocation7 + $0x100] sm:$0xff]
    %v893 = vld [vmem:[#allocation7 + $0x108] sm:$0xff]
    %v894 = vld [vmem:[#allocation7 + $0x110] sm:$0xff]
    %v895 = vld [vmem:[#allocation7 + $0x118] sm:$0xff]
    %v896 = vld [vmem:[#allocation7 + $0x120] sm:$0xff]
    %v897 = vld [vmem:[#allocation7 + $0x128] sm:$0xff]
    %v898 = vld [vmem:[#allocation7 + $0x130] sm:$0xff]
    %v899 = vld [vmem:[#allocation7 + $0x138] sm:$0xff]
    %v900 = vld [vmem:[#allocation7 + $0x140] sm:$0xff]
    %v901 = vld [vmem:[#allocation7 + $0x148] sm:$0xff]
    %v902 = vld [vmem:[#allocation7 + $0x150] sm:$0xff]
    %v903 = vld [vmem:[#allocation7 + $0x158] sm:$0xff]
    %v904 = vld [vmem:[#allocation7 + $0x160] sm:$0xff]
    %v905 = vld [vmem:[#allocation7 + $0x168] sm:$0xff]
    %v906 = vld [vmem:[#allocation7 + $0x170] sm:$0xff]
    %v907 = vld [vmem:[#allocation7 + $0x178] sm:$0xff]
    %v908 = vld [vmem:[#allocation7 + $0x180] sm:$0xff]
    %v909 = vld [vmem:[#allocation7 + $0x188] sm:$0xff]
    %v910 = vld [vmem:[#allocation7 + $0x190] sm:$0xff]
    %v911 = vld [vmem:[#allocation7 + $0x198] sm:$0xff]
    %v912 = vld [vmem:[#allocation7 + $0x1a0] sm:$0xff]
    %v913 = vld [vmem:[#allocation7 + $0x1a8] sm:$0xff]
    %v914 = vld [vmem:[#allocation7 + $0x1b0] sm:$0xff]
    %v915 = vld [vmem:[#allocation7 + $0x1b8] sm:$0xff]
    %v916 = vld [vmem:[#allocation7 + $0x1c0] sm:$0xff]
    %v917 = vld [vmem:[#allocation7 + $0x1c8] sm:$0xff]
    %v918 = vld [vmem:[#allocation7 + $0x1d0] sm:$0xff]
    %v919 = vld [vmem:[#allocation7 + $0x1d8] sm:$0xff]
    %v920 = vld [vmem:[#allocation7 + $0x1e0] sm:$0xff]
    %v921 = vld [vmem:[#allocation7 + $0x1e8] sm:$0xff]
    %v922 = vld [vmem:[#allocation7 + $0x1f0] sm:$0xff]
    %v923 = vld [vmem:[#allocation7 + $0x1f8] sm:$0xff]
    %v924 = vld [vmem:[#allocation7 + $0x200] sm:$0xff]
    %v925 = vld [vmem:[#allocation7 + $0x208] sm:$0xff]
    %v926 = vld [vmem:[#allocation7 + $0x210] sm:$0xff]
    %v927 = vld [vmem:[#allocation7 + $0x218] sm:$0xff]
    %v928 = vld [vmem:[#allocation7 + $0x220] sm:$0xff]
    %v929 = vld [vmem:[#allocation7 + $0x228] sm:$0xff]
    %v930 = vld [vmem:[#allocation7 + $0x230] sm:$0xff]
    %v931 = vld [vmem:[#allocation7 + $0x238] sm:$0xff]
    %v932 = vld [vmem:[#allocation7 + $0x240] sm:$0xff]
    %v933 = vld [vmem:[#allocation7 + $0x248] sm:$0xff]
    %v934 = vld [vmem:[#allocation7 + $0x250] sm:$0xff]
    %v935 = vld [vmem:[#allocation7 + $0x258] sm:$0xff]
    %v936 = vld [vmem:[#allocation7 + $0x260] sm:$0xff]
    %v937 = vld [vmem:[#allocation7 + $0x268] sm:$0xff]
    %v938 = vld [vmem:[#allocation7 + $0x270] sm:$0xff]
    %v939 = vld [vmem:[#allocation7 + $0x278] sm:$0xff]
    %v940 = vld [vmem:[#allocation7 + $0x280] sm:$0xff]
    %v941 = vld [vmem:[#allocation7 + $0x288] sm:$0xff]
    %v942 = vld [vmem:[#allocation7 + $0x290] sm:$0xff]
    %v943 = vld [vmem:[#allocation7 + $0x298] sm:$0xff]
    %v944 = vld [vmem:[#allocation7 + $0x2a0] sm:$0xff]
    %v945 = vld [vmem:[#allocation7 + $0x2a8] sm:$0xff]
    %v946 = vld [vmem:[#allocation7 + $0x2b0] sm:$0xff]
    %v947 = vld [vmem:[#allocation7 + $0x2b8] sm:$0xff]
    %v948 = vld [vmem:[#allocation7 + $0x2c0] sm:$0xff]
    %v949 = vld [vmem:[#allocation7 + $0x2c8] sm:$0xff]
    %v950 = vld [vmem:[#allocation7 + $0x2d0] sm:$0xff]
    %v951 = vld [vmem:[#allocation7 + $0x2d8] sm:$0xff]
    %v952 = vld [vmem:[#allocation7 + $0x2e0] sm:$0xff]
    %v953 = vld [vmem:[#allocation7 + $0x2e8] sm:$0xff]
    %v954 = vld [vmem:[#allocation7 + $0x2f0] sm:$0xff]
    %v955 = vld [vmem:[#allocation7 + $0x2f8] sm:$0xff]
    %v956 = vld [vmem:[#allocation7 + $0x300] sm:$0xff]
    %v957 = vld [vmem:[#allocation7 + $0x308] sm:$0xff]
    %v958 = vld [vmem:[#allocation7 + $0x310] sm:$0xff]
    %v959 = vld [vmem:[#allocation7 + $0x318] sm:$0xff]
    %v960 = vld [vmem:[#allocation7 + $0x320] sm:$0xff]
    %v961 = vld [vmem:[#allocation7 + $0x328] sm:$0xff]
    %v962 = vld [vmem:[#allocation7 + $0x330] sm:$0xff]
    %v963 = vld [vmem:[#allocation7 + $0x338] sm:$0xff]
    %v964 = vld [vmem:[#allocation7 + $0x340] sm:$0xff]
    %v965 = vld [vmem:[#allocation7 + $0x348] sm:$0xff]
    %v966 = vld [vmem:[#allocation7 + $0x350] sm:$0xff]
    %v967 = vld [vmem:[#allocation7 + $0x358] sm:$0xff]
    %v968 = vld [vmem:[#allocation7 + $0x360] sm:$0xff]
    %v969 = vld [vmem:[#allocation7 + $0x368] sm:$0xff]
    %v970 = vld [vmem:[#allocation7 + $0x370] sm:$0xff]
    %v971 = vld [vmem:[#allocation7 + $0x378] sm:$0xff]
    %v972 = vld [vmem:[#allocation7 + $0x380] sm:$0xff]
    %v973 = vld [vmem:[#allocation7 + $0x388] sm:$0xff]
    %v974 = vld [vmem:[#allocation7 + $0x390] sm:$0xff]
    %v975 = vld [vmem:[#allocation7 + $0x398] sm:$0xff]
    %v976 = vld [vmem:[#allocation7 + $0x3a0] sm:$0xff]
    %v977 = vld [vmem:[#allocation7 + $0x3a8] sm:$0xff]
    %v978 = vld [vmem:[#allocation7 + $0x3b0] sm:$0xff]
    %v979 = vld [vmem:[#allocation7 + $0x3b8] sm:$0xff]
    %v980 = vld [vmem:[#allocation7 + $0x3c0] sm:$0xff]
    %v981 = vld [vmem:[#allocation7 + $0x3c8] sm:$0xff]
    %v982 = vld [vmem:[#allocation7 + $0x3d0] sm:$0xff]
    %v983 = vld [vmem:[#allocation7 + $0x3d8] sm:$0xff]
    %v984 = vld [vmem:[#allocation7 + $0x3e0] sm:$0xff]
    %v985 = vld [vmem:[#allocation7 + $0x3e8] sm:$0xff]
    %v986 = vld [vmem:[#allocation7 + $0x3f0] sm:$0xff]
    %v987 = vld [vmem:[#allocation7 + $0x3f8] sm:$0xff]
    %v988 = vld [vmem:[#allocation7 + $0x400] sm:$0xff]
    %v989 = vld [vmem:[#allocation7 + $0x408] sm:$0xff]
    %v990 = vld [vmem:[#allocation7 + $0x410] sm:$0xff]
    %v991 = vld [vmem:[#allocation7 + $0x418] sm:$0xff]
    %v992 = vld [vmem:[#allocation7 + $0x420] sm:$0xff]
    %v993 = vld [vmem:[#allocation7 + $0x428] sm:$0xff]
    %v994 = vld [vmem:[#allocation7 + $0x430] sm:$0xff]
    %v995 = vld [vmem:[#allocation7 + $0x438] sm:$0xff]
    %v996 = vld [vmem:[#allocation7 + $0x440] sm:$0xff]
    %v997 = vld [vmem:[#allocation7 + $0x448] sm:$0xff]
    %v998 = vld [vmem:[#allocation7 + $0x450] sm:$0xff]
    %v999 = vld [vmem:[#allocation7 + $0x458] sm:$0xff]
    %v1000 = vld [vmem:[#allocation7 + $0x460] sm:$0xff]
    %v1001 = vld [vmem:[#allocation7 + $0x468] sm:$0xff]
    %v1002 = vld [vmem:[#allocation7 + $0x470] sm:$0xff]
    %v1003 = vld [vmem:[#allocation7 + $0x478] sm:$0xff]
    %v1004 = vld [vmem:[#allocation7 + $0x480] sm:$0xff]
    %v1005 = vld [vmem:[#allocation7 + $0x488] sm:$0xff]
    %v1006 = vld [vmem:[#allocation7 + $0x490] sm:$0xff]
    %v1007 = vld [vmem:[#allocation7 + $0x498] sm:$0xff]
    %v1008 = vld [vmem:[#allocation7 + $0x4a0] sm:$0xff]
    %v1009 = vld [vmem:[#allocation7 + $0x4a8] sm:$0xff]
    %v1010 = vld [vmem:[#allocation7 + $0x4b0] sm:$0xff]
    %v1011 = vld [vmem:[#allocation7 + $0x4b8] sm:$0xff]
    %v1012 = vld [vmem:[#allocation7 + $0x4c0] sm:$0xff]
    %v1013 = vld [vmem:[#allocation7 + $0x4c8] sm:$0xff]
    %v1014 = vld [vmem:[#allocation7 + $0x4d0] sm:$0xff]
    %v1015 = vld [vmem:[#allocation7 + $0x4d8] sm:$0xff]
    %v1016 = vld [vmem:[#allocation7 + $0x4e0] sm:$0xff]
    %v1017 = vld [vmem:[#allocation7 + $0x4e8] sm:$0xff]
    %v1018 = vld [vmem:[#allocation7 + $0x4f0] sm:$0xff]
    %v1019 = vld [vmem:[#allocation7 + $0x4f8] sm:$0xff]
    %v1020 = vld [vmem:[#allocation7 + $0x500] sm:$0xff]
    %v1021 = vld [vmem:[#allocation7 + $0x508] sm:$0xff]
    %v1022 = vld [vmem:[#allocation7 + $0x510] sm:$0xff]
    %v1023 = vld [vmem:[#allocation7 + $0x518] sm:$0xff]
    %v1024 = vld [vmem:[#allocation7 + $0x520] sm:$0xff]
    %v1025 = vld [vmem:[#allocation7 + $0x528] sm:$0xff]
    %v1026 = vld [vmem:[#allocation7 + $0x530] sm:$0xff]
    %v1027 = vld [vmem:[#allocation7 + $0x538] sm:$0xff]
    %v1028 = vld [vmem:[#allocation7 + $0x540] sm:$0xff]
    %v1029 = vld [vmem:[#allocation7 + $0x548] sm:$0xff]
    %v1030 = vld [vmem:[#allocation7 + $0x550] sm:$0xff]
    %v1031 = vld [vmem:[#allocation7 + $0x558] sm:$0xff]
    %v1032 = vld [vmem:[#allocation7 + $0x560] sm:$0xff]
    %v1033 = vld [vmem:[#allocation7 + $0x568] sm:$0xff]
    %v1034 = vld [vmem:[#allocation7 + $0x570] sm:$0xff]
    %v1035 = vld [vmem:[#allocation7 + $0x578] sm:$0xff]
    %v1036 = vld [vmem:[#allocation7 + $0x580] sm:$0xff]
    %v1037 = vld [vmem:[#allocation7 + $0x588] sm:$0xff]
    %v1038 = vld [vmem:[#allocation7 + $0x590] sm:$0xff]
    %v1039 = vld [vmem:[#allocation7 + $0x598] sm:$0xff]
    %v1040 = vld [vmem:[#allocation7 + $0x5a0] sm:$0xff]
    %v1041 = vld [vmem:[#allocation7 + $0x5a8] sm:$0xff]
    %v1042 = vld [vmem:[#allocation7 + $0x5b0] sm:$0xff]
    %v1043 = vld [vmem:[#allocation7 + $0x5b8] sm:$0xff]
    %v1044 = vld [vmem:[#allocation7 + $0x5c0] sm:$0xff]
    %v1045 = vld [vmem:[#allocation7 + $0x5c8] sm:$0xff]
    %v1046 = vld [vmem:[#allocation7 + $0x5d0] sm:$0xff]
    %v1047 = vld [vmem:[#allocation7 + $0x5d8] sm:$0xff]
    %v1048 = vld [vmem:[#allocation7 + $0x5e0] sm:$0xff]
    %v1049 = vld [vmem:[#allocation7 + $0x5e8] sm:$0xff]
    %v1050 = vld [vmem:[#allocation7 + $0x5f0] sm:$0xff]
    %v1051 = vld [vmem:[#allocation7 + $0x5f8] sm:$0xff]
    %v1052 = vld [vmem:[#allocation7 + $0x600] sm:$0xff]
    %v1053 = vld [vmem:[#allocation7 + $0x608] sm:$0xff]
    %v1054 = vld [vmem:[#allocation7 + $0x610] sm:$0xff]
    %v1055 = vld [vmem:[#allocation7 + $0x618] sm:$0xff]
    %v1056 = vld [vmem:[#allocation7 + $0x620] sm:$0xff]
    %v1057 = vld [vmem:[#allocation7 + $0x628] sm:$0xff]
    %v1058 = vld [vmem:[#allocation7 + $0x630] sm:$0xff]
    %v1059 = vld [vmem:[#allocation7 + $0x638] sm:$0xff]
    %v1060 = vld [vmem:[#allocation7 + $0x640] sm:$0xff]
    %v1061 = vld [vmem:[#allocation7 + $0x648] sm:$0xff]
    %v1062 = vld [vmem:[#allocation7 + $0x650] sm:$0xff]
    %v1063 = vld [vmem:[#allocation7 + $0x658] sm:$0xff]
    %v1064 = vld [vmem:[#allocation7 + $0x660] sm:$0xff]
    %v1065 = vld [vmem:[#allocation7 + $0x668] sm:$0xff]
    %v1066 = vld [vmem:[#allocation7 + $0x670] sm:$0xff]
    %v1067 = vld [vmem:[#allocation7 + $0x678] sm:$0xff]
    %v1068 = vld [vmem:[#allocation7 + $0x680] sm:$0xff]
    %v1069 = vld [vmem:[#allocation7 + $0x688] sm:$0xff]
    %v1070 = vld [vmem:[#allocation7 + $0x690] sm:$0xff]
    %v1071 = vld [vmem:[#allocation7 + $0x698] sm:$0xff]
    %v1072 = vld [vmem:[#allocation7 + $0x6a0] sm:$0xff]
    %v1073 = vld [vmem:[#allocation7 + $0x6a8] sm:$0xff]
    %v1074 = vld [vmem:[#allocation7 + $0x6b0] sm:$0xff]
    %v1075 = vld [vmem:[#allocation7 + $0x6b8] sm:$0xff]
    %v1076 = vld [vmem:[#allocation7 + $0x6c0] sm:$0xff]
    %v1077 = vld [vmem:[#allocation7 + $0x6c8] sm:$0xff]
    %v1078 = vld [vmem:[#allocation7 + $0x6d0] sm:$0xff]
    %v1079 = vld [vmem:[#allocation7 + $0x6d8] sm:$0xff]
    %v1080 = vld [vmem:[#allocation7 + $0x6e0] sm:$0xff]
    %v1081 = vld [vmem:[#allocation7 + $0x6e8] sm:$0xff]
    %v1082 = vld [vmem:[#allocation7 + $0x6f0] sm:$0xff]
    %v1083 = vld [vmem:[#allocation7 + $0x6f8] sm:$0xff]
    %v1084 = vld [vmem:[#allocation7 + $0x700] sm:$0xff]
    %v1085 = vld [vmem:[#allocation7 + $0x708] sm:$0xff]
    %v1086 = vld [vmem:[#allocation7 + $0x710] sm:$0xff]
    %v1087 = vld [vmem:[#allocation7 + $0x718] sm:$0xff]
    %v1088 = vld [vmem:[#allocation7 + $0x720] sm:$0xff]
    %v1089 = vld [vmem:[#allocation7 + $0x728] sm:$0xff]
    %v1090 = vld [vmem:[#allocation7 + $0x730] sm:$0xff]
    %v1091 = vld [vmem:[#allocation7 + $0x738] sm:$0xff]
    %v1092 = vld [vmem:[#allocation7 + $0x740] sm:$0xff]
    %v1093 = vld [vmem:[#allocation7 + $0x748] sm:$0xff]
    %v1094 = vld [vmem:[#allocation7 + $0x750] sm:$0xff]
    %v1095 = vld [vmem:[#allocation7 + $0x758] sm:$0xff]
    %v1096 = vld [vmem:[#allocation7 + $0x760] sm:$0xff]
    %v1097 = vld [vmem:[#allocation7 + $0x768] sm:$0xff]
    %v1098 = vld [vmem:[#allocation7 + $0x770] sm:$0xff]
    %v1099 = vld [vmem:[#allocation7 + $0x778] sm:$0xff]
    %v1100 = vld [vmem:[#allocation7 + $0x780] sm:$0xff]
    %v1101 = vld [vmem:[#allocation7 + $0x788] sm:$0xff]
    %v1102 = vld [vmem:[#allocation7 + $0x790] sm:$0xff]
    %v1103 = vld [vmem:[#allocation7 + $0x798] sm:$0xff]
    %v1104 = vld [vmem:[#allocation7 + $0x7a0] sm:$0xff]
    %v1105 = vld [vmem:[#allocation7 + $0x7a8] sm:$0xff]
    %v1106 = vld [vmem:[#allocation7 + $0x7b0] sm:$0xff]
    %v1107 = vld [vmem:[#allocation7 + $0x7b8] sm:$0xff]
    %v1108 = vld [vmem:[#allocation7 + $0x7c0] sm:$0xff]
    %v1109 = vld [vmem:[#allocation7 + $0x7c8] sm:$0xff]
    %v1110 = vld [vmem:[#allocation7 + $0x7d0] sm:$0xff]
    %v1111 = vld [vmem:[#allocation7 + $0x7d8] sm:$0xff]
    %v1112 = vld [vmem:[#allocation7 + $0x7e0] sm:$0xff]
    %v1113 = vld [vmem:[#allocation7 + $0x7e8] sm:$0xff]
    %v1114 = vld [vmem:[#allocation7 + $0x7f0] sm:$0xff]
    %v1115 = vld [vmem:[#allocation7 + $0x7f8] sm:$0xff]
    %v1116 = vld [vmem:[#allocation7 + $0x800] sm:$0xff]
    %v1117 = vld [vmem:[#allocation7 + $0x808] sm:$0xff]
    %v1118 = vld [vmem:[#allocation7 + $0x810] sm:$0xff]
    %v1119 = vld [vmem:[#allocation7 + $0x818] sm:$0xff]
    %v1120 = vld [vmem:[#allocation7 + $0x820] sm:$0xff]
    %v1121 = vld [vmem:[#allocation7 + $0x828] sm:$0xff]
    %v1122 = vld [vmem:[#allocation7 + $0x830] sm:$0xff]
    %v1123 = vld [vmem:[#allocation7 + $0x838] sm:$0xff]
    %v1124 = vld [vmem:[#allocation7 + $0x840] sm:$0xff]
    %v1125 = vld [vmem:[#allocation7 + $0x848] sm:$0xff]
    %v1126 = vld [vmem:[#allocation7 + $0x850] sm:$0xff]
    %v1127 = vld [vmem:[#allocation7 + $0x858] sm:$0xff]
    %v1128 = vld [vmem:[#allocation7 + $0x860] sm:$0xff]
    %v1129 = vld [vmem:[#allocation7 + $0x868] sm:$0xff]
    %v1130 = vld [vmem:[#allocation7 + $0x870] sm:$0xff]
    %v1131 = vld [vmem:[#allocation7 + $0x878] sm:$0xff]
    %v1132 = vld [vmem:[#allocation7 + $0x880] sm:$0xff]
    %v1133 = vld [vmem:[#allocation7 + $0x888] sm:$0xff]
    %v1134 = vld [vmem:[#allocation7 + $0x890] sm:$0xff]
    %v1135 = vld [vmem:[#allocation7 + $0x898] sm:$0xff]
    %v1136 = vld [vmem:[#allocation7 + $0x8a0] sm:$0xff]
    %v1137 = vld [vmem:[#allocation7 + $0x8a8] sm:$0xff]
    %v1138 = vld [vmem:[#allocation7 + $0x8b0] sm:$0xff]
    %v1139 = vld [vmem:[#allocation7 + $0x8b8] sm:$0xff]
    %v1140 = vld [vmem:[#allocation7 + $0x8c0] sm:$0xff]
    %v1141 = vld [vmem:[#allocation7 + $0x8c8] sm:$0xff]
    %v1142 = vld [vmem:[#allocation7 + $0x8d0] sm:$0xff]
    %v1143 = vld [vmem:[#allocation7 + $0x8d8] sm:$0xff]
    %v1144 = vld [vmem:[#allocation7 + $0x8e0] sm:$0xff]
    %v1145 = vld [vmem:[#allocation7 + $0x8e8] sm:$0xff]
    %v1146 = vld [vmem:[#allocation7 + $0x8f0] sm:$0xff]
    %v1147 = vld [vmem:[#allocation7 + $0x8f8] sm:$0xff]
    %v1148 = vld [vmem:[#allocation7 + $0x900] sm:$0xff]
    %v1149 = vld [vmem:[#allocation7 + $0x908] sm:$0xff]
    %v1150 = vld [vmem:[#allocation7 + $0x910] sm:$0xff]
    %v1151 = vld [vmem:[#allocation7 + $0x918] sm:$0xff]
    %v1152 = vld [vmem:[#allocation7 + $0x920] sm:$0xff]
    %v1153 = vld [vmem:[#allocation7 + $0x928] sm:$0xff]
    %v1154 = vld [vmem:[#allocation7 + $0x930] sm:$0xff]
    %v1155 = vld [vmem:[#allocation7 + $0x938] sm:$0xff]
    %v1156 = vld [vmem:[#allocation7 + $0x940] sm:$0xff]
    %v1157 = vld [vmem:[#allocation7 + $0x948] sm:$0xff]
    %v1158 = vld [vmem:[#allocation7 + $0x950] sm:$0xff]
    %v1159 = vld [vmem:[#allocation7 + $0x958] sm:$0xff]
    %v1160 = vld [vmem:[#allocation7 + $0x960] sm:$0xff]
    %v1161 = vld [vmem:[#allocation7 + $0x968] sm:$0xff]
    %v1162 = vld [vmem:[#allocation7 + $0x970] sm:$0xff]
    %v1163 = vld [vmem:[#allocation7 + $0x978] sm:$0xff]
    %v1164 = vld [vmem:[#allocation7 + $0x980] sm:$0xff]
    %v1165 = vld [vmem:[#allocation7 + $0x988] sm:$0xff]
    %v1166 = vld [vmem:[#allocation7 + $0x990] sm:$0xff]
    %v1167 = vld [vmem:[#allocation7 + $0x998] sm:$0xff]
    %v1168 = vld [vmem:[#allocation7 + $0x9a0] sm:$0xff]
    %v1169 = vld [vmem:[#allocation7 + $0x9a8] sm:$0xff]
    %v1170 = vld [vmem:[#allocation7 + $0x9b0] sm:$0xff]
    %v1171 = vld [vmem:[#allocation7 + $0x9b8] sm:$0xff]
    %v1172 = vld [vmem:[#allocation7 + $0x9c0] sm:$0xff]
    %v1173 = vld [vmem:[#allocation7 + $0x9c8] sm:$0xff]
    %v1174 = vld [vmem:[#allocation7 + $0x9d0] sm:$0xff]
    %v1175 = vld [vmem:[#allocation7 + $0x9d8] sm:$0xff]
    %v1176 = vld [vmem:[#allocation7 + $0x9e0] sm:$0xff]
    %v1177 = vld [vmem:[#allocation7 + $0x9e8] sm:$0xff]
    %v1178 = vld [vmem:[#allocation7 + $0x9f0] sm:$0xff]
    %v1179 = vld [vmem:[#allocation7 + $0x9f8] sm:$0xff]
    %v1180 = vld [vmem:[#allocation7 + $0xa00] sm:$0xff]
    %v1181 = vld [vmem:[#allocation7 + $0xa08] sm:$0xff]
    %v1182 = vld [vmem:[#allocation7 + $0xa10] sm:$0xff]
    %v1183 = vld [vmem:[#allocation7 + $0xa18] sm:$0xff]
    %v1184 = vld [vmem:[#allocation7 + $0xa20] sm:$0xff]
    %v1185 = vld [vmem:[#allocation7 + $0xa28] sm:$0xff]
    %v1186 = vld [vmem:[#allocation7 + $0xa30] sm:$0xff]
    %v1187 = vld [vmem:[#allocation7 + $0xa38] sm:$0xff]
    %v1188 = vld [vmem:[#allocation7 + $0xa40] sm:$0xff]
    %v1189 = vld [vmem:[#allocation7 + $0xa48] sm:$0xff]
    %v1190 = vld [vmem:[#allocation7 + $0xa50] sm:$0xff]
    %v1191 = vld [vmem:[#allocation7 + $0xa58] sm:$0xff]
    %v1192 = vld [vmem:[#allocation7 + $0xa60] sm:$0xff]
    %v1193 = vld [vmem:[#allocation7 + $0xa68] sm:$0xff]
    %v1194 = vld [vmem:[#allocation7 + $0xa70] sm:$0xff]
    %v1195 = vld [vmem:[#allocation7 + $0xa78] sm:$0xff]
    %v1196 = vld [vmem:[#allocation7 + $0xa80] sm:$0xff]
    %v1197 = vld [vmem:[#allocation7 + $0xa88] sm:$0xff]
    %v1198 = vld [vmem:[#allocation7 + $0xa90] sm:$0xff]
    %v1199 = vld [vmem:[#allocation7 + $0xa98] sm:$0xff]
    %v1200 = vld [vmem:[#allocation7 + $0xaa0] sm:$0xff]
    %v1201 = vld [vmem:[#allocation7 + $0xaa8] sm:$0xff]
    %v1202 = vld [vmem:[#allocation7 + $0xab0] sm:$0xff]
    %v1203 = vld [vmem:[#allocation7 + $0xab8] sm:$0xff]
    %v1204 = vld [vmem:[#allocation7 + $0xac0] sm:$0xff]
    %v1205 = vld [vmem:[#allocation7 + $0xac8] sm:$0xff]
    %v1206 = vld [vmem:[#allocation7 + $0xad0] sm:$0xff]
    %v1207 = vld [vmem:[#allocation7 + $0xad8] sm:$0xff]
    %v1208 = vld [vmem:[#allocation7 + $0xae0] sm:$0xff]
    %v1209 = vld [vmem:[#allocation7 + $0xae8] sm:$0xff]
    %v1210 = vld [vmem:[#allocation7 + $0xaf0] sm:$0xff]
    %v1211 = vld [vmem:[#allocation7 + $0xaf8] sm:$0xff]
    %v1212 = vld [vmem:[#allocation7 + $0xb00] sm:$0xff]
    %v1213 = vld [vmem:[#allocation7 + $0xb08] sm:$0xff]
    %v1214 = vld [vmem:[#allocation7 + $0xb10] sm:$0xff]
    %v1215 = vld [vmem:[#allocation7 + $0xb18] sm:$0xff]
    %v1216 = vld [vmem:[#allocation7 + $0xb20] sm:$0xff]
    %v1217 = vld [vmem:[#allocation7 + $0xb28] sm:$0xff]
    %v1218 = vld [vmem:[#allocation7 + $0xb30] sm:$0xff]
    %v1219 = vld [vmem:[#allocation7 + $0xb38] sm:$0xff]
    %v1220 = vld [vmem:[#allocation7 + $0xb40] sm:$0xff]
    %v1221 = vld [vmem:[#allocation7 + $0xb48] sm:$0xff]
    %v1222 = vld [vmem:[#allocation7 + $0xb50] sm:$0xff]
    %v1223 = vld [vmem:[#allocation7 + $0xb58] sm:$0xff]
    %v1224 = vld [vmem:[#allocation7 + $0xb60] sm:$0xff]
    %v1225 = vld [vmem:[#allocation7 + $0xb68] sm:$0xff]
    %v1226 = vld [vmem:[#allocation7 + $0xb70] sm:$0xff]
    %v1227 = vld [vmem:[#allocation7 + $0xb78] sm:$0xff]
    %v1228 = vld [vmem:[#allocation7 + $0xb80] sm:$0xff]
    %v1229 = vld [vmem:[#allocation7 + $0xb88] sm:$0xff]
    %v1230 = vld [vmem:[#allocation7 + $0xb90] sm:$0xff]
    %v1231 = vld [vmem:[#allocation7 + $0xb98] sm:$0xff]
    %v1232 = vld [vmem:[#allocation7 + $0xba0] sm:$0xff]
    %v1233 = vld [vmem:[#allocation7 + $0xba8] sm:$0xff]
    %v1234 = vld [vmem:[#allocation7 + $0xbb0] sm:$0xff]
    %v1235 = vld [vmem:[#allocation7 + $0xbb8] sm:$0xff]
    %v1236 = vld [vmem:[#allocation7 + $0xbc0] sm:$0xff]
    %v1237 = vld [vmem:[#allocation7 + $0xbc8] sm:$0xff]
    %v1238 = vld [vmem:[#allocation7 + $0xbd0] sm:$0xff]
    %v1239 = vld [vmem:[#allocation7 + $0xbd8] sm:$0xff]
    %v1240 = vld [vmem:[#allocation7 + $0xbe0] sm:$0xff]
    %v1241 = vld [vmem:[#allocation7 + $0xbe8] sm:$0xff]
    %v1242 = vld [vmem:[#allocation7 + $0xbf0] sm:$0xff]
    %v1243 = vld [vmem:[#allocation7 + $0xbf8] sm:$0xff]
    %v1244 = vld [vmem:[#allocation7 + $0xc00] sm:$0xff]
    %v1245 = vld [vmem:[#allocation7 + $0xc08] sm:$0xff]
    %v1246 = vld [vmem:[#allocation7 + $0xc10] sm:$0xff]
    %v1247 = vld [vmem:[#allocation7 + $0xc18] sm:$0xff]
    %v1248 = vld [vmem:[#allocation7 + $0xc20] sm:$0xff]
    %v1249 = vld [vmem:[#allocation7 + $0xc28] sm:$0xff]
    %v1250 = vld [vmem:[#allocation7 + $0xc30] sm:$0xff]
    %v1251 = vld [vmem:[#allocation7 + $0xc38] sm:$0xff]
    %v1252 = vld [vmem:[#allocation7 + $0xc40] sm:$0xff]
    %v1253 = vld [vmem:[#allocation7 + $0xc48] sm:$0xff]
    %v1254 = vld [vmem:[#allocation7 + $0xc50] sm:$0xff]
    %v1255 = vld [vmem:[#allocation7 + $0xc58] sm:$0xff]
    %v1256 = vld [vmem:[#allocation7 + $0xc60] sm:$0xff]
    %v1257 = vld [vmem:[#allocation7 + $0xc68] sm:$0xff]
    %v1258 = vld [vmem:[#allocation7 + $0xc70] sm:$0xff]
    %v1259 = vld [vmem:[#allocation7 + $0xc78] sm:$0xff]
    %v1260 = vld [vmem:[#allocation7 + $0xc80] sm:$0xff]
    %v1261 = vld [vmem:[#allocation7 + $0xc88] sm:$0xff]
    %v1262 = vld [vmem:[#allocation7 + $0xc90] sm:$0xff]
    %v1263 = vld [vmem:[#allocation7 + $0xc98] sm:$0xff]
    %v1264 = vld [vmem:[#allocation7 + $0xca0] sm:$0xff]
    %v1265 = vld [vmem:[#allocation7 + $0xca8] sm:$0xff]
    %v1266 = vld [vmem:[#allocation7 + $0xcb0] sm:$0xff]
    %v1267 = vld [vmem:[#allocation7 + $0xcb8] sm:$0xff]
    %v1268 = vld [vmem:[#allocation7 + $0xcc0] sm:$0xff]
    %v1269 = vld [vmem:[#allocation7 + $0xcc8] sm:$0xff]
    %v1270 = vld [vmem:[#allocation7 + $0xcd0] sm:$0xff]
    %v1271 = vld [vmem:[#allocation7 + $0xcd8] sm:$0xff]
    %v1272 = vld [vmem:[#allocation7 + $0xce0] sm:$0xff]
    %v1273 = vld [vmem:[#allocation7 + $0xce8] sm:$0xff]
    %v1274 = vld [vmem:[#allocation7 + $0xcf0] sm:$0xff]
    %v1275 = vld [vmem:[#allocation7 + $0xcf8] sm:$0xff]
    %v1276 = vld [vmem:[#allocation7 + $0xd00] sm:$0xff]
    %v1277 = vld [vmem:[#allocation7 + $0xd08] sm:$0xff]
    %v1278 = vld [vmem:[#allocation7 + $0xd10] sm:$0xff]
    %v1279 = vld [vmem:[#allocation7 + $0xd18] sm:$0xff]
    %v1280 = vld [vmem:[#allocation7 + $0xd20] sm:$0xff]
    %v1281 = vld [vmem:[#allocation7 + $0xd28] sm:$0xff]
    %v1282 = vld [vmem:[#allocation7 + $0xd30] sm:$0xff]
    %v1283 = vld [vmem:[#allocation7 + $0xd38] sm:$0xff]
    %v1284 = vld [vmem:[#allocation7 + $0xd40] sm:$0xff]
    %v1285 = vld [vmem:[#allocation7 + $0xd48] sm:$0xff]
    %v1286 = vld [vmem:[#allocation7 + $0xd50] sm:$0xff]
    %v1287 = vld [vmem:[#allocation7 + $0xd58] sm:$0xff]
    %v1288 = vld [vmem:[#allocation7 + $0xd60] sm:$0xff]
    %v1289 = vld [vmem:[#allocation7 + $0xd68] sm:$0xff]
    %v1290 = vld [vmem:[#allocation7 + $0xd70] sm:$0xff]
    %v1291 = vld [vmem:[#allocation7 + $0xd78] sm:$0xff]
    %v1292 = vld [vmem:[#allocation7 + $0xd80] sm:$0xff]
    %v1293 = vld [vmem:[#allocation7 + $0xd88] sm:$0xff]
    %v1294 = vld [vmem:[#allocation7 + $0xd90] sm:$0xff]
    %v1295 = vld [vmem:[#allocation7 + $0xd98] sm:$0xff]
    %v1296 = vld [vmem:[#allocation7 + $0xda0] sm:$0xff]
    %v1297 = vld [vmem:[#allocation7 + $0xda8] sm:$0xff]
    %v1298 = vld [vmem:[#allocation7 + $0xdb0] sm:$0xff]
    %v1299 = vld [vmem:[#allocation7 + $0xdb8] sm:$0xff]
    %v1300 = vld [vmem:[#allocation7 + $0xdc0] sm:$0xff]
    %v1301 = vld [vmem:[#allocation7 + $0xdc8] sm:$0xff]
    %v1302 = vld [vmem:[#allocation7 + $0xdd0] sm:$0xff]
    %v1303 = vld [vmem:[#allocation7 + $0xdd8] sm:$0xff]
    %v1304 = vld [vmem:[#allocation7 + $0xde0] sm:$0xff]
    %v1305 = vld [vmem:[#allocation7 + $0xde8] sm:$0xff]
    %v1306 = vld [vmem:[#allocation7 + $0xdf0] sm:$0xff]
    %v1307 = vld [vmem:[#allocation7 + $0xdf8] sm:$0xff]
    %v1308 = vld [vmem:[#allocation7 + $0xe00] sm:$0xff]
    %v1309 = vld [vmem:[#allocation7 + $0xe08] sm:$0xff]
    %v1310 = vld [vmem:[#allocation7 + $0xe10] sm:$0xff]
    %v1311 = vld [vmem:[#allocation7 + $0xe18] sm:$0xff]
    %v1312 = vld [vmem:[#allocation7 + $0xe20] sm:$0xff]
    %v1313 = vld [vmem:[#allocation7 + $0xe28] sm:$0xff]
    %v1314 = vld [vmem:[#allocation7 + $0xe30] sm:$0xff]
    %v1315 = vld [vmem:[#allocation7 + $0xe38] sm:$0xff]
    %v1316 = vld [vmem:[#allocation7 + $0xe40] sm:$0xff]
    %v1317 = vld [vmem:[#allocation7 + $0xe48] sm:$0xff]
    %v1318 = vld [vmem:[#allocation7 + $0xe50] sm:$0xff]
    %v1319 = vld [vmem:[#allocation7 + $0xe58] sm:$0xff]
    %v1320 = vld [vmem:[#allocation7 + $0xe60] sm:$0xff]
    %v1321 = vld [vmem:[#allocation7 + $0xe68] sm:$0xff]
    %v1322 = vld [vmem:[#allocation7 + $0xe70] sm:$0xff]
    %v1323 = vld [vmem:[#allocation7 + $0xe78] sm:$0xff]
    %v1324 = vld [vmem:[#allocation7 + $0xe80] sm:$0xff]
    %v1325 = vld [vmem:[#allocation7 + $0xe88] sm:$0xff]
    %v1326 = vld [vmem:[#allocation7 + $0xe90] sm:$0xff]
    %v1327 = vld [vmem:[#allocation7 + $0xe98] sm:$0xff]
    %v1328 = vld [vmem:[#allocation7 + $0xea0] sm:$0xff]
    %v1329 = vld [vmem:[#allocation7 + $0xea8] sm:$0xff]
    %v1330 = vld [vmem:[#allocation7 + $0xeb0] sm:$0xff]
    %v1331 = vld [vmem:[#allocation7 + $0xeb8] sm:$0xff]
    %v1332 = vld [vmem:[#allocation7 + $0xec0] sm:$0xff]
    %v1333 = vld [vmem:[#allocation7 + $0xec8] sm:$0xff]
    %v1334 = vld [vmem:[#allocation7 + $0xed0] sm:$0xff]
    %v1335 = vld [vmem:[#allocation7 + $0xed8] sm:$0xff]
    %v1336 = vld [vmem:[#allocation7 + $0xee0] sm:$0xff]
    %v1337 = vld [vmem:[#allocation7 + $0xee8] sm:$0xff]
    %v1338 = vld [vmem:[#allocation7 + $0xef0] sm:$0xff]
    %v1339 = vld [vmem:[#allocation7 + $0xef8] sm:$0xff]
    %v1340 = vld [vmem:[#allocation7 + $0xf00] sm:$0xff]
    %v1341 = vld [vmem:[#allocation7 + $0xf08] sm:$0xff]
    %v1342 = vld [vmem:[#allocation7 + $0xf10] sm:$0xff]
    %v1343 = vld [vmem:[#allocation7 + $0xf18] sm:$0xff]
    %v1344 = vld [vmem:[#allocation7 + $0xf20] sm:$0xff]
    %v1345 = vld [vmem:[#allocation7 + $0xf28] sm:$0xff]
    %v1346 = vld [vmem:[#allocation7 + $0xf30] sm:$0xff]
    %v1347 = vld [vmem:[#allocation7 + $0xf38] sm:$0xff]
    %v1348 = vld [vmem:[#allocation7 + $0xf40] sm:$0xff]
    %v1349 = vld [vmem:[#allocation7 + $0xf48] sm:$0xff]
    %v1350 = vld [vmem:[#allocation7 + $0xf50] sm:$0xff]
    %v1351 = vld [vmem:[#allocation7 + $0xf58] sm:$0xff]
    %v1352 = vld [vmem:[#allocation7 + $0xf60] sm:$0xff]
    %v1353 = vld [vmem:[#allocation7 + $0xf68] sm:$0xff]
    %v1354 = vld [vmem:[#allocation7 + $0xf70] sm:$0xff]
    %v1355 = vld [vmem:[#allocation7 + $0xf78] sm:$0xff]
    %v1356 = vld [vmem:[#allocation7 + $0xf80] sm:$0xff]
    %v1357 = vld [vmem:[#allocation7 + $0xf88] sm:$0xff]
    %v1358 = vld [vmem:[#allocation7 + $0xf90] sm:$0xff]
    %v1359 = vld [vmem:[#allocation7 + $0xf98] sm:$0xff]
    %v1360 = vld [vmem:[#allocation7 + $0xfa0] sm:$0xff]
    %v1361 = vld [vmem:[#allocation7 + $0xfa8] sm:$0xff]
    %v1362 = vld [vmem:[#allocation7 + $0xfb0] sm:$0xff]
    %v1363 = vld [vmem:[#allocation7 + $0xfb8] sm:$0xff]
    %v1364 = vld [vmem:[#allocation7 + $0xfc0] sm:$0xff]
    %v1365 = vld [vmem:[#allocation7 + $0xfc8] sm:$0xff]
    %v1366 = vld [vmem:[#allocation7 + $0xfd0] sm:$0xff]
    %v1367 = vld [vmem:[#allocation7 + $0xfd8] sm:$0xff]
    %v1368 = vld [vmem:[#allocation7 + $0xfe0] sm:$0xff]
    %v1369 = vld [vmem:[#allocation7 + $0xfe8] sm:$0xff]
    %v1370 = vld [vmem:[#allocation7 + $0xff0] sm:$0xff]
    %v1371 = vld [vmem:[#allocation7 + $0xff8] sm:$0xff]
    %v1372 = vld [vmem:[#allocation8] ss:$4 sm:$0xf]
    %v1374 = vlaneseq
    %v1375 = vshrl.u32 %v1374, 7
    %v1376 = vsub.s32 0, %v1375
    %v1377 = vrot.slane %v1372, %v1376
    %v1378 = vlaneseq
    %v1379 = vshrl.u32 %v1378, 7
    %v1380 = vsub.s32 1, %v1379
    %v1381 = vrot.slane %v1372, %v1380
    %v1382 = vlaneseq
    %v1383 = vshrl.u32 %v1382, 7
    %v1384 = vsub.s32 2, %v1383
    %v1385 = vrot.slane %v1372, %v1384
    %v1386 = vlaneseq
    %v1387 = vshrl.u32 %v1386, 7
    %v1388 = vsub.s32 3, %v1387
    %v1389 = vrot.slane %v1372, %v1388
    %1394 = vmatprep.subr.mxu0 %v861
    %1395 = vmatpush1.msra.mxu0 %v860
    %1396 = vmatprep.subr.mxu0 %v865
    %1397 = vmatpush1.msra.mxu0 %v864
    %1398 = vmatprep.subr.mxu0 %v869
    %1399 = vmatpush1.msra.mxu0 %v868
    %1400 = vmatprep.subr.mxu0 %v873
    %1401 = vmatpush1.msra.mxu0 %v872
    %1402 = vmatprep.subr.mxu0 %v877
    %1403 = vmatpush1.msra.mxu0 %v876
    %1404 = vmatprep.subr.mxu0 %v881
    %1405 = vmatpush1.msra.mxu0 %v880
    %1406 = vmatprep.subr.mxu0 %v885
    %1407 = vmatpush1.msra.mxu0 %v884
    %1408 = vmatprep.subr.mxu0 %v889
    %1409 = vmatpush1.msra.mxu0 %v888
    %1410 = vmatprep.subr.mxu0 %v893
    %1411 = vmatpush1.msra.mxu0 %v892
    %1412 = vmatprep.subr.mxu0 %v897
    %1413 = vmatpush1.msra.mxu0 %v896
    %1414 = vmatprep.subr.mxu0 %v901
    %1415 = vmatpush1.msra.mxu0 %v900
    %1416 = vmatprep.subr.mxu0 %v905
    %1417 = vmatpush1.msra.mxu0 %v904
    %1418 = vmatprep.subr.mxu0 %v909
    %1419 = vmatpush1.msra.mxu0 %v908
    %1420 = vmatprep.subr.mxu0 %v913
    %1421 = vmatpush1.msra.mxu0 %v912
    %1422 = vmatprep.subr.mxu0 %v917
    %1423 = vmatpush1.msra.mxu0 %v916
    %1424 = vmatprep.subr.mxu0 %v921
    %1425 = vmatpush1.msra.mxu0 %v920
    %1426 = vmatprep.subr.mxu0 %v925
    %1427 = vmatpush1.msra.mxu0 %v924
    %1428 = vmatprep.subr.mxu0 %v929
    %1429 = vmatpush1.msra.mxu0 %v928
    %1430 = vmatprep.subr.mxu0 %v933
    %1431 = vmatpush1.msra.mxu0 %v932
    %1432 = vmatprep.subr.mxu0 %v937
    %1433 = vmatpush1.msra.mxu0 %v936
    %1434 = vmatprep.subr.mxu0 %v941
    %1435 = vmatpush1.msra.mxu0 %v940
    %1436 = vmatprep.subr.mxu0 %v945
    %1437 = vmatpush1.msra.mxu0 %v944
    %1438 = vmatprep.subr.mxu0 %v949
    %1439 = vmatpush1.msra.mxu0 %v948
    %1440 = vmatprep.subr.mxu0 %v953
    %1441 = vmatpush1.msra.mxu0 %v952
    %1442 = vmatprep.subr.mxu0 %v957
    %1443 = vmatpush1.msra.mxu0 %v956
    %1444 = vmatprep.subr.mxu0 %v961
    %1445 = vmatpush1.msra.mxu0 %v960
    %1446 = vmatprep.subr.mxu0 %v965
    %1447 = vmatpush1.msra.mxu0 %v964
    %1448 = vmatprep.subr.mxu0 %v969
    %1449 = vmatpush1.msra.mxu0 %v968
    %1450 = vmatprep.subr.mxu0 %v973
    %1451 = vmatpush1.msra.mxu0 %v972
    %1452 = vmatprep.subr.mxu0 %v977
    %1453 = vmatpush1.msra.mxu0 %v976
    %1454 = vmatprep.subr.mxu0 %v981
    %1455 = vmatpush1.msra.mxu0 %v980
    %1456 = vmatprep.subr.mxu0 %v985
    %1457 = vmatpush1.msra.mxu0 %v984
    %1458 = vmatprep.mubr.f32.mxu0 %v853
    %1459 = vmatmul.mubr.f32.gmra.mrb[0].mxu0 %v852
    %v1460 = vpop.f32.mrb[0].mxu0
    %v1461 = vadd.f32 %v1377, %v1460
    %v1462 = vpop.f32.mrb[0].mxu0
    %v1463 = vadd.f32 %v1381, %v1462
    %1464 = vdwg.mxu0
    %1465 = vmatprep.subr.mxu0 %v989
    %1466 = vmatpush1.msra.mxu0 %v988
    %1467 = vmatprep.subr.mxu0 %v993
    %1468 = vmatpush1.msra.mxu0 %v992
    %1469 = vmatprep.subr.mxu0 %v997
    %1470 = vmatpush1.msra.mxu0 %v996
    %1471 = vmatprep.subr.mxu0 %v1001
    %1472 = vmatpush1.msra.mxu0 %v1000
    %1473 = vmatprep.subr.mxu0 %v1005
    %1474 = vmatpush1.msra.mxu0 %v1004
    %1475 = vmatprep.subr.mxu0 %v1009
    %1476 = vmatpush1.msra.mxu0 %v1008
    %1477 = vmatprep.subr.mxu0 %v1013
    %1478 = vmatpush1.msra.mxu0 %v1012
    %1479 = vmatprep.subr.mxu0 %v1017
    %1480 = vmatpush1.msra.mxu0 %v1016
    %1481 = vmatprep.subr.mxu0 %v1021
    %1482 = vmatpush1.msra.mxu0 %v1020
    %1483 = vmatprep.subr.mxu0 %v1025
    %1484 = vmatpush1.msra.mxu0 %v1024
    %1485 = vmatprep.subr.mxu0 %v1029
    %1486 = vmatpush1.msra.mxu0 %v1028
    %1487 = vmatprep.subr.mxu0 %v1033
    %1488 = vmatpush1.msra.mxu0 %v1032
    %1489 = vmatprep.subr.mxu0 %v1037
    %1490 = vmatpush1.msra.mxu0 %v1036
    %1491 = vmatprep.subr.mxu0 %v1041
    %1492 = vmatpush1.msra.mxu0 %v1040
    %1493 = vmatprep.subr.mxu0 %v1045
    %1494 = vmatpush1.msra.mxu0 %v1044
    %1495 = vmatprep.subr.mxu0 %v1049
    %1496 = vmatpush1.msra.mxu0 %v1048
    %1497 = vmatprep.subr.mxu0 %v1053
    %1498 = vmatpush1.msra.mxu0 %v1052
    %1499 = vmatprep.subr.mxu0 %v1057
    %1500 = vmatpush1.msra.mxu0 %v1056
    %1501 = vmatprep.subr.mxu0 %v1061
    %1502 = vmatpush1.msra.mxu0 %v1060
    %1503 = vmatprep.subr.mxu0 %v1065
    %1504 = vmatpush1.msra.mxu0 %v1064
    %1505 = vmatprep.subr.mxu0 %v1069
    %1506 = vmatpush1.msra.mxu0 %v1068
    %1507 = vmatprep.subr.mxu0 %v1073
    %1508 = vmatpush1.msra.mxu0 %v1072
    %1509 = vmatprep.subr.mxu0 %v1077
    %1510 = vmatpush1.msra.mxu0 %v1076
    %1511 = vmatprep.subr.mxu0 %v1081
    %1512 = vmatpush1.msra.mxu0 %v1080
    %1513 = vmatprep.subr.mxu0 %v1085
    %1514 = vmatpush1.msra.mxu0 %v1084
    %1515 = vmatprep.subr.mxu0 %v1089
    %1516 = vmatpush1.msra.mxu0 %v1088
    %1517 = vmatprep.subr.mxu0 %v1093
    %1518 = vmatpush1.msra.mxu0 %v1092
    %1519 = vmatprep.subr.mxu0 %v1097
    %1520 = vmatpush1.msra.mxu0 %v1096
    %1521 = vmatprep.subr.mxu0 %v1101
    %1522 = vmatpush1.msra.mxu0 %v1100
    %1523 = vmatprep.subr.mxu0 %v1105
    %1524 = vmatpush1.msra.mxu0 %v1104
    %1525 = vmatprep.subr.mxu0 %v1109
    %1526 = vmatpush1.msra.mxu0 %v1108
    %1527 = vmatprep.subr.mxu0 %v1113
    %1528 = vmatpush1.msra.mxu0 %v1112
    %1529 = vmatprep.mubr.f32.mxu0 %v855
    %1530 = vmatmul.mubr.f32.gmra.mrb[0].mxu0 %v854
    %v1531 = vpop.f32.mrb[0].mxu0
    %v1532 = vadd.f32 %v1461, %v1531
    %v1533 = vpop.f32.mrb[0].mxu0
    %v1534 = vadd.f32 %v1463, %v1533
    %1535 = vdwg.mxu0
    %1536 = vmatprep.subr.mxu0 %v1117
    %1537 = vmatpush1.msra.mxu0 %v1116
    %1538 = vmatprep.subr.mxu0 %v1121
    %1539 = vmatpush1.msra.mxu0 %v1120
    %1540 = vmatprep.subr.mxu0 %v1125
    %1541 = vmatpush1.msra.mxu0 %v1124
    %1542 = vmatprep.subr.mxu0 %v1129
    %1543 = vmatpush1.msra.mxu0 %v1128
    %1544 = vmatprep.subr.mxu0 %v1133
    %1545 = vmatpush1.msra.mxu0 %v1132
    %1546 = vmatprep.subr.mxu0 %v1137
    %1547 = vmatpush1.msra.mxu0 %v1136
    %1548 = vmatprep.subr.mxu0 %v1141
    %1549 = vmatpush1.msra.mxu0 %v1140
    %1550 = vmatprep.subr.mxu0 %v1145
    %1551 = vmatpush1.msra.mxu0 %v1144
    %1552 = vmatprep.subr.mxu0 %v1149
    %1553 = vmatpush1.msra.mxu0 %v1148
    %1554 = vmatprep.subr.mxu0 %v1153
    %1555 = vmatpush1.msra.mxu0 %v1152
    %1556 = vmatprep.subr.mxu0 %v1157
    %1557 = vmatpush1.msra.mxu0 %v1156
    %1558 = vmatprep.subr.mxu0 %v1161
    %1559 = vmatpush1.msra.mxu0 %v1160
    %1560 = vmatprep.subr.mxu0 %v1165
    %1561 = vmatpush1.msra.mxu0 %v1164
    %1562 = vmatprep.subr.mxu0 %v1169
    %1563 = vmatpush1.msra.mxu0 %v1168
    %1564 = vmatprep.subr.mxu0 %v1173
    %1565 = vmatpush1.msra.mxu0 %v1172
    %1566 = vmatprep.subr.mxu0 %v1177
    %1567 = vmatpush1.msra.mxu0 %v1176
    %1568 = vmatprep.subr.mxu0 %v1181
    %1569 = vmatpush1.msra.mxu0 %v1180
    %1570 = vmatprep.subr.mxu0 %v1185
    %1571 = vmatpush1.msra.mxu0 %v1184
    %1572 = vmatprep.subr.mxu0 %v1189
    %1573 = vmatpush1.msra.mxu0 %v1188
    %1574 = vmatprep.subr.mxu0 %v1193
    %1575 = vmatpush1.msra.mxu0 %v1192
    %1576 = vmatprep.subr.mxu0 %v1197
    %1577 = vmatpush1.msra.mxu0 %v1196
    %1578 = vmatprep.subr.mxu0 %v1201
    %1579 = vmatpush1.msra.mxu0 %v1200
    %1580 = vmatprep.subr.mxu0 %v1205
    %1581 = vmatpush1.msra.mxu0 %v1204
    %1582 = vmatprep.subr.mxu0 %v1209
    %1583 = vmatpush1.msra.mxu0 %v1208
    %1584 = vmatprep.subr.mxu0 %v1213
    %1585 = vmatpush1.msra.mxu0 %v1212
    %1586 = vmatprep.subr.mxu0 %v1217
    %1587 = vmatpush1.msra.mxu0 %v1216
    %1588 = vmatprep.subr.mxu0 %v1221
    %1589 = vmatpush1.msra.mxu0 %v1220
    %1590 = vmatprep.subr.mxu0 %v1225
    %1591 = vmatpush1.msra.mxu0 %v1224
    %1592 = vmatprep.subr.mxu0 %v1229
    %1593 = vmatpush1.msra.mxu0 %v1228
    %1594 = vmatprep.subr.mxu0 %v1233
    %1595 = vmatpush1.msra.mxu0 %v1232
    %1596 = vmatprep.subr.mxu0 %v1237
    %1597 = vmatpush1.msra.mxu0 %v1236
    %1598 = vmatprep.subr.mxu0 %v1241
    %1599 = vmatpush1.msra.mxu0 %v1240
    %1600 = vmatprep.mubr.f32.mxu0 %v857
    %1601 = vmatmul.mubr.f32.gmra.mrb[0].mxu0 %v856
    %v1602 = vpop.f32.mrb[0].mxu0
    %v1603 = vadd.f32 %v1532, %v1602
    %v1604 = vpop.f32.mrb[0].mxu0
    %v1605 = vadd.f32 %v1534, %v1604
    %1606 = vdwg.mxu0
    %1607 = vmatprep.subr.mxu0 %v1245
    %1608 = vmatpush1.msra.mxu0 %v1244
    %1609 = vmatprep.subr.mxu0 %v1249
    %1610 = vmatpush1.msra.mxu0 %v1248
    %1611 = vmatprep.subr.mxu0 %v1253
    %1612 = vmatpush1.msra.mxu0 %v1252
    %1613 = vmatprep.subr.mxu0 %v1257
    %1614 = vmatpush1.msra.mxu0 %v1256
    %1615 = vmatprep.subr.mxu0 %v1261
    %1616 = vmatpush1.msra.mxu0 %v1260
    %1617 = vmatprep.subr.mxu0 %v1265
    %1618 = vmatpush1.msra.mxu0 %v1264
    %1619 = vmatprep.subr.mxu0 %v1269
    %1620 = vmatpush1.msra.mxu0 %v1268
    %1621 = vmatprep.subr.mxu0 %v1273
    %1622 = vmatpush1.msra.mxu0 %v1272
    %1623 = vmatprep.subr.mxu0 %v1277
    %1624 = vmatpush1.msra.mxu0 %v1276
    %1625 = vmatprep.subr.mxu0 %v1281
    %1626 = vmatpush1.msra.mxu0 %v1280
    %1627 = vmatprep.subr.mxu0 %v1285
    %1628 = vmatpush1.msra.mxu0 %v1284
    %1629 = vmatprep.subr.mxu0 %v1289
    %1630 = vmatpush1.msra.mxu0 %v1288
    %1631 = vmatprep.subr.mxu0 %v1293
    %1632 = vmatpush1.msra.mxu0 %v1292
    %1633 = vmatprep.subr.mxu0 %v1297
    %1634 = vmatpush1.msra.mxu0 %v1296
    %1635 = vmatprep.subr.mxu0 %v1301
    %1636 = vmatpush1.msra.mxu0 %v1300
    %1637 = vmatprep.subr.mxu0 %v1305
    %1638 = vmatpush1.msra.mxu0 %v1304
    %1639 = vmatprep.subr.mxu0 %v1309
    %1640 = vmatpush1.msra.mxu0 %v1308
    %1641 = vmatprep.subr.mxu0 %v1313
    %1642 = vmatpush1.msra.mxu0 %v1312
    %1643 = vmatprep.subr.mxu0 %v1317
    %1644 = vmatpush1.msra.mxu0 %v1316
    %1645 = vmatprep.subr.mxu0 %v1321
    %1646 = vmatpush1.msra.mxu0 %v1320
    %1647 = vmatprep.subr.mxu0 %v1325
    %1648 = vmatpush1.msra.mxu0 %v1324
    %1649 = vmatprep.subr.mxu0 %v1329
    %1650 = vmatpush1.msra.mxu0 %v1328
    %1651 = vmatprep.subr.mxu0 %v1333
    %1652 = vmatpush1.msra.mxu0 %v1332
    %1653 = vmatprep.subr.mxu0 %v1337
    %1654 = vmatpush1.msra.mxu0 %v1336
    %1655 = vmatprep.subr.mxu0 %v1341
    %1656 = vmatpush1.msra.mxu0 %v1340
    %1657 = vmatprep.subr.mxu0 %v1345
    %1658 = vmatpush1.msra.mxu0 %v1344
    %1659 = vmatprep.subr.mxu0 %v1349
    %1660 = vmatpush1.msra.mxu0 %v1348
    %1661 = vmatprep.subr.mxu0 %v1353
    %1662 = vmatpush1.msra.mxu0 %v1352
    %1663 = vmatprep.subr.mxu0 %v1357
    %1664 = vmatpush1.msra.mxu0 %v1356
    %1665 = vmatprep.subr.mxu0 %v1361
    %1666 = vmatpush1.msra.mxu0 %v1360
    %1667 = vmatprep.subr.mxu0 %v1365
    %1668 = vmatpush1.msra.mxu0 %v1364
    %1669 = vmatprep.subr.mxu0 %v1369
    %1670 = vmatpush1.msra.mxu0 %v1368
    %1671 = vmatprep.mubr.f32.mxu0 %v859
    %1672 = vmatmul.mubr.f32.gmra.mrb[0].mxu0 %v858
    %v1673 = vpop.f32.mrb[0].mxu0
    %v1674 = vadd.f32 %v1603, %v1673
    %v1675 = vpop.f32.mrb[0].mxu0
    %v1676 = vadd.f32 %v1605, %v1675
    %1677 = vdwg.mxu0
    %1678 = vmatprep.subr.mxu0 %v863
    %1679 = vmatpush1.msra.mxu0 %v862
    %1680 = vmatprep.subr.mxu0 %v867
    %1681 = vmatpush1.msra.mxu0 %v866
    %1682 = vmatprep.subr.mxu0 %v871
    %1683 = vmatpush1.msra.mxu0 %v870
    %1684 = vmatprep.subr.mxu0 %v875
    %1685 = vmatpush1.msra.mxu0 %v874
    %1686 = vmatprep.subr.mxu0 %v879
    %1687 = vmatpush1.msra.mxu0 %v878
    %1688 = vmatprep.subr.mxu0 %v883
    %1689 = vmatpush1.msra.mxu0 %v882
    %1690 = vmatprep.subr.mxu0 %v887
    %1691 = vmatpush1.msra.mxu0 %v886
    %1692 = vmatprep.subr.mxu0 %v891
    %1693 = vmatpush1.msra.mxu0 %v890
    %1694 = vmatprep.subr.mxu0 %v895
    %1695 = vmatpush1.msra.mxu0 %v894
    %1696 = vmatprep.subr.mxu0 %v899
    %1697 = vmatpush1.msra.mxu0 %v898
    %1698 = vmatprep.subr.mxu0 %v903
    %1699 = vmatpush1.msra.mxu0 %v902
    %1700 = vmatprep.subr.mxu0 %v907
    %1701 = vmatpush1.msra.mxu0 %v906
    %1702 = vmatprep.subr.mxu0 %v911
    %1703 = vmatpush1.msra.mxu0 %v910
    %1704 = vmatprep.subr.mxu0 %v915
    %1705 = vmatpush1.msra.mxu0 %v914
    %1706 = vmatprep.subr.mxu0 %v919
    %1707 = vmatpush1.msra.mxu0 %v918
    %1708 = vmatprep.subr.mxu0 %v923
    %1709 = vmatpush1.msra.mxu0 %v922
    %1710 = vmatprep.subr.mxu0 %v927
    %1711 = vmatpush1.msra.mxu0 %v926
    %1712 = vmatprep.subr.mxu0 %v931
    %1713 = vmatpush1.msra.mxu0 %v930
    %1714 = vmatprep.subr.mxu0 %v935
    %1715 = vmatpush1.msra.mxu0 %v934
    %1716 = vmatprep.subr.mxu0 %v939
    %1717 = vmatpush1.msra.mxu0 %v938
    %1718 = vmatprep.subr.mxu0 %v943
    %1719 = vmatpush1.msra.mxu0 %v942
    %1720 = vmatprep.subr.mxu0 %v947
    %1721 = vmatpush1.msra.mxu0 %v946
    %1722 = vmatprep.subr.mxu0 %v951
    %1723 = vmatpush1.msra.mxu0 %v950
    %1724 = vmatprep.subr.mxu0 %v955
    %1725 = vmatpush1.msra.mxu0 %v954
    %1726 = vmatprep.subr.mxu0 %v959
    %1727 = vmatpush1.msra.mxu0 %v958
    %1728 = vmatprep.subr.mxu0 %v963
    %1729 = vmatpush1.msra.mxu0 %v962
    %1730 = vmatprep.subr.mxu0 %v967
    %1731 = vmatpush1.msra.mxu0 %v966
    %1732 = vmatprep.subr.mxu0 %v971
    %1733 = vmatpush1.msra.mxu0 %v970
    %1734 = vmatprep.subr.mxu0 %v975
    %1735 = vmatpush1.msra.mxu0 %v974
    %1736 = vmatprep.subr.mxu0 %v979
    %1737 = vmatpush1.msra.mxu0 %v978
    %1738 = vmatprep.subr.mxu0 %v983
    %1739 = vmatpush1.msra.mxu0 %v982
    %1740 = vmatprep.subr.mxu0 %v987
    %1741 = vmatpush1.msra.mxu0 %v986
    %1742 = vmatprep.mubr.f32.mxu0 %v853
    %1743 = vmatmul.mubr.f32.gmra.mrb[0].mxu0 %v852
    %v1744 = vpop.f32.mrb[0].mxu0
    %v1745 = vadd.f32 %v1385, %v1744
    %v1746 = vpop.f32.mrb[0].mxu0
    %v1747 = vadd.f32 %v1389, %v1746
    %1748 = vdwg.mxu0
    %1749 = vmatprep.subr.mxu0 %v991
    %1750 = vmatpush1.msra.mxu0 %v990
    %1751 = vmatprep.subr.mxu0 %v995
    %1752 = vmatpush1.msra.mxu0 %v994
    %1753 = vmatprep.subr.mxu0 %v999
    %1754 = vmatpush1.msra.mxu0 %v998
    %1755 = vmatprep.subr.mxu0 %v1003
    %1756 = vmatpush1.msra.mxu0 %v1002
    %1757 = vmatprep.subr.mxu0 %v1007
    %1758 = vmatpush1.msra.mxu0 %v1006
    %1759 = vmatprep.subr.mxu0 %v1011
    %1760 = vmatpush1.msra.mxu0 %v1010
    %1761 = vmatprep.subr.mxu0 %v1015
    %1762 = vmatpush1.msra.mxu0 %v1014
    %1763 = vmatprep.subr.mxu0 %v1019
    %1764 = vmatpush1.msra.mxu0 %v1018
    %1765 = vmatprep.subr.mxu0 %v1023
    %1766 = vmatpush1.msra.mxu0 %v1022
    %1767 = vmatprep.subr.mxu0 %v1027
    %1768 = vmatpush1.msra.mxu0 %v1026
    %1769 = vmatprep.subr.mxu0 %v1031
    %1770 = vmatpush1.msra.mxu0 %v1030
    %1771 = vmatprep.subr.mxu0 %v1035
    %1772 = vmatpush1.msra.mxu0 %v1034
    %1773 = vmatprep.subr.mxu0 %v1039
    %1774 = vmatpush1.msra.mxu0 %v1038
    %1775 = vmatprep.subr.mxu0 %v1043
    %1776 = vmatpush1.msra.mxu0 %v1042
    %1777 = vmatprep.subr.mxu0 %v1047
    %1778 = vmatpush1.msra.mxu0 %v1046
    %1779 = vmatprep.subr.mxu0 %v1051
    %1780 = vmatpush1.msra.mxu0 %v1050
    %1781 = vmatprep.subr.mxu0 %v1055
    %1782 = vmatpush1.msra.mxu0 %v1054
    %1783 = vmatprep.subr.mxu0 %v1059
    %1784 = vmatpush1.msra.mxu0 %v1058
    %1785 = vmatprep.subr.mxu0 %v1063
    %1786 = vmatpush1.msra.mxu0 %v1062
    %1787 = vmatprep.subr.mxu0 %v1067
    %1788 = vmatpush1.msra.mxu0 %v1066
    %1789 = vmatprep.subr.mxu0 %v1071
    %1790 = vmatpush1.msra.mxu0 %v1070
    %1791 = vmatprep.subr.mxu0 %v1075
    %1792 = vmatpush1.msra.mxu0 %v1074
    %1793 = vmatprep.subr.mxu0 %v1079
    %1794 = vmatpush1.msra.mxu0 %v1078
    %1795 = vmatprep.subr.mxu0 %v1083
    %1796 = vmatpush1.msra.mxu0 %v1082
    %1797 = vmatprep.subr.mxu0 %v1087
    %1798 = vmatpush1.msra.mxu0 %v1086
    %1799 = vmatprep.subr.mxu0 %v1091
    %1800 = vmatpush1.msra.mxu0 %v1090
    %1801 = vmatprep.subr.mxu0 %v1095
    %1802 = vmatpush1.msra.mxu0 %v1094
    %1803 = vmatprep.subr.mxu0 %v1099
    %1804 = vmatpush1.msra.mxu0 %v1098
    %1805 = vmatprep.subr.mxu0 %v1103
    %1806 = vmatpush1.msra.mxu0 %v1102
    %1807 = vmatprep.subr.mxu0 %v1107
    %1808 = vmatpush1.msra.mxu0 %v1106
    %1809 = vmatprep.subr.mxu0 %v1111
    %1810 = vmatpush1.msra.mxu0 %v1110
    %1811 = vmatprep.subr.mxu0 %v1115
    %1812 = vmatpush1.msra.mxu0 %v1114
    %1813 = vmatprep.mubr.f32.mxu0 %v855
    %1814 = vmatmul.mubr.f32.gmra.mrb[0].mxu0 %v854
    %v1815 = vpop.f32.mrb[0].mxu0
    %v1816 = vadd.f32 %v1745, %v1815
    %v1817 = vpop.f32.mrb[0].mxu0
    %v1818 = vadd.f32 %v1747, %v1817
    %1819 = vdwg.mxu0
    %1820 = vmatprep.subr.mxu0 %v1119
    %1821 = vmatpush1.msra.mxu0 %v1118
    %1822 = vmatprep.subr.mxu0 %v1123
    %1823 = vmatpush1.msra.mxu0 %v1122
    %1824 = vmatprep.subr.mxu0 %v1127
    %1825 = vmatpush1.msra.mxu0 %v1126
    %1826 = vmatprep.subr.mxu0 %v1131
    %1827 = vmatpush1.msra.mxu0 %v1130
    %1828 = vmatprep.subr.mxu0 %v1135
    %1829 = vmatpush1.msra.mxu0 %v1134
    %1830 = vmatprep.subr.mxu0 %v1139
    %1831 = vmatpush1.msra.mxu0 %v1138
    %1832 = vmatprep.subr.mxu0 %v1143
    %1833 = vmatpush1.msra.mxu0 %v1142
    %1834 = vmatprep.subr.mxu0 %v1147
    %1835 = vmatpush1.msra.mxu0 %v1146
    %1836 = vmatprep.subr.mxu0 %v1151
    %1837 = vmatpush1.msra.mxu0 %v1150
    %1838 = vmatprep.subr.mxu0 %v1155
    %1839 = vmatpush1.msra.mxu0 %v1154
    %1840 = vmatprep.subr.mxu0 %v1159
    %1841 = vmatpush1.msra.mxu0 %v1158
    %1842 = vmatprep.subr.mxu0 %v1163
    %1843 = vmatpush1.msra.mxu0 %v1162
    %1844 = vmatprep.subr.mxu0 %v1167
    %1845 = vmatpush1.msra.mxu0 %v1166
    %1846 = vmatprep.subr.mxu0 %v1171
    %1847 = vmatpush1.msra.mxu0 %v1170
    %1848 = vmatprep.subr.mxu0 %v1175
    %1849 = vmatpush1.msra.mxu0 %v1174
    %1850 = vmatprep.subr.mxu0 %v1179
    %1851 = vmatpush1.msra.mxu0 %v1178
    %1852 = vmatprep.subr.mxu0 %v1183
    %1853 = vmatpush1.msra.mxu0 %v1182
    %1854 = vmatprep.subr.mxu0 %v1187
    %1855 = vmatpush1.msra.mxu0 %v1186
    %1856 = vmatprep.subr.mxu0 %v1191
    %1857 = vmatpush1.msra.mxu0 %v1190
    %1858 = vmatprep.subr.mxu0 %v1195
    %1859 = vmatpush1.msra.mxu0 %v1194
    %1860 = vmatprep.subr.mxu0 %v1199
    %1861 = vmatpush1.msra.mxu0 %v1198
    %1862 = vmatprep.subr.mxu0 %v1203
    %1863 = vmatpush1.msra.mxu0 %v1202
    %1864 = vmatprep.subr.mxu0 %v1207
    %1865 = vmatpush1.msra.mxu0 %v1206
    %1866 = vmatprep.subr.mxu0 %v1211
    %1867 = vmatpush1.msra.mxu0 %v1210
    %1868 = vmatprep.subr.mxu0 %v1215
    %1869 = vmatpush1.msra.mxu0 %v1214
    %1870 = vmatprep.subr.mxu0 %v1219
    %1871 = vmatpush1.msra.mxu0 %v1218
    %1872 = vmatprep.subr.mxu0 %v1223
    %1873 = vmatpush1.msra.mxu0 %v1222
    %1874 = vmatprep.subr.mxu0 %v1227
    %1875 = vmatpush1.msra.mxu0 %v1226
    %1876 = vmatprep.subr.mxu0 %v1231
    %1877 = vmatpush1.msra.mxu0 %v1230
    %1878 = vmatprep.subr.mxu0 %v1235
    %1879 = vmatpush1.msra.mxu0 %v1234
    %1880 = vmatprep.subr.mxu0 %v1239
    %1881 = vmatpush1.msra.mxu0 %v1238
    %1882 = vmatprep.subr.mxu0 %v1243
    %1883 = vmatpush1.msra.mxu0 %v1242
    %1884 = vmatprep.mubr.f32.mxu0 %v857
    %1885 = vmatmul.mubr.f32.gmra.mrb[0].mxu0 %v856
    %v1886 = vpop.f32.mrb[0].mxu0
    %v1887 = vadd.f32 %v1816, %v1886
    %v1888 = vpop.f32.mrb[0].mxu0
    %v1889 = vadd.f32 %v1818, %v1888
    %1890 = vdwg.mxu0
    %1891 = vmatprep.subr.mxu0 %v1247
    %1892 = vmatpush1.msra.mxu0 %v1246
    %1893 = vmatprep.subr.mxu0 %v1251
    %1894 = vmatpush1.msra.mxu0 %v1250
    %1895 = vmatprep.subr.mxu0 %v1255
    %1896 = vmatpush1.msra.mxu0 %v1254
    %1897 = vmatprep.subr.mxu0 %v1259
    %1898 = vmatpush1.msra.mxu0 %v1258
    %1899 = vmatprep.subr.mxu0 %v1263
    %1900 = vmatpush1.msra.mxu0 %v1262
    %1901 = vmatprep.subr.mxu0 %v1267
    %1902 = vmatpush1.msra.mxu0 %v1266
    %1903 = vmatprep.subr.mxu0 %v1271
    %1904 = vmatpush1.msra.mxu0 %v1270
    %1905 = vmatprep.subr.mxu0 %v1275
    %1906 = vmatpush1.msra.mxu0 %v1274
    %1907 = vmatprep.subr.mxu0 %v1279
    %1908 = vmatpush1.msra.mxu0 %v1278
    %1909 = vmatprep.subr.mxu0 %v1283
    %1910 = vmatpush1.msra.mxu0 %v1282
    %1911 = vmatprep.subr.mxu0 %v1287
    %1912 = vmatpush1.msra.mxu0 %v1286
    %1913 = vmatprep.subr.mxu0 %v1291
    %1914 = vmatpush1.msra.mxu0 %v1290
    %1915 = vmatprep.subr.mxu0 %v1295
    %1916 = vmatpush1.msra.mxu0 %v1294
    %1917 = vmatprep.subr.mxu0 %v1299
    %1918 = vmatpush1.msra.mxu0 %v1298
    %1919 = vmatprep.subr.mxu0 %v1303
    %1920 = vmatpush1.msra.mxu0 %v1302
    %1921 = vmatprep.subr.mxu0 %v1307
    %1922 = vmatpush1.msra.mxu0 %v1306
    %1923 = vmatprep.subr.mxu0 %v1311
    %1924 = vmatpush1.msra.mxu0 %v1310
    %1925 = vmatprep.subr.mxu0 %v1315
    %1926 = vmatpush1.msra.mxu0 %v1314
    %1927 = vmatprep.subr.mxu0 %v1319
    %1928 = vmatpush1.msra.mxu0 %v1318
    %1929 = vmatprep.subr.mxu0 %v1323
    %1930 = vmatpush1.msra.mxu0 %v1322
    %1931 = vmatprep.subr.mxu0 %v1327
    %1932 = vmatpush1.msra.mxu0 %v1326
    %1933 = vmatprep.subr.mxu0 %v1331
    %1934 = vmatpush1.msra.mxu0 %v1330
    %1935 = vmatprep.subr.mxu0 %v1335
    %1936 = vmatpush1.msra.mxu0 %v1334
    %1937 = vmatprep.subr.mxu0 %v1339
    %1938 = vmatpush1.msra.mxu0 %v1338
    %1939 = vmatprep.subr.mxu0 %v1343
    %1940 = vmatpush1.msra.mxu0 %v1342
    %1941 = vmatprep.subr.mxu0 %v1347
    %1942 = vmatpush1.msra.mxu0 %v1346
    %1943 = vmatprep.subr.mxu0 %v1351
    %1944 = vmatpush1.msra.mxu0 %v1350
    %1945 = vmatprep.subr.mxu0 %v1355
    %1946 = vmatpush1.msra.mxu0 %v1354
    %1947 = vmatprep.subr.mxu0 %v1359
    %1948 = vmatpush1.msra.mxu0 %v1358
    %1949 = vmatprep.subr.mxu0 %v1363
    %1950 = vmatpush1.msra.mxu0 %v1362
    %1951 = vmatprep.subr.mxu0 %v1367
    %1952 = vmatpush1.msra.mxu0 %v1366
    %1953 = vmatprep.subr.mxu0 %v1371
    %1954 = vmatpush1.msra.mxu0 %v1370
    %1955 = vmatprep.mubr.f32.mxu0 %v859
    %1956 = vmatmul.mubr.f32.gmra.mrb[0].mxu0 %v858
    %v1957 = vpop.f32.mrb[0].mxu0
    %v1958 = vadd.f32 %v1887, %v1957
    %v1959 = vpop.f32.mrb[0].mxu0
    %v1960 = vadd.f32 %v1889, %v1959
    %1961 = vdwg.mxu0
    %vm1962 = vcmp.gt.f32.partialorder %v1674, 0.0
    %vm1963 = vcmp.gt.f32.partialorder %v1676, 0.0
    %vm1964 = vcmp.gt.f32.partialorder %v1958, 0.0
    %vm1965 = vcmp.gt.f32.partialorder %v1960, 0.0
    %v1966 = vmul.f32 %v1674, 0.2
    %v1967 = vmul.f32 %v1676, 0.2
    %v1968 = vmul.f32 %v1958, 0.2
    %v1969 = vmul.f32 %v1960, 0.2
    %v1970 = vsel %vm1962, %v1674, %v1966
    %v1971 = vsel %vm1963, %v1676, %v1967
    %v1972 = vsel %vm1964, %v1958, %v1968
    %v1973 = vsel %vm1965, %v1960, %v1969
    %s1974 = scalar_lea.vmem [#allocation8], 1
    %v1975 = vld [vmem:[%s1974] ss:$4 sm:$0xf]
    %v1977 = vlaneseq
    %v1978 = vshrl.u32 %v1977, 7
    %v1979 = vsub.s32 0, %v1978
    %v1980 = vrot.slane %v1975, %v1979
    %v1981 = vlaneseq
    %v1982 = vshrl.u32 %v1981, 7
    %v1983 = vsub.s32 1, %v1982
    %v1984 = vrot.slane %v1975, %v1983
    %v1985 = vlaneseq
    %v1986 = vshrl.u32 %v1985, 7
    %v1987 = vsub.s32 2, %v1986
    %v1988 = vrot.slane %v1975, %v1987
    %v1989 = vlaneseq
    %v1990 = vshrl.u32 %v1989, 7
    %v1991 = vsub.s32 3, %v1990
    %v1992 = vrot.slane %v1975, %v1991
    %v1997 = vmul.f32 %v1970, %v1980
    %v1998 = vmul.f32 %v1971, %v1984
    %v1999 = vmul.f32 %v1972, %v1988
    %v2000 = vmul.f32 %v1973, %v1992
    %s2001 = scalar_lea.vmem [#allocation8], 2
    %v2002 = vld [vmem:[%s2001] ss:$4 sm:$0xf]
    %v2004 = vlaneseq
    %v2005 = vshrl.u32 %v2004, 7
    %v2006 = vsub.s32 0, %v2005
    %v2007 = vrot.slane %v2002, %v2006
    %v2008 = vlaneseq
    %v2009 = vshrl.u32 %v2008, 7
    %v2010 = vsub.s32 1, %v2009
    %v2011 = vrot.slane %v2002, %v2010
    %v2012 = vlaneseq
    %v2013 = vshrl.u32 %v2012, 7
    %v2014 = vsub.s32 2, %v2013
    %v2015 = vrot.slane %v2002, %v2014
    %v2016 = vlaneseq
    %v2017 = vshrl.u32 %v2016, 7
    %v2018 = vsub.s32 3, %v2017
    %v2019 = vrot.slane %v2002, %v2018
    %v2024 = vadd.f32 %v1997, %v2007
    %v2025 = vadd.f32 %v1998, %v2011
    %v2026 = vadd.f32 %v1999, %v2015
    %v2027 = vadd.f32 %v2000, %v2019
    %v2028 = vld [vmem:[#allocation10] sm:$0xff]
    %v2029 = vld [vmem:[#allocation10 + $0x8] sm:$0xff]
    %v2030 = vld [vmem:[#allocation10 + $0x10] sm:$0xff]
    %v2031 = vld [vmem:[#allocation10 + $0x18] sm:$0xff]
    %v2032 = vld [vmem:[#allocation10 + $0x20] sm:$0xff]
    %v2033 = vld [vmem:[#allocation10 + $0x28] sm:$0xff]
    %v2034 = vld [vmem:[#allocation10 + $0x30] sm:$0xff]
    %v2035 = vld [vmem:[#allocation10 + $0x38] sm:$0xff]
    %v2036 = vld [vmem:[#allocation10 + $0x40] sm:$0xff]
    %v2037 = vld [vmem:[#allocation10 + $0x48] sm:$0xff]
    %v2038 = vld [vmem:[#allocation10 + $0x50] sm:$0xff]
    %v2039 = vld [vmem:[#allocation10 + $0x58] sm:$0xff]
    %v2040 = vld [vmem:[#allocation10 + $0x60] sm:$0xff]
    %v2041 = vld [vmem:[#allocation10 + $0x68] sm:$0xff]
    %v2042 = vld [vmem:[#allocation10 + $0x70] sm:$0xff]
    %v2043 = vld [vmem:[#allocation10 + $0x78] sm:$0xff]
    %v2044 = vld [vmem:[#allocation10 + $0x80] sm:$0xff]
    %v2045 = vld [vmem:[#allocation10 + $0x88] sm:$0xff]
    %v2046 = vld [vmem:[#allocation10 + $0x90] sm:$0xff]
    %v2047 = vld [vmem:[#allocation10 + $0x98] sm:$0xff]
    %v2048 = vld [vmem:[#allocation10 + $0xa0] sm:$0xff]
    %v2049 = vld [vmem:[#allocation10 + $0xa8] sm:$0xff]
    %v2050 = vld [vmem:[#allocation10 + $0xb0] sm:$0xff]
    %v2051 = vld [vmem:[#allocation10 + $0xb8] sm:$0xff]
    %v2052 = vld [vmem:[#allocation10 + $0xc0] sm:$0xff]
    %v2053 = vld [vmem:[#allocation10 + $0xc8] sm:$0xff]
    %v2054 = vld [vmem:[#allocation10 + $0xd0] sm:$0xff]
    %v2055 = vld [vmem:[#allocation10 + $0xd8] sm:$0xff]
    %v2056 = vld [vmem:[#allocation10 + $0xe0] sm:$0xff]
    %v2057 = vld [vmem:[#allocation10 + $0xe8] sm:$0xff]
    %v2058 = vld [vmem:[#allocation10 + $0xf0] sm:$0xff]
    %v2059 = vld [vmem:[#allocation10 + $0xf8] sm:$0xff]
    %v2060 = vld [vmem:[#allocation10 + $0x100] sm:$0xff]
    %v2061 = vld [vmem:[#allocation10 + $0x108] sm:$0xff]
    %v2062 = vld [vmem:[#allocation10 + $0x110] sm:$0xff]
    %v2063 = vld [vmem:[#allocation10 + $0x118] sm:$0xff]
    %v2064 = vld [vmem:[#allocation10 + $0x120] sm:$0xff]
    %v2065 = vld [vmem:[#allocation10 + $0x128] sm:$0xff]
    %v2066 = vld [vmem:[#allocation10 + $0x130] sm:$0xff]
    %v2067 = vld [vmem:[#allocation10 + $0x138] sm:$0xff]
    %v2068 = vld [vmem:[#allocation10 + $0x140] sm:$0xff]
    %v2069 = vld [vmem:[#allocation10 + $0x148] sm:$0xff]
    %v2070 = vld [vmem:[#allocation10 + $0x150] sm:$0xff]
    %v2071 = vld [vmem:[#allocation10 + $0x158] sm:$0xff]
    %v2072 = vld [vmem:[#allocation10 + $0x160] sm:$0xff]
    %v2073 = vld [vmem:[#allocation10 + $0x168] sm:$0xff]
    %v2074 = vld [vmem:[#allocation10 + $0x170] sm:$0xff]
    %v2075 = vld [vmem:[#allocation10 + $0x178] sm:$0xff]
    %v2076 = vld [vmem:[#allocation10 + $0x180] sm:$0xff]
    %v2077 = vld [vmem:[#allocation10 + $0x188] sm:$0xff]
    %v2078 = vld [vmem:[#allocation10 + $0x190] sm:$0xff]
    %v2079 = vld [vmem:[#allocation10 + $0x198] sm:$0xff]
    %v2080 = vld [vmem:[#allocation10 + $0x1a0] sm:$0xff]
    %v2081 = vld [vmem:[#allocation10 + $0x1a8] sm:$0xff]
    %v2082 = vld [vmem:[#allocation10 + $0x1b0] sm:$0xff]
    %v2083 = vld [vmem:[#allocation10 + $0x1b8] sm:$0xff]
    %v2084 = vld [vmem:[#allocation10 + $0x1c0] sm:$0xff]
    %v2085 = vld [vmem:[#allocation10 + $0x1c8] sm:$0xff]
    %v2086 = vld [vmem:[#allocation10 + $0x1d0] sm:$0xff]
    %v2087 = vld [vmem:[#allocation10 + $0x1d8] sm:$0xff]
    %v2088 = vld [vmem:[#allocation10 + $0x1e0] sm:$0xff]
    %v2089 = vld [vmem:[#allocation10 + $0x1e8] sm:$0xff]
    %v2090 = vld [vmem:[#allocation10 + $0x1f0] sm:$0xff]
    %v2091 = vld [vmem:[#allocation10 + $0x1f8] sm:$0xff]
    %v2092 = vld [vmem:[#allocation10 + $0x200] sm:$0xff]
    %v2093 = vld [vmem:[#allocation10 + $0x208] sm:$0xff]
    %v2094 = vld [vmem:[#allocation10 + $0x210] sm:$0xff]
    %v2095 = vld [vmem:[#allocation10 + $0x218] sm:$0xff]
    %v2096 = vld [vmem:[#allocation10 + $0x220] sm:$0xff]
    %v2097 = vld [vmem:[#allocation10 + $0x228] sm:$0xff]
    %v2098 = vld [vmem:[#allocation10 + $0x230] sm:$0xff]
    %v2099 = vld [vmem:[#allocation10 + $0x238] sm:$0xff]
    %v2100 = vld [vmem:[#allocation10 + $0x240] sm:$0xff]
    %v2101 = vld [vmem:[#allocation10 + $0x248] sm:$0xff]
    %v2102 = vld [vmem:[#allocation10 + $0x250] sm:$0xff]
    %v2103 = vld [vmem:[#allocation10 + $0x258] sm:$0xff]
    %v2104 = vld [vmem:[#allocation10 + $0x260] sm:$0xff]
    %v2105 = vld [vmem:[#allocation10 + $0x268] sm:$0xff]
    %v2106 = vld [vmem:[#allocation10 + $0x270] sm:$0xff]
    %v2107 = vld [vmem:[#allocation10 + $0x278] sm:$0xff]
    %v2108 = vld [vmem:[#allocation10 + $0x280] sm:$0xff]
    %v2109 = vld [vmem:[#allocation10 + $0x288] sm:$0xff]
    %v2110 = vld [vmem:[#allocation10 + $0x290] sm:$0xff]
    %v2111 = vld [vmem:[#allocation10 + $0x298] sm:$0xff]
    %v2112 = vld [vmem:[#allocation10 + $0x2a0] sm:$0xff]
    %v2113 = vld [vmem:[#allocation10 + $0x2a8] sm:$0xff]
    %v2114 = vld [vmem:[#allocation10 + $0x2b0] sm:$0xff]
    %v2115 = vld [vmem:[#allocation10 + $0x2b8] sm:$0xff]
    %v2116 = vld [vmem:[#allocation10 + $0x2c0] sm:$0xff]
    %v2117 = vld [vmem:[#allocation10 + $0x2c8] sm:$0xff]
    %v2118 = vld [vmem:[#allocation10 + $0x2d0] sm:$0xff]
    %v2119 = vld [vmem:[#allocation10 + $0x2d8] sm:$0xff]
    %v2120 = vld [vmem:[#allocation10 + $0x2e0] sm:$0xff]
    %v2121 = vld [vmem:[#allocation10 + $0x2e8] sm:$0xff]
    %v2122 = vld [vmem:[#allocation10 + $0x2f0] sm:$0xff]
    %v2123 = vld [vmem:[#allocation10 + $0x2f8] sm:$0xff]
    %v2124 = vld [vmem:[#allocation10 + $0x300] sm:$0xff]
    %v2125 = vld [vmem:[#allocation10 + $0x308] sm:$0xff]
    %v2126 = vld [vmem:[#allocation10 + $0x310] sm:$0xff]
    %v2127 = vld [vmem:[#allocation10 + $0x318] sm:$0xff]
    %v2128 = vld [vmem:[#allocation10 + $0x320] sm:$0xff]
    %v2129 = vld [vmem:[#allocation10 + $0x328] sm:$0xff]
    %v2130 = vld [vmem:[#allocation10 + $0x330] sm:$0xff]
    %v2131 = vld [vmem:[#allocation10 + $0x338] sm:$0xff]
    %v2132 = vld [vmem:[#allocation10 + $0x340] sm:$0xff]
    %v2133 = vld [vmem:[#allocation10 + $0x348] sm:$0xff]
    %v2134 = vld [vmem:[#allocation10 + $0x350] sm:$0xff]
    %v2135 = vld [vmem:[#allocation10 + $0x358] sm:$0xff]
    %v2136 = vld [vmem:[#allocation10 + $0x360] sm:$0xff]
    %v2137 = vld [vmem:[#allocation10 + $0x368] sm:$0xff]
    %v2138 = vld [vmem:[#allocation10 + $0x370] sm:$0xff]
    %v2139 = vld [vmem:[#allocation10 + $0x378] sm:$0xff]
    %v2140 = vld [vmem:[#allocation10 + $0x380] sm:$0xff]
    %v2141 = vld [vmem:[#allocation10 + $0x388] sm:$0xff]
    %v2142 = vld [vmem:[#allocation10 + $0x390] sm:$0xff]
    %v2143 = vld [vmem:[#allocation10 + $0x398] sm:$0xff]
    %v2144 = vld [vmem:[#allocation10 + $0x3a0] sm:$0xff]
    %v2145 = vld [vmem:[#allocation10 + $0x3a8] sm:$0xff]
    %v2146 = vld [vmem:[#allocation10 + $0x3b0] sm:$0xff]
    %v2147 = vld [vmem:[#allocation10 + $0x3b8] sm:$0xff]
    %v2148 = vld [vmem:[#allocation10 + $0x3c0] sm:$0xff]
    %v2149 = vld [vmem:[#allocation10 + $0x3c8] sm:$0xff]
    %v2150 = vld [vmem:[#allocation10 + $0x3d0] sm:$0xff]
    %v2151 = vld [vmem:[#allocation10 + $0x3d8] sm:$0xff]
    %v2152 = vld [vmem:[#allocation10 + $0x3e0] sm:$0xff]
    %v2153 = vld [vmem:[#allocation10 + $0x3e8] sm:$0xff]
    %v2154 = vld [vmem:[#allocation10 + $0x3f0] sm:$0xff]
    %v2155 = vld [vmem:[#allocation10 + $0x3f8] sm:$0xff]
    %v2156 = vld [vmem:[#allocation11] ss:$4 sm:$0x3]
    %v2158 = vlaneseq
    %v2159 = vshrl.u32 %v2158, 7
    %v2160 = vsub.s32 0, %v2159
    %v2161 = vrot.slane %v2156, %v2160
    %v2162 = vlaneseq
    %v2163 = vshrl.u32 %v2162, 7
    %v2164 = vsub.s32 1, %v2163
    %v2165 = vrot.slane %v2156, %v2164
    %2168 = vmatprep.subr.mxu0 %v2029
    %2169 = vmatpush1.msra.mxu0 %v2028
    %2170 = vmatprep.subr.mxu0 %v2031
    %2171 = vmatpush1.msra.mxu0 %v2030
    %2172 = vmatprep.subr.mxu0 %v2033
    %2173 = vmatpush1.msra.mxu0 %v2032
    %2174 = vmatprep.subr.mxu0 %v2035
    %2175 = vmatpush1.msra.mxu0 %v2034
    %2176 = vmatprep.subr.mxu0 %v2037
    %2177 = vmatpush1.msra.mxu0 %v2036
    %2178 = vmatprep.subr.mxu0 %v2039
    %2179 = vmatpush1.msra.mxu0 %v2038
    %2180 = vmatprep.subr.mxu0 %v2041
    %2181 = vmatpush1.msra.mxu0 %v2040
    %2182 = vmatprep.subr.mxu0 %v2043
    %2183 = vmatpush1.msra.mxu0 %v2042
    %2184 = vmatprep.subr.mxu0 %v2045
    %2185 = vmatpush1.msra.mxu0 %v2044
    %2186 = vmatprep.subr.mxu0 %v2047
    %2187 = vmatpush1.msra.mxu0 %v2046
    %2188 = vmatprep.subr.mxu0 %v2049
    %2189 = vmatpush1.msra.mxu0 %v2048
    %2190 = vmatprep.subr.mxu0 %v2051
    %2191 = vmatpush1.msra.mxu0 %v2050
    %2192 = vmatprep.subr.mxu0 %v2053
    %2193 = vmatpush1.msra.mxu0 %v2052
    %2194 = vmatprep.subr.mxu0 %v2055
    %2195 = vmatpush1.msra.mxu0 %v2054
    %2196 = vmatprep.subr.mxu0 %v2057
    %2197 = vmatpush1.msra.mxu0 %v2056
    %2198 = vmatprep.subr.mxu0 %v2059
    %2199 = vmatpush1.msra.mxu0 %v2058
    %2200 = vmatprep.subr.mxu0 %v2061
    %2201 = vmatpush1.msra.mxu0 %v2060
    %2202 = vmatprep.subr.mxu0 %v2063
    %2203 = vmatpush1.msra.mxu0 %v2062
    %2204 = vmatprep.subr.mxu0 %v2065
    %2205 = vmatpush1.msra.mxu0 %v2064
    %2206 = vmatprep.subr.mxu0 %v2067
    %2207 = vmatpush1.msra.mxu0 %v2066
    %2208 = vmatprep.subr.mxu0 %v2069
    %2209 = vmatpush1.msra.mxu0 %v2068
    %2210 = vmatprep.subr.mxu0 %v2071
    %2211 = vmatpush1.msra.mxu0 %v2070
    %2212 = vmatprep.subr.mxu0 %v2073
    %2213 = vmatpush1.msra.mxu0 %v2072
    %2214 = vmatprep.subr.mxu0 %v2075
    %2215 = vmatpush1.msra.mxu0 %v2074
    %2216 = vmatprep.subr.mxu0 %v2077
    %2217 = vmatpush1.msra.mxu0 %v2076
    %2218 = vmatprep.subr.mxu0 %v2079
    %2219 = vmatpush1.msra.mxu0 %v2078
    %2220 = vmatprep.subr.mxu0 %v2081
    %2221 = vmatpush1.msra.mxu0 %v2080
    %2222 = vmatprep.subr.mxu0 %v2083
    %2223 = vmatpush1.msra.mxu0 %v2082
    %2224 = vmatprep.subr.mxu0 %v2085
    %2225 = vmatpush1.msra.mxu0 %v2084
    %2226 = vmatprep.subr.mxu0 %v2087
    %2227 = vmatpush1.msra.mxu0 %v2086
    %2228 = vmatprep.subr.mxu0 %v2089
    %2229 = vmatpush1.msra.mxu0 %v2088
    %2230 = vmatprep.subr.mxu0 %v2091
    %2231 = vmatpush1.msra.mxu0 %v2090
    %2232 = vmatprep.mubr.f32.mxu0 %v2025
    %2233 = vmatmul.mubr.f32.gmra.mrb[0].mxu0 %v2024
    %v2234 = vpop.f32.mrb[0].mxu0
    %v2235 = vadd.f32 %v2161, %v2234
    %v2236 = vpop.f32.mrb[0].mxu0
    %v2237 = vadd.f32 %v2165, %v2236
    %2238 = vdwg.mxu0
    %2239 = vmatprep.subr.mxu0 %v2093
    %2240 = vmatpush1.msra.mxu0 %v2092
    %2241 = vmatprep.subr.mxu0 %v2095
    %2242 = vmatpush1.msra.mxu0 %v2094
    %2243 = vmatprep.subr.mxu0 %v2097
    %2244 = vmatpush1.msra.mxu0 %v2096
    %2245 = vmatprep.subr.mxu0 %v2099
    %2246 = vmatpush1.msra.mxu0 %v2098
    %2247 = vmatprep.subr.mxu0 %v2101
    %2248 = vmatpush1.msra.mxu0 %v2100
    %2249 = vmatprep.subr.mxu0 %v2103
    %2250 = vmatpush1.msra.mxu0 %v2102
    %2251 = vmatprep.subr.mxu0 %v2105
    %2252 = vmatpush1.msra.mxu0 %v2104
    %2253 = vmatprep.subr.mxu0 %v2107
    %2254 = vmatpush1.msra.mxu0 %v2106
    %2255 = vmatprep.subr.mxu0 %v2109
    %2256 = vmatpush1.msra.mxu0 %v2108
    %2257 = vmatprep.subr.mxu0 %v2111
    %2258 = vmatpush1.msra.mxu0 %v2110
    %2259 = vmatprep.subr.mxu0 %v2113
    %2260 = vmatpush1.msra.mxu0 %v2112
    %2261 = vmatprep.subr.mxu0 %v2115
    %2262 = vmatpush1.msra.mxu0 %v2114
    %2263 = vmatprep.subr.mxu0 %v2117
    %2264 = vmatpush1.msra.mxu0 %v2116
    %2265 = vmatprep.subr.mxu0 %v2119
    %2266 = vmatpush1.msra.mxu0 %v2118
    %2267 = vmatprep.subr.mxu0 %v2121
    %2268 = vmatpush1.msra.mxu0 %v2120
    %2269 = vmatprep.subr.mxu0 %v2123
    %2270 = vmatpush1.msra.mxu0 %v2122
    %2271 = vmatprep.subr.mxu0 %v2125
    %2272 = vmatpush1.msra.mxu0 %v2124
    %2273 = vmatprep.subr.mxu0 %v2127
    %2274 = vmatpush1.msra.mxu0 %v2126
    %2275 = vmatprep.subr.mxu0 %v2129
    %2276 = vmatpush1.msra.mxu0 %v2128
    %2277 = vmatprep.subr.mxu0 %v2131
    %2278 = vmatpush1.msra.mxu0 %v2130
    %2279 = vmatprep.subr.mxu0 %v2133
    %2280 = vmatpush1.msra.mxu0 %v2132
    %2281 = vmatprep.subr.mxu0 %v2135
    %2282 = vmatpush1.msra.mxu0 %v2134
    %2283 = vmatprep.subr.mxu0 %v2137
    %2284 = vmatpush1.msra.mxu0 %v2136
    %2285 = vmatprep.subr.mxu0 %v2139
    %2286 = vmatpush1.msra.mxu0 %v2138
    %2287 = vmatprep.subr.mxu0 %v2141
    %2288 = vmatpush1.msra.mxu0 %v2140
    %2289 = vmatprep.subr.mxu0 %v2143
    %2290 = vmatpush1.msra.mxu0 %v2142
    %2291 = vmatprep.subr.mxu0 %v2145
    %2292 = vmatpush1.msra.mxu0 %v2144
    %2293 = vmatprep.subr.mxu0 %v2147
    %2294 = vmatpush1.msra.mxu0 %v2146
    %2295 = vmatprep.subr.mxu0 %v2149
    %2296 = vmatpush1.msra.mxu0 %v2148
    %2297 = vmatprep.subr.mxu0 %v2151
    %2298 = vmatpush1.msra.mxu0 %v2150
    %2299 = vmatprep.subr.mxu0 %v2153
    %2300 = vmatpush1.msra.mxu0 %v2152
    %2301 = vmatprep.subr.mxu0 %v2155
    %2302 = vmatpush1.msra.mxu0 %v2154
    %2303 = vmatprep.mubr.f32.mxu0 %v2027
    %2304 = vmatmul.mubr.f32.gmra.mrb[0].mxu0 %v2026
    %v2305 = vpop.f32.mrb[0].mxu0
    %v2306 = vadd.f32 %v2235, %v2305
    %v2307 = vpop.f32.mrb[0].mxu0
    %v2308 = vadd.f32 %v2237, %v2307
    %2309 = vdwg.mxu0
    %vm2310 = vcmp.gt.f32.partialorder %v2306, 0.0
    %vm2311 = vcmp.gt.f32.partialorder %v2308, 0.0
    %v2312 = vmul.f32 %v2306, 0.2
    %v2313 = vmul.f32 %v2308, 0.2
    %v2314 = vsel %vm2310, %v2306, %v2312
    %v2315 = vsel %vm2311, %v2308, %v2313
    %s2316 = scalar_lea.vmem [#allocation11], 1
    %v2317 = vld [vmem:[%s2316] ss:$4 sm:$0x3]
    %v2319 = vlaneseq
    %v2320 = vshrl.u32 %v2319, 7
    %v2321 = vsub.s32 0, %v2320
    %v2322 = vrot.slane %v2317, %v2321
    %v2323 = vlaneseq
    %v2324 = vshrl.u32 %v2323, 7
    %v2325 = vsub.s32 1, %v2324
    %v2326 = vrot.slane %v2317, %v2325
    %v2329 = vmul.f32 %v2314, %v2322
    %v2330 = vmul.f32 %v2315, %v2326
    %s2331 = scalar_lea.vmem [#allocation11], 2
    %v2332 = vld [vmem:[%s2331] ss:$4 sm:$0x3]
    %v2334 = vlaneseq
    %v2335 = vshrl.u32 %v2334, 7
    %v2336 = vsub.s32 0, %v2335
    %v2337 = vrot.slane %v2332, %v2336
    %v2338 = vlaneseq
    %v2339 = vshrl.u32 %v2338, 7
    %v2340 = vsub.s32 1, %v2339
    %v2341 = vrot.slane %v2332, %v2340
    %v2344 = vadd.f32 %v2329, %v2337
    %v2345 = vadd.f32 %v2330, %v2341
    %v2346 = vld [vmem:[#allocation13] sm:$0xff]
    %v2347 = vld [vmem:[#allocation13 + $0x8] sm:$0xff]
    %v2348 = vld [vmem:[#allocation13 + $0x10] sm:$0xff]
    %v2349 = vld [vmem:[#allocation13 + $0x18] sm:$0xff]
    %v2350 = vld [vmem:[#allocation13 + $0x20] sm:$0xff]
    %v2351 = vld [vmem:[#allocation13 + $0x28] sm:$0xff]
    %v2352 = vld [vmem:[#allocation13 + $0x30] sm:$0xff]
    %v2353 = vld [vmem:[#allocation13 + $0x38] sm:$0xff]
    %v2354 = vld [vmem:[#allocation13 + $0x40] sm:$0xff]
    %v2355 = vld [vmem:[#allocation13 + $0x48] sm:$0xff]
    %v2356 = vld [vmem:[#allocation13 + $0x50] sm:$0xff]
    %v2357 = vld [vmem:[#allocation13 + $0x58] sm:$0xff]
    %v2358 = vld [vmem:[#allocation13 + $0x60] sm:$0xff]
    %v2359 = vld [vmem:[#allocation13 + $0x68] sm:$0xff]
    %v2360 = vld [vmem:[#allocation13 + $0x70] sm:$0xff]
    %v2361 = vld [vmem:[#allocation13 + $0x78] sm:$0xff]
    %v2362 = vld [vmem:[#allocation13 + $0x80] sm:$0xff]
    %v2363 = vld [vmem:[#allocation13 + $0x88] sm:$0xff]
    %v2364 = vld [vmem:[#allocation13 + $0x90] sm:$0xff]
    %v2365 = vld [vmem:[#allocation13 + $0x98] sm:$0xff]
    %v2366 = vld [vmem:[#allocation13 + $0xa0] sm:$0xff]
    %v2367 = vld [vmem:[#allocation13 + $0xa8] sm:$0xff]
    %v2368 = vld [vmem:[#allocation13 + $0xb0] sm:$0xff]
    %v2369 = vld [vmem:[#allocation13 + $0xb8] sm:$0xff]
    %v2370 = vld [vmem:[#allocation13 + $0xc0] sm:$0xff]
    %v2371 = vld [vmem:[#allocation13 + $0xc8] sm:$0xff]
    %v2372 = vld [vmem:[#allocation13 + $0xd0] sm:$0xff]
    %v2373 = vld [vmem:[#allocation13 + $0xd8] sm:$0xff]
    %v2374 = vld [vmem:[#allocation13 + $0xe0] sm:$0xff]
    %v2375 = vld [vmem:[#allocation13 + $0xe8] sm:$0xff]
    %v2376 = vld [vmem:[#allocation13 + $0xf0] sm:$0xff]
    %v2377 = vld [vmem:[#allocation13 + $0xf8] sm:$0xff]
    %v2378 = vld [vmem:[#allocation14] sm:$0x1]
    %v2379 = vlaneseq
    %v2380 = vshrl.u32 %v2379, 7
    %v2381 = vsub.s32 0, %v2380
    %v2382 = vrot.slane %v2378, %v2381
    %2383 = vmatprep.subr.mxu0 0.0
    %2384 = vmatpush1.msra.mxu0 %v2346
    %2385 = vmatprep.subr.mxu0 0.0
    %2386 = vmatpush1.msra.mxu0 %v2347
    %2387 = vmatprep.subr.mxu0 0.0
    %2388 = vmatpush1.msra.mxu0 %v2348
    %2389 = vmatprep.subr.mxu0 0.0
    %2390 = vmatpush1.msra.mxu0 %v2349
    %2391 = vmatprep.subr.mxu0 0.0
    %2392 = vmatpush1.msra.mxu0 %v2350
    %2393 = vmatprep.subr.mxu0 0.0
    %2394 = vmatpush1.msra.mxu0 %v2351
    %2395 = vmatprep.subr.mxu0 0.0
    %2396 = vmatpush1.msra.mxu0 %v2352
    %2397 = vmatprep.subr.mxu0 0.0
    %2398 = vmatpush1.msra.mxu0 %v2353
    %2399 = vmatprep.subr.mxu0 0.0
    %2400 = vmatpush1.msra.mxu0 %v2354
    %2401 = vmatprep.subr.mxu0 0.0
    %2402 = vmatpush1.msra.mxu0 %v2355
    %2403 = vmatprep.subr.mxu0 0.0
    %2404 = vmatpush1.msra.mxu0 %v2356
    %2405 = vmatprep.subr.mxu0 0.0
    %2406 = vmatpush1.msra.mxu0 %v2357
    %2407 = vmatprep.subr.mxu0 0.0
    %2408 = vmatpush1.msra.mxu0 %v2358
    %2409 = vmatprep.subr.mxu0 0.0
    %2410 = vmatpush1.msra.mxu0 %v2359
    %2411 = vmatprep.subr.mxu0 0.0
    %2412 = vmatpush1.msra.mxu0 %v2360
    %2413 = vmatprep.subr.mxu0 0.0
    %2414 = vmatpush1.msra.mxu0 %v2361
    %2415 = vmatprep.subr.mxu0 0.0
    %2416 = vmatpush1.msra.mxu0 %v2362
    %2417 = vmatprep.subr.mxu0 0.0
    %2418 = vmatpush1.msra.mxu0 %v2363
    %2419 = vmatprep.subr.mxu0 0.0
    %2420 = vmatpush1.msra.mxu0 %v2364
    %2421 = vmatprep.subr.mxu0 0.0
    %2422 = vmatpush1.msra.mxu0 %v2365
    %2423 = vmatprep.subr.mxu0 0.0
    %2424 = vmatpush1.msra.mxu0 %v2366
    %2425 = vmatprep.subr.mxu0 0.0
    %2426 = vmatpush1.msra.mxu0 %v2367
    %2427 = vmatprep.subr.mxu0 0.0
    %2428 = vmatpush1.msra.mxu0 %v2368
    %2429 = vmatprep.subr.mxu0 0.0
    %2430 = vmatpush1.msra.mxu0 %v2369
    %2431 = vmatprep.subr.mxu0 0.0
    %2432 = vmatpush1.msra.mxu0 %v2370
    %2433 = vmatprep.subr.mxu0 0.0
    %2434 = vmatpush1.msra.mxu0 %v2371
    %2435 = vmatprep.subr.mxu0 0.0
    %2436 = vmatpush1.msra.mxu0 %v2372
    %2437 = vmatprep.subr.mxu0 0.0
    %2438 = vmatpush1.msra.mxu0 %v2373
    %2439 = vmatprep.subr.mxu0 0.0
    %2440 = vmatpush1.msra.mxu0 %v2374
    %2441 = vmatprep.subr.mxu0 0.0
    %2442 = vmatpush1.msra.mxu0 %v2375
    %2443 = vmatprep.subr.mxu0 0.0
    %2444 = vmatpush1.msra.mxu0 %v2376
    %2445 = vmatprep.subr.mxu0 0.0
    %2446 = vmatpush1.msra.mxu0 %v2377
    %2447 = vmatprep.mubr.f32.mxu0 %v2345
    %2448 = vmatmul.mubr.f32.gmra.mrb[0].mxu0 %v2344
    %v2449 = vpop.f32.mrb[0].mxu0
    %v2450 = vadd.f32 %v2382, %v2449
    %v2451 = vpop.f32.mrb[0].mxu0
    %2452 = vdwg.mxu0
    %vm2453 = vcmp.gt.f32.partialorder %v2450, 0.0
    %v2454 = vmul.f32 %v2450, 0.2
    %v2455 = vsel %vm2453, %v2450, %v2454
    %v2456 = vld [vmem:[#allocation14 + $0x1] sm:$0x1]
    %v2457 = vlaneseq
    %v2458 = vshrl.u32 %v2457, 7
    %v2459 = vsub.s32 0, %v2458
    %v2460 = vrot.slane %v2456, %v2459
    %v2461 = vmul.f32 %v2455, %v2460
    %v2462 = vld [vmem:[#allocation14 + $0x2] sm:$0x1]
    %v2463 = vlaneseq
    %v2464 = vshrl.u32 %v2463, 7
    %v2465 = vsub.s32 0, %v2464
    %v2466 = vrot.slane %v2462, %v2465
    %v2467 = vadd.f32 %v2461, %v2466
    %v2468 = vld [vmem:[%s9] sm:$0xff]
    %v2469 = vld [vmem:[%s9 + $0x8] sm:$0xff]
    %v2470 = vld [vmem:[%s9 + $0x10] sm:$0xff]
    %v2471 = vld [vmem:[%s9 + $0x18] sm:$0xff]
    %v2472 = vld [vmem:[%s9 + $0x20] sm:$0xff]
    %v2473 = vld [vmem:[%s9 + $0x28] sm:$0xff]
    %v2474 = vld [vmem:[%s9 + $0x30] sm:$0xff]
    %v2475 = vld [vmem:[%s9 + $0x38] sm:$0xff]
    %v2476 = vld [vmem:[%s9 + $0x40] sm:$0xff]
    %v2477 = vld [vmem:[%s9 + $0x48] sm:$0xff]
    %v2478 = vld [vmem:[%s9 + $0x50] sm:$0xff]
    %v2479 = vld [vmem:[%s9 + $0x58] sm:$0xff]
    %v2480 = vld [vmem:[%s9 + $0x60] sm:$0xff]
    %v2481 = vld [vmem:[%s9 + $0x68] sm:$0xff]
    %v2482 = vld [vmem:[%s9 + $0x70] sm:$0xff]
    %v2483 = vld [vmem:[%s9 + $0x78] sm:$0xff]
    %s2484 = sld [smem:[#allocation2]]
    %v2485 = vstv %s2484
    %2486 = vmatprep.subr.mxu0 0.0
    %2487 = vmatpush1.msra.mxu0 %v2468
    %2488 = vmatprep.subr.mxu0 0.0
    %2489 = vmatpush1.msra.mxu0 %v2469
    %2490 = vmatprep.subr.mxu0 0.0
    %2491 = vmatpush1.msra.mxu0 %v2470
    %2492 = vmatprep.subr.mxu0 0.0
    %2493 = vmatpush1.msra.mxu0 %v2471
    %2494 = vmatprep.subr.mxu0 0.0
    %2495 = vmatpush1.msra.mxu0 %v2472
    %2496 = vmatprep.subr.mxu0 0.0
    %2497 = vmatpush1.msra.mxu0 %v2473
    %2498 = vmatprep.subr.mxu0 0.0
    %2499 = vmatpush1.msra.mxu0 %v2474
    %2500 = vmatprep.subr.mxu0 0.0
    %2501 = vmatpush1.msra.mxu0 %v2475
    %2502 = vmatprep.subr.mxu0 0.0
    %2503 = vmatpush1.msra.mxu0 %v2476
    %2504 = vmatprep.subr.mxu0 0.0
    %2505 = vmatpush1.msra.mxu0 %v2477
    %2506 = vmatprep.subr.mxu0 0.0
    %2507 = vmatpush1.msra.mxu0 %v2478
    %2508 = vmatprep.subr.mxu0 0.0
    %2509 = vmatpush1.msra.mxu0 %v2479
    %2510 = vmatprep.subr.mxu0 0.0
    %2511 = vmatpush1.msra.mxu0 %v2480
    %2512 = vmatprep.subr.mxu0 0.0
    %2513 = vmatpush1.msra.mxu0 %v2481
    %2514 = vmatprep.subr.mxu0 0.0
    %2515 = vmatpush1.msra.mxu0 %v2482
    %2516 = vmatprep.subr.mxu0 0.0
    %2517 = vmatpush1.msra.mxu0 %v2483
    %2518 = vmatprep.subr.mxu0 0.0
    %2519 = vmatpush1.msra.mxu0 0.0
    %2520 = vmatprep.subr.mxu0 0.0
    %2521 = vmatpush1.msra.mxu0 0.0
    %2522 = vmatprep.subr.mxu0 0.0
    %2523 = vmatpush1.msra.mxu0 0.0
    %2524 = vmatprep.subr.mxu0 0.0
    %2525 = vmatpush1.msra.mxu0 0.0
    %2526 = vmatprep.subr.mxu0 0.0
    %2527 = vmatpush1.msra.mxu0 0.0
    %2528 = vmatprep.subr.mxu0 0.0
    %2529 = vmatpush1.msra.mxu0 0.0
    %2530 = vmatprep.subr.mxu0 0.0
    %2531 = vmatpush1.msra.mxu0 0.0
    %2532 = vmatprep.subr.mxu0 0.0
    %2533 = vmatpush1.msra.mxu0 0.0
    %2534 = vmatprep.subr.mxu0 0.0
    %2535 = vmatpush1.msra.mxu0 0.0
    %2536 = vmatprep.subr.mxu0 0.0
    %2537 = vmatpush1.msra.mxu0 0.0
    %2538 = vmatprep.subr.mxu0 0.0
    %2539 = vmatpush1.msra.mxu0 0.0
    %2540 = vmatprep.subr.mxu0 0.0
    %2541 = vmatpush1.msra.mxu0 0.0
    %2542 = vmatprep.subr.mxu0 0.0
    %2543 = vmatpush1.msra.mxu0 0.0
    %2544 = vmatprep.subr.mxu0 0.0
    %2545 = vmatpush1.msra.mxu0 0.0
    %2546 = vmatprep.subr.mxu0 0.0
    %2547 = vmatpush1.msra.mxu0 0.0
    %2548 = vmatprep.subr.mxu0 0.0
    %2549 = vmatpush1.msra.mxu0 0.0
    %2550 = vmatprep.mubr.f32.mxu0 0.0
    %2551 = vmatmul.mubr.f32.gmra.mrb[0].mxu0 %v2467
    %v2552 = vpop.f32.mrb[0].mxu0
    %v2553 = vadd.f32 %v2485, %v2552
    %v2554 = vpop.f32.mrb[0].mxu0
    %2555 = vdwg.mxu0
    %vm2556 = vcmask 1024
    %2557 = vst.msk [vmem:[%s11] sm:$0x3] %vm2556, %v2553
    // Predicated region
    $region78: #{discriminator_forward.1} parent=1 // pred_check
      _
    $region79: #{discriminator_forward.1} parent=1 // pred_check_branch
      %2559 = sbr.rel (0) target = $region81
    $region80: #{discriminator_forward.1} parent=1 // pred_region
      _
    $region81: #{discriminator_forward.1} parent=1 // pred_fallthru
      _
    // Predicated region
    $region82: #{discriminator_forward.1} parent=1 // pred_check
      _
    $region83: #{discriminator_forward.1} parent=1 // pred_check_branch
      %2561 = sbr.rel (0) target = $region85
    $region84: #{discriminator_forward.1} parent=1 // pred_region
      _
    $region85: #{discriminator_forward.1} parent=1 // pred_fallthru
      _
    %2562 = vsyncpa [#allocation4], 1
    %2563 = vsyncpa [#allocation6], 1
    %2564 = vsyncpa [#allocation9], 1
    %2565 = vsyncpa [#allocation12], 1
    %2566 = vsyncpa [#allocation15], 1

</llo_original>
